<compile_context>
chip_gen: v5e
topology: v5e:2x2
jax: 0.10.0
libtpu: 0.0.40
codegen_flags: <defaults>
</compile_context>

<pallas_src>
import functools

import jax
import jax.numpy as jnp
import numpy as np
from jax import lax
from jax.experimental import pallas as pl
from jax.experimental.pallas import tpu as pltpu

BN_EPS = 1e-5


def _pick_images_per_step(N, per_image_bytes, target_block_bytes=2 << 20):
    """Largest divisor of N with a per-step block <= target, keeping >= 2 grid
    steps when N >= 2 (so v7x megacore has work for both TensorCores)."""
    budget = max(1, target_block_bytes // max(per_image_bytes, 1))
    cap = min(budget, (N + 1) // 2) if N >= 2 else 1
    nb = 1
    for d in range(1, N + 1):
        if N % d == 0 and d <= cap:
            nb = d
    return nb


def _make_kernels(NB, C, H, W, K, D, PAD):
    """Build the three per-grid-step kernels (all shapes static, stride=1)."""
    CKK = C * K * K
    # Static per-tap source displacements of the stride-1 'same' convolution:
    # out[y, x] += w[co, ci, kh, kw] * in[y + dy, x + dx]   (zero outside image)
    taps = [(kh, kw, kh * D - PAD, kw * D - PAD)
            for kh in range(K) for kw in range(K)]

    def _tap_masks():
        # 0/1 validity masks replacing zero padding (value space, no padded
        # copies).  Loop-invariant: built once per grid step, reused for every
        # channel / image in the block.
        row = lax.broadcasted_iota(jnp.int32, (H, W), 0)
        col = lax.broadcasted_iota(jnp.int32, (H, W), 1)
        masks = {}
        for kh, kw, dy, dx in taps:
            conds = []
            if dy < 0:
                conds.append(row >= -dy)
            elif dy > 0:
                conds.append(row < H - dy)
            if dx < 0:
                conds.append(col >= -dx)
            elif dx > 0:
                conds.append(col < W - dx)
            m = None
            for cnd in conds:
                m = cnd if m is None else jnp.logical_and(m, cnd)
            masks[(kh, kw)] = m          # None => tap fully inside the image
        return masks

    def _tap_slice(plane, dy, dx, mask):
        # plane[y + dy, x + dx] with zero fill: XLU rotates + one VPU select.
        s = plane
        if dy != 0:
            s = pltpu.roll(s, (-dy) % H, axis=0)
        if dx != 0:
            s = pltpu.roll(s, (-dx) % W, axis=1)
        if mask is not None:
            s = jnp.where(mask, s, 0.0)
        return s

    def _conv_image(load_plane, w_ref, masks):
        # Per-tap scalar x (H, W)-plane MACs on the VPU; accumulators stay in
        # vregs and are initialized from the first tap (no zero-fill + add).
        accs = [None] * C
        for ci in range(C):
            plane = load_plane(ci)                                # (H, W) f32
            for kh, kw, dy, dx in taps:
                sl = _tap_slice(plane, dy, dx, masks[(kh, kw)])
                t = (ci * K + kh) * K + kw
                for co in range(C):
                    wv = w_ref[co * CKK + t]                      # SMEM scalar
                    term = wv * sl
                    accs[co] = term if accs[co] is None else accs[co] + term
        return accs

    def _conv_block(load_plane, w_ref, out_ref, st_ref):
        masks = _tap_masks()
        sums = [None] * C
        sqs = [None] * C
        for i in range(NB):
            accs = _conv_image(lambda ci, i=i: load_plane(i, ci), w_ref, masks)
            for co in range(C):
                acc = accs[co]
                out_ref[i, co, :, :] = acc
                s = jnp.sum(jnp.sum(acc, axis=1, keepdims=True),
                            axis=0, keepdims=True)                # (1, 1)
                ss = jnp.sum(jnp.sum(acc * acc, axis=1, keepdims=True),
                             axis=0, keepdims=True)               # (1, 1)
                sums[co] = s if sums[co] is None else sums[co] + s
                sqs[co] = ss if sqs[co] is None else sqs[co] + ss
        rows = [jnp.concatenate([sums[co], sqs[co]], axis=1) for co in range(C)]
        # (C, 2) partial stats = 8 floats per grid step -> negligible traffic.
        st_ref[...] = jnp.concatenate(rows, axis=0)

    def conv1_kernel(x_ref, w_ref, h_ref, st_ref):
        _conv_block(lambda i, ci: x_ref[i, ci, :, :], w_ref, h_ref, st_ref)

    def bn_relu_conv2_kernel(h1_ref, bn1_ref, w_ref, h2_ref, st_ref):
        # bn1_ref (SMEM, length 2C): [scale_0..scale_{C-1}, shift_0..shift_{C-1}]
        def load_plane(i, ci):
            return jnp.maximum(
                h1_ref[i, ci, :, :] * bn1_ref[ci] + bn1_ref[C + ci], 0.0)
        _conv_block(load_plane, w_ref, h2_ref, st_ref)

    def bn_add_relu_kernel(h2_ref, x_ref, bn2_ref, y_ref):
        # Lane-dense blocks: (NB, C, H*W); every load/store is H*W lanes wide.
        for i in range(NB):
            for c in range(C):
                v = (h2_ref[i, c:c + 1, :] * bn2_ref[c] + bn2_ref[C + c]
                     + x_ref[i, c:c + 1, :])
                y_ref[i, c:c + 1, :] = jnp.maximum(v, 0.0)

    return conv1_kernel, bn_relu_conv2_kernel, bn_add_relu_kernel


@functools.partial(jax.jit,
                   static_argnames=("kernel_size", "stride", "padding", "dilation"))
def resblock_forward(x, w1, w2, g1, b1, g2, b2, *,
                     kernel_size, stride, padding, dilation):
    """x: (N, C, H, W) NCHW; w1/w2: (C, C, K, K) OIHW (PyTorch layouts, kept as-is)."""
    N, C, H, W = x.shape
    K, D, PAD = kernel_size, dilation, padding
    Ho = (H + 2 * PAD - D * (K - 1) - 1) // stride + 1
    Wo = (W + 2 * PAD - D * (K - 1) - 1) // stride + 1
    assert stride == 1 and Ho == H and Wo == W, \
        "ResBlock residual add requires stride=1 / 'same' conv output shape"

    x = x.astype(jnp.float32)
    w1_flat = w1.reshape(-1).astype(jnp.float32)   # (C*C*K*K,) co-major -> SMEM
    w2_flat = w2.reshape(-1).astype(jnp.float32)

    per_image_bytes = C * H * W * 4
    NB = _pick_images_per_step(N, per_image_bytes)   # images per grid step
    G = N // NB

    k1, k2, k3 = _make_kernels(NB, C, H, W, K, D, PAD)

    # ~3 activation-sized blocks live per call, double-buffered, + headroom.
    est = 6 * NB * per_image_bytes + (1 << 20)
    vmem_limit = int(min(max(est, 4 << 20), 48 << 20))   # <=48 MiB: safe on v7x
    cparams = pltpu.CompilerParams(dimension_semantics=("parallel",),
                                   vmem_limit_bytes=vmem_limit)

    act_spec = pl.BlockSpec((NB, C, H, W), lambda n: (n, 0, 0, 0))
    flat_spec = pl.BlockSpec((NB, C, H * W), lambda n: (n, 0, 0))
    st_spec = pl.BlockSpec((None, C, 2), lambda n: (n, 0, 0))
    smem = pl.BlockSpec(memory_space=pltpu.MemorySpace.SMEM)
    act_shape = jax.ShapeDtypeStruct((N, C, H, W), jnp.float32)
    st_shape = jax.ShapeDtypeStruct((G, C, 2), jnp.float32)

    # Phase 1: conv1 + fused per-step partial BN1 statistics (padding handled
    # in value space inside the kernel -- no wrapper-side jnp.pad round trip).
    h1, st1 = pl.pallas_call(
        k1, grid=(G,),
        in_specs=[act_spec, smem],
        out_specs=(act_spec, st_spec),
        out_shape=(act_shape, st_shape),
        compiler_params=cparams,
    )(x, w1_flat)

    def fold_bn(stats, gamma, beta):
        # Reduce per-step partial sums -> per-channel affine scale/shift.
        cnt = float(N * H * W)
        mean = jnp.sum(stats[:, :, 0], axis=0) / cnt
        var = jnp.sum(stats[:, :, 1], axis=0) / cnt - mean * mean
        scale = gamma.astype(jnp.float32) * lax.rsqrt(var + BN_EPS)
        shift = beta.astype(jnp.float32) - mean * scale
        return jnp.concatenate([scale, shift])          # (2C,) for SMEM

    bn1 = fold_bn(st1, g1, b1)

    # Phase 2: BN1 + ReLU + conv2 + fused per-step partial BN2 statistics.
    h2, st2 = pl.pallas_call(
        k2, grid=(G,),
        in_specs=[act_spec, smem, smem],
        out_specs=(act_spec, st_spec),
        out_shape=(act_shape, st_shape),
        compiler_params=cparams,
    )(h1, bn1, w2_flat)

    bn2 = fold_bn(st2, g2, b2)

    # Phase 3: BN2 + residual add + ReLU on lane-dense (N, C, H*W) views
    # (free contiguous reshapes), writing in place over h2's buffer.
    h2_flat = h2.reshape(N, C, H * W)
    x_flat = x.reshape(N, C, H * W)
    y_flat = pl.pallas_call(
        k3, grid=(G,),
        in_specs=[flat_spec, flat_spec, smem],
        out_specs=flat_spec,
        out_shape=jax.ShapeDtypeStruct((N, C, H * W), jnp.float32),
        input_output_aliases={0: 0},
        compiler_params=cparams,
    )(h2_flat, x_flat, bn2)
    return y_flat.reshape(N, C, H, W)


def _reference_forward(x, w1, w2, g1, b1, g2, b2, *, stride, padding, dilation):
    # Pure-JAX reference (NCHW, matches PyTorch train-mode forward).
    def conv(h, w, s):
        return lax.conv_general_dilated(
            h, w, (s, s), [(padding, padding), (padding, padding)],
            rhs_dilation=(dilation, dilation),
            dimension_numbers=("NCHW", "OIHW", "NCHW"))

    def bn(h, g, b):
        mean = h.mean(axis=(0, 2, 3), keepdims=True)
        var = ((h - mean) ** 2).mean(axis=(0, 2, 3), keepdims=True)
        return (h - mean) / jnp.sqrt(var + BN_EPS) * g.reshape(1, -1, 1, 1) \
            + b.reshape(1, -1, 1, 1)

    h = jax.nn.relu(bn(conv(x, w1, stride), g1, b1))
    h = bn(conv(h, w2, 1), g2, b2)
    return jax.nn.relu(h + x)


if __name__ == "__main__":
    planes, kernel_size, stride, padding, dilation = 4, 3, 1, 1, 1
    N, H, W = 2, 16, 16

    key = jax.random.PRNGKey(0)
    kx, kw1, kw2, kg1, kb1, kg2, kb2 = jax.random.split(key, 7)
    x = jax.random.normal(kx, (N, planes, H, W), dtype=jnp.float32)
    # Conv weights in PyTorch layout (out, in, kh, kw), bias=False.
    w1 = 0.1 * jax.random.normal(
        kw1, (planes, planes, kernel_size, kernel_size), dtype=jnp.float32)
    w2 = 0.1 * jax.random.normal(
        kw2, (planes, planes, kernel_size, kernel_size), dtype=jnp.float32)
    # BatchNorm2d affine params (default init is weight=1, bias=0; perturb slightly
    # to exercise the fused scale/shift path — semantics unchanged).
    g1 = 1.0 + 0.1 * jax.random.normal(kg1, (planes,), dtype=jnp.float32)
    b1 = 0.1 * jax.random.normal(kb1, (planes,), dtype=jnp.float32)
    g2 = 1.0 + 0.1 * jax.random.normal(kg2, (planes,), dtype=jnp.float32)
    b2 = 0.1 * jax.random.normal(kb2, (planes,), dtype=jnp.float32)

    y = resblock_forward(x, w1, w2, g1, b1, g2, b2,
                         kernel_size=kernel_size, stride=stride,
                         padding=padding, dilation=dilation)
    y = jax.block_until_ready(y)

    y_ref = jax.block_until_ready(
        _reference_forward(x, w1, w2, g1, b1, g2, b2,
                           stride=stride, padding=padding, dilation=dilation))

    np.testing.assert_allclose(np.asarray(y), np.asarray(y_ref),
                               rtol=1e-4, atol=1e-4)
    print("KERNEL_OK")
</pallas_src>

<mosaic_0001>
module attributes {stable_mosaic.version = 11 : i64} {
  func.func @conv1_kernel(%arg0: i32, %arg1: memref<1x4x16x16xf32, #tpu.memory_space<vmem>>, %arg2: memref<144xf32, #tpu.memory_space<smem>>, %arg3: memref<1x4x16x16xf32, #tpu.memory_space<vmem>>, %arg4: memref<1x4x2xf32, #tpu.memory_space<vmem>>) attributes {dimension_semantics = [#tpu.dimension_semantics<parallel>], iteration_bounds = array<i64: 2>, scalar_prefetch = 0 : i64, scratch_operands = 0 : i64, tpu.core_type = #tpu.core_type<tc>, window_params = [{transform_indices = @transform_0, window_bounds = array<i64: 1, 4, 16, 16>}, {transform_indices = @transform_1, window_bounds = array<i64: 144>}, {transform_indices = @transform_2, window_bounds = array<i64: 1, 4, 16, 16>}, {transform_indices = @transform_3, window_bounds = array<i64: 1, 4, 2>}]} {
    %0 = tpu.iota {dimensions = array<i32: 0>} : vector<16x16xi32>
    %1 = tpu.iota {dimensions = array<i32: 1>} : vector<16x16xi32>
    %c1_i32 = arith.constant 1 : i32
    %2 = vector.broadcast %c1_i32 : i32 to vector<16x16xi32>
    %3 = arith.cmpi sge, %0, %2 : vector<16x16xi32>
    %c1_i32_0 = arith.constant 1 : i32
    %4 = vector.broadcast %c1_i32_0 : i32 to vector<16x16xi32>
    %5 = arith.cmpi sge, %1, %4 : vector<16x16xi32>
    %6 = arith.andi %3, %5 : vector<16x16xi1>
    %c1_i32_1 = arith.constant 1 : i32
    %7 = vector.broadcast %c1_i32_1 : i32 to vector<16x16xi32>
    %8 = arith.cmpi sge, %0, %7 : vector<16x16xi32>
    %c1_i32_2 = arith.constant 1 : i32
    %9 = vector.broadcast %c1_i32_2 : i32 to vector<16x16xi32>
    %10 = arith.cmpi sge, %0, %9 : vector<16x16xi32>
    %c15_i32 = arith.constant 15 : i32
    %11 = vector.broadcast %c15_i32 : i32 to vector<16x16xi32>
    %12 = arith.cmpi slt, %1, %11 : vector<16x16xi32>
    %13 = arith.andi %10, %12 : vector<16x16xi1>
    %c1_i32_3 = arith.constant 1 : i32
    %14 = vector.broadcast %c1_i32_3 : i32 to vector<16x16xi32>
    %15 = arith.cmpi sge, %1, %14 : vector<16x16xi32>
    %c15_i32_4 = arith.constant 15 : i32
    %16 = vector.broadcast %c15_i32_4 : i32 to vector<16x16xi32>
    %17 = arith.cmpi slt, %1, %16 : vector<16x16xi32>
    %c15_i32_5 = arith.constant 15 : i32
    %18 = vector.broadcast %c15_i32_5 : i32 to vector<16x16xi32>
    %19 = arith.cmpi slt, %0, %18 : vector<16x16xi32>
    %c1_i32_6 = arith.constant 1 : i32
    %20 = vector.broadcast %c1_i32_6 : i32 to vector<16x16xi32>
    %21 = arith.cmpi sge, %1, %20 : vector<16x16xi32>
    %22 = arith.andi %19, %21 : vector<16x16xi1>
    %c15_i32_7 = arith.constant 15 : i32
    %23 = vector.broadcast %c15_i32_7 : i32 to vector<16x16xi32>
    %24 = arith.cmpi slt, %0, %23 : vector<16x16xi32>
    %c15_i32_8 = arith.constant 15 : i32
    %25 = vector.broadcast %c15_i32_8 : i32 to vector<16x16xi32>
    %26 = arith.cmpi slt, %0, %25 : vector<16x16xi32>
    %c15_i32_9 = arith.constant 15 : i32
    %27 = vector.broadcast %c15_i32_9 : i32 to vector<16x16xi32>
    %28 = arith.cmpi slt, %1, %27 : vector<16x16xi32>
    %29 = arith.andi %26, %28 : vector<16x16xi1>
    %c0 = arith.constant 0 : index
    %c0_10 = arith.constant 0 : index
    %c0_11 = arith.constant 0 : index
    %c0_12 = arith.constant 0 : index
    %30 = vector.load %arg1[%c0, %c0_10, %c0_11, %c0_12] : memref<1x4x16x16xf32, #tpu.memory_space<vmem>>, vector<1x1x16x16xf32>
    %31 = vector.shape_cast %30 : vector<1x1x16x16xf32> to vector<16x16xf32>
    %c1_i32_13 = arith.constant 1 : i32
    %32 = tpu.dynamic_rotate %31 by %c1_i32_13 dim 0 : vector<16x16xf32>, i32 -> vector<16x16xf32>
    %c1_i32_14 = arith.constant 1 : i32
    %33 = tpu.dynamic_rotate %32 by %c1_i32_14 dim 1 : vector<16x16xf32>, i32 -> vector<16x16xf32>
    %cst = arith.constant 0.000000e+00 : f32
    %34 = vector.broadcast %cst : f32 to vector<16x16xf32>
    %35 = arith.select %6, %33, %34 : vector<16x16xi1>, vector<16x16xf32>
    %c0_15 = arith.constant 0 : index
    %36 = memref.load %arg2[%c0_15] : memref<144xf32, #tpu.memory_space<smem>>
    %37 = vector.broadcast %36 : f32 to vector<16x16xf32>
    %38 = arith.mulf %37, %35 : vector<16x16xf32>
    %c36 = arith.constant 36 : index
    %39 = memref.load %arg2[%c36] : memref<144xf32, #tpu.memory_space<smem>>
    %40 = vector.broadcast %39 : f32 to vector<16x16xf32>
    %41 = arith.mulf %40, %35 : vector<16x16xf32>
    %c72 = arith.constant 72 : index
    %42 = memref.load %arg2[%c72] : memref<144xf32, #tpu.memory_space<smem>>
    %43 = vector.broadcast %42 : f32 to vector<16x16xf32>
    %44 = arith.mulf %43, %35 : vector<16x16xf32>
    %c108 = arith.constant 108 : index
    %45 = memref.load %arg2[%c108] : memref<144xf32, #tpu.memory_space<smem>>
    %46 = vector.broadcast %45 : f32 to vector<16x16xf32>
    %47 = arith.mulf %46, %35 : vector<16x16xf32>
    %c1_i32_16 = arith.constant 1 : i32
    %48 = tpu.dynamic_rotate %31 by %c1_i32_16 dim 0 : vector<16x16xf32>, i32 -> vector<16x16xf32>
    %cst_17 = arith.constant 0.000000e+00 : f32
    %49 = vector.broadcast %cst_17 : f32 to vector<16x16xf32>
    %50 = arith.select %8, %48, %49 : vector<16x16xi1>, vector<16x16xf32>
    %c1 = arith.constant 1 : index
    %51 = memref.load %arg2[%c1] : memref<144xf32, #tpu.memory_space<smem>>
    %52 = vector.broadcast %51 : f32 to vector<16x16xf32>
    %53 = arith.mulf %52, %50 : vector<16x16xf32>
    %54 = arith.addf %38, %53 : vector<16x16xf32>
    %c37 = arith.constant 37 : index
    %55 = memref.load %arg2[%c37] : memref<144xf32, #tpu.memory_space<smem>>
    %56 = vector.broadcast %55 : f32 to vector<16x16xf32>
    %57 = arith.mulf %56, %50 : vector<16x16xf32>
    %58 = arith.addf %41, %57 : vector<16x16xf32>
    %c73 = arith.constant 73 : index
    %59 = memref.load %arg2[%c73] : memref<144xf32, #tpu.memory_space<smem>>
    %60 = vector.broadcast %59 : f32 to vector<16x16xf32>
    %61 = arith.mulf %60, %50 : vector<16x16xf32>
    %62 = arith.addf %44, %61 : vector<16x16xf32>
    %c109 = arith.constant 109 : index
    %63 = memref.load %arg2[%c109] : memref<144xf32, #tpu.memory_space<smem>>
    %64 = vector.broadcast %63 : f32 to vector<16x16xf32>
    %65 = arith.mulf %64, %50 : vector<16x16xf32>
    %66 = arith.addf %47, %65 : vector<16x16xf32>
    %c1_i32_18 = arith.constant 1 : i32
    %67 = tpu.dynamic_rotate %31 by %c1_i32_18 dim 0 : vector<16x16xf32>, i32 -> vector<16x16xf32>
    %c15_i32_19 = arith.constant 15 : i32
    %68 = tpu.dynamic_rotate %67 by %c15_i32_19 dim 1 : vector<16x16xf32>, i32 -> vector<16x16xf32>
    %cst_20 = arith.constant 0.000000e+00 : f32
    %69 = vector.broadcast %cst_20 : f32 to vector<16x16xf32>
    %70 = arith.select %13, %68, %69 : vector<16x16xi1>, vector<16x16xf32>
    %c2 = arith.constant 2 : index
    %71 = memref.load %arg2[%c2] : memref<144xf32, #tpu.memory_space<smem>>
    %72 = vector.broadcast %71 : f32 to vector<16x16xf32>
    %73 = arith.mulf %72, %70 : vector<16x16xf32>
    %74 = arith.addf %54, %73 : vector<16x16xf32>
    %c38 = arith.constant 38 : index
    %75 = memref.load %arg2[%c38] : memref<144xf32, #tpu.memory_space<smem>>
    %76 = vector.broadcast %75 : f32 to vector<16x16xf32>
    %77 = arith.mulf %76, %70 : vector<16x16xf32>
    %78 = arith.addf %58, %77 : vector<16x16xf32>
    %c74 = arith.constant 74 : index
    %79 = memref.load %arg2[%c74] : memref<144xf32, #tpu.memory_space<smem>>
    %80 = vector.broadcast %79 : f32 to vector<16x16xf32>
    %81 = arith.mulf %80, %70 : vector<16x16xf32>
    %82 = arith.addf %62, %81 : vector<16x16xf32>
    %c110 = arith.constant 110 : index
    %83 = memref.load %arg2[%c110] : memref<144xf32, #tpu.memory_space<smem>>
    %84 = vector.broadcast %83 : f32 to vector<16x16xf32>
    %85 = arith.mulf %84, %70 : vector<16x16xf32>
    %86 = arith.addf %66, %85 : vector<16x16xf32>
    %c1_i32_21 = arith.constant 1 : i32
    %87 = tpu.dynamic_rotate %31 by %c1_i32_21 dim 1 : vector<16x16xf32>, i32 -> vector<16x16xf32>
    %cst_22 = arith.constant 0.000000e+00 : f32
    %88 = vector.broadcast %cst_22 : f32 to vector<16x16xf32>
    %89 = arith.select %15, %87, %88 : vector<16x16xi1>, vector<16x16xf32>
    %c3 = arith.constant 3 : index
    %90 = memref.load %arg2[%c3] : memref<144xf32, #tpu.memory_space<smem>>
    %91 = vector.broadcast %90 : f32 to vector<16x16xf32>
    %92 = arith.mulf %91, %89 : vector<16x16xf32>
    %93 = arith.addf %74, %92 : vector<16x16xf32>
    %c39 = arith.constant 39 : index
    %94 = memref.load %arg2[%c39] : memref<144xf32, #tpu.memory_space<smem>>
    %95 = vector.broadcast %94 : f32 to vector<16x16xf32>
    %96 = arith.mulf %95, %89 : vector<16x16xf32>
    %97 = arith.addf %78, %96 : vector<16x16xf32>
    %c75 = arith.constant 75 : index
    %98 = memref.load %arg2[%c75] : memref<144xf32, #tpu.memory_space<smem>>
    %99 = vector.broadcast %98 : f32 to vector<16x16xf32>
    %100 = arith.mulf %99, %89 : vector<16x16xf32>
    %101 = arith.addf %82, %100 : vector<16x16xf32>
    %c111 = arith.constant 111 : index
    %102 = memref.load %arg2[%c111] : memref<144xf32, #tpu.memory_space<smem>>
    %103 = vector.broadcast %102 : f32 to vector<16x16xf32>
    %104 = arith.mulf %103, %89 : vector<16x16xf32>
    %105 = arith.addf %86, %104 : vector<16x16xf32>
    %c4 = arith.constant 4 : index
    %106 = memref.load %arg2[%c4] : memref<144xf32, #tpu.memory_space<smem>>
    %107 = vector.broadcast %106 : f32 to vector<16x16xf32>
    %108 = arith.mulf %107, %31 : vector<16x16xf32>
    %109 = arith.addf %93, %108 : vector<16x16xf32>
    %c40 = arith.constant 40 : index
    %110 = memref.load %arg2[%c40] : memref<144xf32, #tpu.memory_space<smem>>
    %111 = vector.broadcast %110 : f32 to vector<16x16xf32>
    %112 = arith.mulf %111, %31 : vector<16x16xf32>
    %113 = arith.addf %97, %112 : vector<16x16xf32>
    %c76 = arith.constant 76 : index
    %114 = memref.load %arg2[%c76] : memref<144xf32, #tpu.memory_space<smem>>
    %115 = vector.broadcast %114 : f32 to vector<16x16xf32>
    %116 = arith.mulf %115, %31 : vector<16x16xf32>
    %117 = arith.addf %101, %116 : vector<16x16xf32>
    %c112 = arith.constant 112 : index
    %118 = memref.load %arg2[%c112] : memref<144xf32, #tpu.memory_space<smem>>
    %119 = vector.broadcast %118 : f32 to vector<16x16xf32>
    %120 = arith.mulf %119, %31 : vector<16x16xf32>
    %121 = arith.addf %105, %120 : vector<16x16xf32>
    %c15_i32_23 = arith.constant 15 : i32
    %122 = tpu.dynamic_rotate %31 by %c15_i32_23 dim 1 : vector<16x16xf32>, i32 -> vector<16x16xf32>
    %cst_24 = arith.constant 0.000000e+00 : f32
    %123 = vector.broadcast %cst_24 : f32 to vector<16x16xf32>
    %124 = arith.select %17, %122, %123 : vector<16x16xi1>, vector<16x16xf32>
    %c5 = arith.constant 5 : index
    %125 = memref.load %arg2[%c5] : memref<144xf32, #tpu.memory_space<smem>>
    %126 = vector.broadcast %125 : f32 to vector<16x16xf32>
    %127 = arith.mulf %126, %124 : vector<16x16xf32>
    %128 = arith.addf %109, %127 : vector<16x16xf32>
    %c41 = arith.constant 41 : index
    %129 = memref.load %arg2[%c41] : memref<144xf32, #tpu.memory_space<smem>>
    %130 = vector.broadcast %129 : f32 to vector<16x16xf32>
    %131 = arith.mulf %130, %124 : vector<16x16xf32>
    %132 = arith.addf %113, %131 : vector<16x16xf32>
    %c77 = arith.constant 77 : index
    %133 = memref.load %arg2[%c77] : memref<144xf32, #tpu.memory_space<smem>>
    %134 = vector.broadcast %133 : f32 to vector<16x16xf32>
    %135 = arith.mulf %134, %124 : vector<16x16xf32>
    %136 = arith.addf %117, %135 : vector<16x16xf32>
    %c113 = arith.constant 113 : index
    %137 = memref.load %arg2[%c113] : memref<144xf32, #tpu.memory_space<smem>>
    %138 = vector.broadcast %137 : f32 to vector<16x16xf32>
    %139 = arith.mulf %138, %124 : vector<16x16xf32>
    %140 = arith.addf %121, %139 : vector<16x16xf32>
    %c15_i32_25 = arith.constant 15 : i32
    %141 = tpu.dynamic_rotate %31 by %c15_i32_25 dim 0 : vector<16x16xf32>, i32 -> vector<16x16xf32>
    %c1_i32_26 = arith.constant 1 : i32
    %142 = tpu.dynamic_rotate %141 by %c1_i32_26 dim 1 : vector<16x16xf32>, i32 -> vector<16x16xf32>
    %cst_27 = arith.constant 0.000000e+00 : f32
    %143 = vector.broadcast %cst_27 : f32 to vector<16x16xf32>
    %144 = arith.select %22, %142, %143 : vector<16x16xi1>, vector<16x16xf32>
    %c6 = arith.constant 6 : index
    %145 = memref.load %arg2[%c6] : memref<144xf32, #tpu.memory_space<smem>>
    %146 = vector.broadcast %145 : f32 to vector<16x16xf32>
    %147 = arith.mulf %146, %144 : vector<16x16xf32>
    %148 = arith.addf %128, %147 : vector<16x16xf32>
    %c42 = arith.constant 42 : index
    %149 = memref.load %arg2[%c42] : memref<144xf32, #tpu.memory_space<smem>>
    %150 = vector.broadcast %149 : f32 to vector<16x16xf32>
    %151 = arith.mulf %150, %144 : vector<16x16xf32>
    %152 = arith.addf %132, %151 : vector<16x16xf32>
    %c78 = arith.constant 78 : index
    %153 = memref.load %arg2[%c78] : memref<144xf32, #tpu.memory_space<smem>>
    %154 = vector.broadcast %153 : f32 to vector<16x16xf32>
    %155 = arith.mulf %154, %144 : vector<16x16xf32>
    %156 = arith.addf %136, %155 : vector<16x16xf32>
    %c114 = arith.constant 114 : index
    %157 = memref.load %arg2[%c114] : memref<144xf32, #tpu.memory_space<smem>>
    %158 = vector.broadcast %157 : f32 to vector<16x16xf32>
    %159 = arith.mulf %158, %144 : vector<16x16xf32>
    %160 = arith.addf %140, %159 : vector<16x16xf32>
    %c15_i32_28 = arith.constant 15 : i32
    %161 = tpu.dynamic_rotate %31 by %c15_i32_28 dim 0 : vector<16x16xf32>, i32 -> vector<16x16xf32>
    %cst_29 = arith.constant 0.000000e+00 : f32
    %162 = vector.broadcast %cst_29 : f32 to vector<16x16xf32>
    %163 = arith.select %24, %161, %162 : vector<16x16xi1>, vector<16x16xf32>
    %c7 = arith.constant 7 : index
    %164 = memref.load %arg2[%c7] : memref<144xf32, #tpu.memory_space<smem>>
    %165 = vector.broadcast %164 : f32 to vector<16x16xf32>
    %166 = arith.mulf %165, %163 : vector<16x16xf32>
    %167 = arith.addf %148, %166 : vector<16x16xf32>
    %c43 = arith.constant 43 : index
    %168 = memref.load %arg2[%c43] : memref<144xf32, #tpu.memory_space<smem>>
    %169 = vector.broadcast %168 : f32 to vector<16x16xf32>
    %170 = arith.mulf %169, %163 : vector<16x16xf32>
    %171 = arith.addf %152, %170 : vector<16x16xf32>
    %c79 = arith.constant 79 : index
    %172 = memref.load %arg2[%c79] : memref<144xf32, #tpu.memory_space<smem>>
    %173 = vector.broadcast %172 : f32 to vector<16x16xf32>
    %174 = arith.mulf %173, %163 : vector<16x16xf32>
    %175 = arith.addf %156, %174 : vector<16x16xf32>
    %c115 = arith.constant 115 : index
    %176 = memref.load %arg2[%c115] : memref<144xf32, #tpu.memory_space<smem>>
    %177 = vector.broadcast %176 : f32 to vector<16x16xf32>
    %178 = arith.mulf %177, %163 : vector<16x16xf32>
    %179 = arith.addf %160, %178 : vector<16x16xf32>
    %c15_i32_30 = arith.constant 15 : i32
    %180 = tpu.dynamic_rotate %31 by %c15_i32_30 dim 0 : vector<16x16xf32>, i32 -> vector<16x16xf32>
    %c15_i32_31 = arith.constant 15 : i32
    %181 = tpu.dynamic_rotate %180 by %c15_i32_31 dim 1 : vector<16x16xf32>, i32 -> vector<16x16xf32>
    %cst_32 = arith.constant 0.000000e+00 : f32
    %182 = vector.broadcast %cst_32 : f32 to vector<16x16xf32>
    %183 = arith.select %29, %181, %182 : vector<16x16xi1>, vector<16x16xf32>
    %c8 = arith.constant 8 : index
    %184 = memref.load %arg2[%c8] : memref<144xf32, #tpu.memory_space<smem>>
    %185 = vector.broadcast %184 : f32 to vector<16x16xf32>
    %186 = arith.mulf %185, %183 : vector<16x16xf32>
    %187 = arith.addf %167, %186 : vector<16x16xf32>
    %c44 = arith.constant 44 : index
    %188 = memref.load %arg2[%c44] : memref<144xf32, #tpu.memory_space<smem>>
    %189 = vector.broadcast %188 : f32 to vector<16x16xf32>
    %190 = arith.mulf %189, %183 : vector<16x16xf32>
    %191 = arith.addf %171, %190 : vector<16x16xf32>
    %c80 = arith.constant 80 : index
    %192 = memref.load %arg2[%c80] : memref<144xf32, #tpu.memory_space<smem>>
    %193 = vector.broadcast %192 : f32 to vector<16x16xf32>
    %194 = arith.mulf %193, %183 : vector<16x16xf32>
    %195 = arith.addf %175, %194 : vector<16x16xf32>
    %c116 = arith.constant 116 : index
    %196 = memref.load %arg2[%c116] : memref<144xf32, #tpu.memory_space<smem>>
    %197 = vector.broadcast %196 : f32 to vector<16x16xf32>
    %198 = arith.mulf %197, %183 : vector<16x16xf32>
    %199 = arith.addf %179, %198 : vector<16x16xf32>
    %c0_33 = arith.constant 0 : index
    %c1_34 = arith.constant 1 : index
    %c0_35 = arith.constant 0 : index
    %c0_36 = arith.constant 0 : index
    %200 = vector.load %arg1[%c0_33, %c1_34, %c0_35, %c0_36] : memref<1x4x16x16xf32, #tpu.memory_space<vmem>>, vector<1x1x16x16xf32>
    %201 = vector.shape_cast %200 : vector<1x1x16x16xf32> to vector<16x16xf32>
    %c1_i32_37 = arith.constant 1 : i32
    %202 = tpu.dynamic_rotate %201 by %c1_i32_37 dim 0 : vector<16x16xf32>, i32 -> vector<16x16xf32>
    %c1_i32_38 = arith.constant 1 : i32
    %203 = tpu.dynamic_rotate %202 by %c1_i32_38 dim 1 : vector<16x16xf32>, i32 -> vector<16x16xf32>
    %cst_39 = arith.constant 0.000000e+00 : f32
    %204 = vector.broadcast %cst_39 : f32 to vector<16x16xf32>
    %205 = arith.select %6, %203, %204 : vector<16x16xi1>, vector<16x16xf32>
    %c9 = arith.constant 9 : index
    %206 = memref.load %arg2[%c9] : memref<144xf32, #tpu.memory_space<smem>>
    %207 = vector.broadcast %206 : f32 to vector<16x16xf32>
    %208 = arith.mulf %207, %205 : vector<16x16xf32>
    %209 = arith.addf %187, %208 : vector<16x16xf32>
    %c45 = arith.constant 45 : index
    %210 = memref.load %arg2[%c45] : memref<144xf32, #tpu.memory_space<smem>>
    %211 = vector.broadcast %210 : f32 to vector<16x16xf32>
    %212 = arith.mulf %211, %205 : vector<16x16xf32>
    %213 = arith.addf %191, %212 : vector<16x16xf32>
    %c81 = arith.constant 81 : index
    %214 = memref.load %arg2[%c81] : memref<144xf32, #tpu.memory_space<smem>>
    %215 = vector.broadcast %214 : f32 to vector<16x16xf32>
    %216 = arith.mulf %215, %205 : vector<16x16xf32>
    %217 = arith.addf %195, %216 : vector<16x16xf32>
    %c117 = arith.constant 117 : index
    %218 = memref.load %arg2[%c117] : memref<144xf32, #tpu.memory_space<smem>>
    %219 = vector.broadcast %218 : f32 to vector<16x16xf32>
    %220 = arith.mulf %219, %205 : vector<16x16xf32>
    %221 = arith.addf %199, %220 : vector<16x16xf32>
    %c1_i32_40 = arith.constant 1 : i32
    %222 = tpu.dynamic_rotate %201 by %c1_i32_40 dim 0 : vector<16x16xf32>, i32 -> vector<16x16xf32>
    %cst_41 = arith.constant 0.000000e+00 : f32
    %223 = vector.broadcast %cst_41 : f32 to vector<16x16xf32>
    %224 = arith.select %8, %222, %223 : vector<16x16xi1>, vector<16x16xf32>
    %c10 = arith.constant 10 : index
    %225 = memref.load %arg2[%c10] : memref<144xf32, #tpu.memory_space<smem>>
    %226 = vector.broadcast %225 : f32 to vector<16x16xf32>
    %227 = arith.mulf %226, %224 : vector<16x16xf32>
    %228 = arith.addf %209, %227 : vector<16x16xf32>
    %c46 = arith.constant 46 : index
    %229 = memref.load %arg2[%c46] : memref<144xf32, #tpu.memory_space<smem>>
    %230 = vector.broadcast %229 : f32 to vector<16x16xf32>
    %231 = arith.mulf %230, %224 : vector<16x16xf32>
    %232 = arith.addf %213, %231 : vector<16x16xf32>
    %c82 = arith.constant 82 : index
    %233 = memref.load %arg2[%c82] : memref<144xf32, #tpu.memory_space<smem>>
    %234 = vector.broadcast %233 : f32 to vector<16x16xf32>
    %235 = arith.mulf %234, %224 : vector<16x16xf32>
    %236 = arith.addf %217, %235 : vector<16x16xf32>
    %c118 = arith.constant 118 : index
    %237 = memref.load %arg2[%c118] : memref<144xf32, #tpu.memory_space<smem>>
    %238 = vector.broadcast %237 : f32 to vector<16x16xf32>
    %239 = arith.mulf %238, %224 : vector<16x16xf32>
    %240 = arith.addf %221, %239 : vector<16x16xf32>
    %c1_i32_42 = arith.constant 1 : i32
    %241 = tpu.dynamic_rotate %201 by %c1_i32_42 dim 0 : vector<16x16xf32>, i32 -> vector<16x16xf32>
    %c15_i32_43 = arith.constant 15 : i32
    %242 = tpu.dynamic_rotate %241 by %c15_i32_43 dim 1 : vector<16x16xf32>, i32 -> vector<16x16xf32>
    %cst_44 = arith.constant 0.000000e+00 : f32
    %243 = vector.broadcast %cst_44 : f32 to vector<16x16xf32>
    %244 = arith.select %13, %242, %243 : vector<16x16xi1>, vector<16x16xf32>
    %c11 = arith.constant 11 : index
    %245 = memref.load %arg2[%c11] : memref<144xf32, #tpu.memory_space<smem>>
    %246 = vector.broadcast %245 : f32 to vector<16x16xf32>
    %247 = arith.mulf %246, %244 : vector<16x16xf32>
    %248 = arith.addf %228, %247 : vector<16x16xf32>
    %c47 = arith.constant 47 : index
    %249 = memref.load %arg2[%c47] : memref<144xf32, #tpu.memory_space<smem>>
    %250 = vector.broadcast %249 : f32 to vector<16x16xf32>
    %251 = arith.mulf %250, %244 : vector<16x16xf32>
    %252 = arith.addf %232, %251 : vector<16x16xf32>
    %c83 = arith.constant 83 : index
    %253 = memref.load %arg2[%c83] : memref<144xf32, #tpu.memory_space<smem>>
    %254 = vector.broadcast %253 : f32 to vector<16x16xf32>
    %255 = arith.mulf %254, %244 : vector<16x16xf32>
    %256 = arith.addf %236, %255 : vector<16x16xf32>
    %c119 = arith.constant 119 : index
    %257 = memref.load %arg2[%c119] : memref<144xf32, #tpu.memory_space<smem>>
    %258 = vector.broadcast %257 : f32 to vector<16x16xf32>
    %259 = arith.mulf %258, %244 : vector<16x16xf32>
    %260 = arith.addf %240, %259 : vector<16x16xf32>
    %c1_i32_45 = arith.constant 1 : i32
    %261 = tpu.dynamic_rotate %201 by %c1_i32_45 dim 1 : vector<16x16xf32>, i32 -> vector<16x16xf32>
    %cst_46 = arith.constant 0.000000e+00 : f32
    %262 = vector.broadcast %cst_46 : f32 to vector<16x16xf32>
    %263 = arith.select %15, %261, %262 : vector<16x16xi1>, vector<16x16xf32>
    %c12 = arith.constant 12 : index
    %264 = memref.load %arg2[%c12] : memref<144xf32, #tpu.memory_space<smem>>
    %265 = vector.broadcast %264 : f32 to vector<16x16xf32>
    %266 = arith.mulf %265, %263 : vector<16x16xf32>
    %267 = arith.addf %248, %266 : vector<16x16xf32>
    %c48 = arith.constant 48 : index
    %268 = memref.load %arg2[%c48] : memref<144xf32, #tpu.memory_space<smem>>
    %269 = vector.broadcast %268 : f32 to vector<16x16xf32>
    %270 = arith.mulf %269, %263 : vector<16x16xf32>
    %271 = arith.addf %252, %270 : vector<16x16xf32>
    %c84 = arith.constant 84 : index
    %272 = memref.load %arg2[%c84] : memref<144xf32, #tpu.memory_space<smem>>
    %273 = vector.broadcast %272 : f32 to vector<16x16xf32>
    %274 = arith.mulf %273, %263 : vector<16x16xf32>
    %275 = arith.addf %256, %274 : vector<16x16xf32>
    %c120 = arith.constant 120 : index
    %276 = memref.load %arg2[%c120] : memref<144xf32, #tpu.memory_space<smem>>
    %277 = vector.broadcast %276 : f32 to vector<16x16xf32>
    %278 = arith.mulf %277, %263 : vector<16x16xf32>
    %279 = arith.addf %260, %278 : vector<16x16xf32>
    %c13 = arith.constant 13 : index
    %280 = memref.load %arg2[%c13] : memref<144xf32, #tpu.memory_space<smem>>
    %281 = vector.broadcast %280 : f32 to vector<16x16xf32>
    %282 = arith.mulf %281, %201 : vector<16x16xf32>
    %283 = arith.addf %267, %282 : vector<16x16xf32>
    %c49 = arith.constant 49 : index
    %284 = memref.load %arg2[%c49] : memref<144xf32, #tpu.memory_space<smem>>
    %285 = vector.broadcast %284 : f32 to vector<16x16xf32>
    %286 = arith.mulf %285, %201 : vector<16x16xf32>
    %287 = arith.addf %271, %286 : vector<16x16xf32>
    %c85 = arith.constant 85 : index
    %288 = memref.load %arg2[%c85] : memref<144xf32, #tpu.memory_space<smem>>
    %289 = vector.broadcast %288 : f32 to vector<16x16xf32>
    %290 = arith.mulf %289, %201 : vector<16x16xf32>
    %291 = arith.addf %275, %290 : vector<16x16xf32>
    %c121 = arith.constant 121 : index
    %292 = memref.load %arg2[%c121] : memref<144xf32, #tpu.memory_space<smem>>
    %293 = vector.broadcast %292 : f32 to vector<16x16xf32>
    %294 = arith.mulf %293, %201 : vector<16x16xf32>
    %295 = arith.addf %279, %294 : vector<16x16xf32>
    %c15_i32_47 = arith.constant 15 : i32
    %296 = tpu.dynamic_rotate %201 by %c15_i32_47 dim 1 : vector<16x16xf32>, i32 -> vector<16x16xf32>
    %cst_48 = arith.constant 0.000000e+00 : f32
    %297 = vector.broadcast %cst_48 : f32 to vector<16x16xf32>
    %298 = arith.select %17, %296, %297 : vector<16x16xi1>, vector<16x16xf32>
    %c14 = arith.constant 14 : index
    %299 = memref.load %arg2[%c14] : memref<144xf32, #tpu.memory_space<smem>>
    %300 = vector.broadcast %299 : f32 to vector<16x16xf32>
    %301 = arith.mulf %300, %298 : vector<16x16xf32>
    %302 = arith.addf %283, %301 : vector<16x16xf32>
    %c50 = arith.constant 50 : index
    %303 = memref.load %arg2[%c50] : memref<144xf32, #tpu.memory_space<smem>>
    %304 = vector.broadcast %303 : f32 to vector<16x16xf32>
    %305 = arith.mulf %304, %298 : vector<16x16xf32>
    %306 = arith.addf %287, %305 : vector<16x16xf32>
    %c86 = arith.constant 86 : index
    %307 = memref.load %arg2[%c86] : memref<144xf32, #tpu.memory_space<smem>>
    %308 = vector.broadcast %307 : f32 to vector<16x16xf32>
    %309 = arith.mulf %308, %298 : vector<16x16xf32>
    %310 = arith.addf %291, %309 : vector<16x16xf32>
    %c122 = arith.constant 122 : index
    %311 = memref.load %arg2[%c122] : memref<144xf32, #tpu.memory_space<smem>>
    %312 = vector.broadcast %311 : f32 to vector<16x16xf32>
    %313 = arith.mulf %312, %298 : vector<16x16xf32>
    %314 = arith.addf %295, %313 : vector<16x16xf32>
    %c15_i32_49 = arith.constant 15 : i32
    %315 = tpu.dynamic_rotate %201 by %c15_i32_49 dim 0 : vector<16x16xf32>, i32 -> vector<16x16xf32>
    %c1_i32_50 = arith.constant 1 : i32
    %316 = tpu.dynamic_rotate %315 by %c1_i32_50 dim 1 : vector<16x16xf32>, i32 -> vector<16x16xf32>
    %cst_51 = arith.constant 0.000000e+00 : f32
    %317 = vector.broadcast %cst_51 : f32 to vector<16x16xf32>
    %318 = arith.select %22, %316, %317 : vector<16x16xi1>, vector<16x16xf32>
    %c15 = arith.constant 15 : index
    %319 = memref.load %arg2[%c15] : memref<144xf32, #tpu.memory_space<smem>>
    %320 = vector.broadcast %319 : f32 to vector<16x16xf32>
    %321 = arith.mulf %320, %318 : vector<16x16xf32>
    %322 = arith.addf %302, %321 : vector<16x16xf32>
    %c51 = arith.constant 51 : index
    %323 = memref.load %arg2[%c51] : memref<144xf32, #tpu.memory_space<smem>>
    %324 = vector.broadcast %323 : f32 to vector<16x16xf32>
    %325 = arith.mulf %324, %318 : vector<16x16xf32>
    %326 = arith.addf %306, %325 : vector<16x16xf32>
    %c87 = arith.constant 87 : index
    %327 = memref.load %arg2[%c87] : memref<144xf32, #tpu.memory_space<smem>>
    %328 = vector.broadcast %327 : f32 to vector<16x16xf32>
    %329 = arith.mulf %328, %318 : vector<16x16xf32>
    %330 = arith.addf %310, %329 : vector<16x16xf32>
    %c123 = arith.constant 123 : index
    %331 = memref.load %arg2[%c123] : memref<144xf32, #tpu.memory_space<smem>>
    %332 = vector.broadcast %331 : f32 to vector<16x16xf32>
    %333 = arith.mulf %332, %318 : vector<16x16xf32>
    %334 = arith.addf %314, %333 : vector<16x16xf32>
    %c15_i32_52 = arith.constant 15 : i32
    %335 = tpu.dynamic_rotate %201 by %c15_i32_52 dim 0 : vector<16x16xf32>, i32 -> vector<16x16xf32>
    %cst_53 = arith.constant 0.000000e+00 : f32
    %336 = vector.broadcast %cst_53 : f32 to vector<16x16xf32>
    %337 = arith.select %24, %335, %336 : vector<16x16xi1>, vector<16x16xf32>
    %c16 = arith.constant 16 : index
    %338 = memref.load %arg2[%c16] : memref<144xf32, #tpu.memory_space<smem>>
    %339 = vector.broadcast %338 : f32 to vector<16x16xf32>
    %340 = arith.mulf %339, %337 : vector<16x16xf32>
    %341 = arith.addf %322, %340 : vector<16x16xf32>
    %c52 = arith.constant 52 : index
    %342 = memref.load %arg2[%c52] : memref<144xf32, #tpu.memory_space<smem>>
    %343 = vector.broadcast %342 : f32 to vector<16x16xf32>
    %344 = arith.mulf %343, %337 : vector<16x16xf32>
    %345 = arith.addf %326, %344 : vector<16x16xf32>
    %c88 = arith.constant 88 : index
    %346 = memref.load %arg2[%c88] : memref<144xf32, #tpu.memory_space<smem>>
    %347 = vector.broadcast %346 : f32 to vector<16x16xf32>
    %348 = arith.mulf %347, %337 : vector<16x16xf32>
    %349 = arith.addf %330, %348 : vector<16x16xf32>
    %c124 = arith.constant 124 : index
    %350 = memref.load %arg2[%c124] : memref<144xf32, #tpu.memory_space<smem>>
    %351 = vector.broadcast %350 : f32 to vector<16x16xf32>
    %352 = arith.mulf %351, %337 : vector<16x16xf32>
    %353 = arith.addf %334, %352 : vector<16x16xf32>
    %c15_i32_54 = arith.constant 15 : i32
    %354 = tpu.dynamic_rotate %201 by %c15_i32_54 dim 0 : vector<16x16xf32>, i32 -> vector<16x16xf32>
    %c15_i32_55 = arith.constant 15 : i32
    %355 = tpu.dynamic_rotate %354 by %c15_i32_55 dim 1 : vector<16x16xf32>, i32 -> vector<16x16xf32>
    %cst_56 = arith.constant 0.000000e+00 : f32
    %356 = vector.broadcast %cst_56 : f32 to vector<16x16xf32>
    %357 = arith.select %29, %355, %356 : vector<16x16xi1>, vector<16x16xf32>
    %c17 = arith.constant 17 : index
    %358 = memref.load %arg2[%c17] : memref<144xf32, #tpu.memory_space<smem>>
    %359 = vector.broadcast %358 : f32 to vector<16x16xf32>
    %360 = arith.mulf %359, %357 : vector<16x16xf32>
    %361 = arith.addf %341, %360 : vector<16x16xf32>
    %c53 = arith.constant 53 : index
    %362 = memref.load %arg2[%c53] : memref<144xf32, #tpu.memory_space<smem>>
    %363 = vector.broadcast %362 : f32 to vector<16x16xf32>
    %364 = arith.mulf %363, %357 : vector<16x16xf32>
    %365 = arith.addf %345, %364 : vector<16x16xf32>
    %c89 = arith.constant 89 : index
    %366 = memref.load %arg2[%c89] : memref<144xf32, #tpu.memory_space<smem>>
    %367 = vector.broadcast %366 : f32 to vector<16x16xf32>
    %368 = arith.mulf %367, %357 : vector<16x16xf32>
    %369 = arith.addf %349, %368 : vector<16x16xf32>
    %c125 = arith.constant 125 : index
    %370 = memref.load %arg2[%c125] : memref<144xf32, #tpu.memory_space<smem>>
    %371 = vector.broadcast %370 : f32 to vector<16x16xf32>
    %372 = arith.mulf %371, %357 : vector<16x16xf32>
    %373 = arith.addf %353, %372 : vector<16x16xf32>
    %c0_57 = arith.constant 0 : index
    %c2_58 = arith.constant 2 : index
    %c0_59 = arith.constant 0 : index
    %c0_60 = arith.constant 0 : index
    %374 = vector.load %arg1[%c0_57, %c2_58, %c0_59, %c0_60] : memref<1x4x16x16xf32, #tpu.memory_space<vmem>>, vector<1x1x16x16xf32>
    %375 = vector.shape_cast %374 : vector<1x1x16x16xf32> to vector<16x16xf32>
    %c1_i32_61 = arith.constant 1 : i32
    %376 = tpu.dynamic_rotate %375 by %c1_i32_61 dim 0 : vector<16x16xf32>, i32 -> vector<16x16xf32>
    %c1_i32_62 = arith.constant 1 : i32
    %377 = tpu.dynamic_rotate %376 by %c1_i32_62 dim 1 : vector<16x16xf32>, i32 -> vector<16x16xf32>
    %cst_63 = arith.constant 0.000000e+00 : f32
    %378 = vector.broadcast %cst_63 : f32 to vector<16x16xf32>
    %379 = arith.select %6, %377, %378 : vector<16x16xi1>, vector<16x16xf32>
    %c18 = arith.constant 18 : index
    %380 = memref.load %arg2[%c18] : memref<144xf32, #tpu.memory_space<smem>>
    %381 = vector.broadcast %380 : f32 to vector<16x16xf32>
    %382 = arith.mulf %381, %379 : vector<16x16xf32>
    %383 = arith.addf %361, %382 : vector<16x16xf32>
    %c54 = arith.constant 54 : index
    %384 = memref.load %arg2[%c54] : memref<144xf32, #tpu.memory_space<smem>>
    %385 = vector.broadcast %384 : f32 to vector<16x16xf32>
    %386 = arith.mulf %385, %379 : vector<16x16xf32>
    %387 = arith.addf %365, %386 : vector<16x16xf32>
    %c90 = arith.constant 90 : index
    %388 = memref.load %arg2[%c90] : memref<144xf32, #tpu.memory_space<smem>>
    %389 = vector.broadcast %388 : f32 to vector<16x16xf32>
    %390 = arith.mulf %389, %379 : vector<16x16xf32>
    %391 = arith.addf %369, %390 : vector<16x16xf32>
    %c126 = arith.constant 126 : index
    %392 = memref.load %arg2[%c126] : memref<144xf32, #tpu.memory_space<smem>>
    %393 = vector.broadcast %392 : f32 to vector<16x16xf32>
    %394 = arith.mulf %393, %379 : vector<16x16xf32>
    %395 = arith.addf %373, %394 : vector<16x16xf32>
    %c1_i32_64 = arith.constant 1 : i32
    %396 = tpu.dynamic_rotate %375 by %c1_i32_64 dim 0 : vector<16x16xf32>, i32 -> vector<16x16xf32>
    %cst_65 = arith.constant 0.000000e+00 : f32
    %397 = vector.broadcast %cst_65 : f32 to vector<16x16xf32>
    %398 = arith.select %8, %396, %397 : vector<16x16xi1>, vector<16x16xf32>
    %c19 = arith.constant 19 : index
    %399 = memref.load %arg2[%c19] : memref<144xf32, #tpu.memory_space<smem>>
    %400 = vector.broadcast %399 : f32 to vector<16x16xf32>
    %401 = arith.mulf %400, %398 : vector<16x16xf32>
    %402 = arith.addf %383, %401 : vector<16x16xf32>
    %c55 = arith.constant 55 : index
    %403 = memref.load %arg2[%c55] : memref<144xf32, #tpu.memory_space<smem>>
    %404 = vector.broadcast %403 : f32 to vector<16x16xf32>
    %405 = arith.mulf %404, %398 : vector<16x16xf32>
    %406 = arith.addf %387, %405 : vector<16x16xf32>
    %c91 = arith.constant 91 : index
    %407 = memref.load %arg2[%c91] : memref<144xf32, #tpu.memory_space<smem>>
    %408 = vector.broadcast %407 : f32 to vector<16x16xf32>
    %409 = arith.mulf %408, %398 : vector<16x16xf32>
    %410 = arith.addf %391, %409 : vector<16x16xf32>
    %c127 = arith.constant 127 : index
    %411 = memref.load %arg2[%c127] : memref<144xf32, #tpu.memory_space<smem>>
    %412 = vector.broadcast %411 : f32 to vector<16x16xf32>
    %413 = arith.mulf %412, %398 : vector<16x16xf32>
    %414 = arith.addf %395, %413 : vector<16x16xf32>
    %c1_i32_66 = arith.constant 1 : i32
    %415 = tpu.dynamic_rotate %375 by %c1_i32_66 dim 0 : vector<16x16xf32>, i32 -> vector<16x16xf32>
    %c15_i32_67 = arith.constant 15 : i32
    %416 = tpu.dynamic_rotate %415 by %c15_i32_67 dim 1 : vector<16x16xf32>, i32 -> vector<16x16xf32>
    %cst_68 = arith.constant 0.000000e+00 : f32
    %417 = vector.broadcast %cst_68 : f32 to vector<16x16xf32>
    %418 = arith.select %13, %416, %417 : vector<16x16xi1>, vector<16x16xf32>
    %c20 = arith.constant 20 : index
    %419 = memref.load %arg2[%c20] : memref<144xf32, #tpu.memory_space<smem>>
    %420 = vector.broadcast %419 : f32 to vector<16x16xf32>
    %421 = arith.mulf %420, %418 : vector<16x16xf32>
    %422 = arith.addf %402, %421 : vector<16x16xf32>
    %c56 = arith.constant 56 : index
    %423 = memref.load %arg2[%c56] : memref<144xf32, #tpu.memory_space<smem>>
    %424 = vector.broadcast %423 : f32 to vector<16x16xf32>
    %425 = arith.mulf %424, %418 : vector<16x16xf32>
    %426 = arith.addf %406, %425 : vector<16x16xf32>
    %c92 = arith.constant 92 : index
    %427 = memref.load %arg2[%c92] : memref<144xf32, #tpu.memory_space<smem>>
    %428 = vector.broadcast %427 : f32 to vector<16x16xf32>
    %429 = arith.mulf %428, %418 : vector<16x16xf32>
    %430 = arith.addf %410, %429 : vector<16x16xf32>
    %c128 = arith.constant 128 : index
    %431 = memref.load %arg2[%c128] : memref<144xf32, #tpu.memory_space<smem>>
    %432 = vector.broadcast %431 : f32 to vector<16x16xf32>
    %433 = arith.mulf %432, %418 : vector<16x16xf32>
    %434 = arith.addf %414, %433 : vector<16x16xf32>
    %c1_i32_69 = arith.constant 1 : i32
    %435 = tpu.dynamic_rotate %375 by %c1_i32_69 dim 1 : vector<16x16xf32>, i32 -> vector<16x16xf32>
    %cst_70 = arith.constant 0.000000e+00 : f32
    %436 = vector.broadcast %cst_70 : f32 to vector<16x16xf32>
    %437 = arith.select %15, %435, %436 : vector<16x16xi1>, vector<16x16xf32>
    %c21 = arith.constant 21 : index
    %438 = memref.load %arg2[%c21] : memref<144xf32, #tpu.memory_space<smem>>
    %439 = vector.broadcast %438 : f32 to vector<16x16xf32>
    %440 = arith.mulf %439, %437 : vector<16x16xf32>
    %441 = arith.addf %422, %440 : vector<16x16xf32>
    %c57 = arith.constant 57 : index
    %442 = memref.load %arg2[%c57] : memref<144xf32, #tpu.memory_space<smem>>
    %443 = vector.broadcast %442 : f32 to vector<16x16xf32>
    %444 = arith.mulf %443, %437 : vector<16x16xf32>
    %445 = arith.addf %426, %444 : vector<16x16xf32>
    %c93 = arith.constant 93 : index
    %446 = memref.load %arg2[%c93] : memref<144xf32, #tpu.memory_space<smem>>
    %447 = vector.broadcast %446 : f32 to vector<16x16xf32>
    %448 = arith.mulf %447, %437 : vector<16x16xf32>
    %449 = arith.addf %430, %448 : vector<16x16xf32>
    %c129 = arith.constant 129 : index
    %450 = memref.load %arg2[%c129] : memref<144xf32, #tpu.memory_space<smem>>
    %451 = vector.broadcast %450 : f32 to vector<16x16xf32>
    %452 = arith.mulf %451, %437 : vector<16x16xf32>
    %453 = arith.addf %434, %452 : vector<16x16xf32>
    %c22 = arith.constant 22 : index
    %454 = memref.load %arg2[%c22] : memref<144xf32, #tpu.memory_space<smem>>
    %455 = vector.broadcast %454 : f32 to vector<16x16xf32>
    %456 = arith.mulf %455, %375 : vector<16x16xf32>
    %457 = arith.addf %441, %456 : vector<16x16xf32>
    %c58 = arith.constant 58 : index
    %458 = memref.load %arg2[%c58] : memref<144xf32, #tpu.memory_space<smem>>
    %459 = vector.broadcast %458 : f32 to vector<16x16xf32>
    %460 = arith.mulf %459, %375 : vector<16x16xf32>
    %461 = arith.addf %445, %460 : vector<16x16xf32>
    %c94 = arith.constant 94 : index
    %462 = memref.load %arg2[%c94] : memref<144xf32, #tpu.memory_space<smem>>
    %463 = vector.broadcast %462 : f32 to vector<16x16xf32>
    %464 = arith.mulf %463, %375 : vector<16x16xf32>
    %465 = arith.addf %449, %464 : vector<16x16xf32>
    %c130 = arith.constant 130 : index
    %466 = memref.load %arg2[%c130] : memref<144xf32, #tpu.memory_space<smem>>
    %467 = vector.broadcast %466 : f32 to vector<16x16xf32>
    %468 = arith.mulf %467, %375 : vector<16x16xf32>
    %469 = arith.addf %453, %468 : vector<16x16xf32>
    %c15_i32_71 = arith.constant 15 : i32
    %470 = tpu.dynamic_rotate %375 by %c15_i32_71 dim 1 : vector<16x16xf32>, i32 -> vector<16x16xf32>
    %cst_72 = arith.constant 0.000000e+00 : f32
    %471 = vector.broadcast %cst_72 : f32 to vector<16x16xf32>
    %472 = arith.select %17, %470, %471 : vector<16x16xi1>, vector<16x16xf32>
    %c23 = arith.constant 23 : index
    %473 = memref.load %arg2[%c23] : memref<144xf32, #tpu.memory_space<smem>>
    %474 = vector.broadcast %473 : f32 to vector<16x16xf32>
    %475 = arith.mulf %474, %472 : vector<16x16xf32>
    %476 = arith.addf %457, %475 : vector<16x16xf32>
    %c59 = arith.constant 59 : index
    %477 = memref.load %arg2[%c59] : memref<144xf32, #tpu.memory_space<smem>>
    %478 = vector.broadcast %477 : f32 to vector<16x16xf32>
    %479 = arith.mulf %478, %472 : vector<16x16xf32>
    %480 = arith.addf %461, %479 : vector<16x16xf32>
    %c95 = arith.constant 95 : index
    %481 = memref.load %arg2[%c95] : memref<144xf32, #tpu.memory_space<smem>>
    %482 = vector.broadcast %481 : f32 to vector<16x16xf32>
    %483 = arith.mulf %482, %472 : vector<16x16xf32>
    %484 = arith.addf %465, %483 : vector<16x16xf32>
    %c131 = arith.constant 131 : index
    %485 = memref.load %arg2[%c131] : memref<144xf32, #tpu.memory_space<smem>>
    %486 = vector.broadcast %485 : f32 to vector<16x16xf32>
    %487 = arith.mulf %486, %472 : vector<16x16xf32>
    %488 = arith.addf %469, %487 : vector<16x16xf32>
    %c15_i32_73 = arith.constant 15 : i32
    %489 = tpu.dynamic_rotate %375 by %c15_i32_73 dim 0 : vector<16x16xf32>, i32 -> vector<16x16xf32>
    %c1_i32_74 = arith.constant 1 : i32
    %490 = tpu.dynamic_rotate %489 by %c1_i32_74 dim 1 : vector<16x16xf32>, i32 -> vector<16x16xf32>
    %cst_75 = arith.constant 0.000000e+00 : f32
    %491 = vector.broadcast %cst_75 : f32 to vector<16x16xf32>
    %492 = arith.select %22, %490, %491 : vector<16x16xi1>, vector<16x16xf32>
    %c24 = arith.constant 24 : index
    %493 = memref.load %arg2[%c24] : memref<144xf32, #tpu.memory_space<smem>>
    %494 = vector.broadcast %493 : f32 to vector<16x16xf32>
    %495 = arith.mulf %494, %492 : vector<16x16xf32>
    %496 = arith.addf %476, %495 : vector<16x16xf32>
    %c60 = arith.constant 60 : index
    %497 = memref.load %arg2[%c60] : memref<144xf32, #tpu.memory_space<smem>>
    %498 = vector.broadcast %497 : f32 to vector<16x16xf32>
    %499 = arith.mulf %498, %492 : vector<16x16xf32>
    %500 = arith.addf %480, %499 : vector<16x16xf32>
    %c96 = arith.constant 96 : index
    %501 = memref.load %arg2[%c96] : memref<144xf32, #tpu.memory_space<smem>>
    %502 = vector.broadcast %501 : f32 to vector<16x16xf32>
    %503 = arith.mulf %502, %492 : vector<16x16xf32>
    %504 = arith.addf %484, %503 : vector<16x16xf32>
    %c132 = arith.constant 132 : index
    %505 = memref.load %arg2[%c132] : memref<144xf32, #tpu.memory_space<smem>>
    %506 = vector.broadcast %505 : f32 to vector<16x16xf32>
    %507 = arith.mulf %506, %492 : vector<16x16xf32>
    %508 = arith.addf %488, %507 : vector<16x16xf32>
    %c15_i32_76 = arith.constant 15 : i32
    %509 = tpu.dynamic_rotate %375 by %c15_i32_76 dim 0 : vector<16x16xf32>, i32 -> vector<16x16xf32>
    %cst_77 = arith.constant 0.000000e+00 : f32
    %510 = vector.broadcast %cst_77 : f32 to vector<16x16xf32>
    %511 = arith.select %24, %509, %510 : vector<16x16xi1>, vector<16x16xf32>
    %c25 = arith.constant 25 : index
    %512 = memref.load %arg2[%c25] : memref<144xf32, #tpu.memory_space<smem>>
    %513 = vector.broadcast %512 : f32 to vector<16x16xf32>
    %514 = arith.mulf %513, %511 : vector<16x16xf32>
    %515 = arith.addf %496, %514 : vector<16x16xf32>
    %c61 = arith.constant 61 : index
    %516 = memref.load %arg2[%c61] : memref<144xf32, #tpu.memory_space<smem>>
    %517 = vector.broadcast %516 : f32 to vector<16x16xf32>
    %518 = arith.mulf %517, %511 : vector<16x16xf32>
    %519 = arith.addf %500, %518 : vector<16x16xf32>
    %c97 = arith.constant 97 : index
    %520 = memref.load %arg2[%c97] : memref<144xf32, #tpu.memory_space<smem>>
    %521 = vector.broadcast %520 : f32 to vector<16x16xf32>
    %522 = arith.mulf %521, %511 : vector<16x16xf32>
    %523 = arith.addf %504, %522 : vector<16x16xf32>
    %c133 = arith.constant 133 : index
    %524 = memref.load %arg2[%c133] : memref<144xf32, #tpu.memory_space<smem>>
    %525 = vector.broadcast %524 : f32 to vector<16x16xf32>
    %526 = arith.mulf %525, %511 : vector<16x16xf32>
    %527 = arith.addf %508, %526 : vector<16x16xf32>
    %c15_i32_78 = arith.constant 15 : i32
    %528 = tpu.dynamic_rotate %375 by %c15_i32_78 dim 0 : vector<16x16xf32>, i32 -> vector<16x16xf32>
    %c15_i32_79 = arith.constant 15 : i32
    %529 = tpu.dynamic_rotate %528 by %c15_i32_79 dim 1 : vector<16x16xf32>, i32 -> vector<16x16xf32>
    %cst_80 = arith.constant 0.000000e+00 : f32
    %530 = vector.broadcast %cst_80 : f32 to vector<16x16xf32>
    %531 = arith.select %29, %529, %530 : vector<16x16xi1>, vector<16x16xf32>
    %c26 = arith.constant 26 : index
    %532 = memref.load %arg2[%c26] : memref<144xf32, #tpu.memory_space<smem>>
    %533 = vector.broadcast %532 : f32 to vector<16x16xf32>
    %534 = arith.mulf %533, %531 : vector<16x16xf32>
    %535 = arith.addf %515, %534 : vector<16x16xf32>
    %c62 = arith.constant 62 : index
    %536 = memref.load %arg2[%c62] : memref<144xf32, #tpu.memory_space<smem>>
    %537 = vector.broadcast %536 : f32 to vector<16x16xf32>
    %538 = arith.mulf %537, %531 : vector<16x16xf32>
    %539 = arith.addf %519, %538 : vector<16x16xf32>
    %c98 = arith.constant 98 : index
    %540 = memref.load %arg2[%c98] : memref<144xf32, #tpu.memory_space<smem>>
    %541 = vector.broadcast %540 : f32 to vector<16x16xf32>
    %542 = arith.mulf %541, %531 : vector<16x16xf32>
    %543 = arith.addf %523, %542 : vector<16x16xf32>
    %c134 = arith.constant 134 : index
    %544 = memref.load %arg2[%c134] : memref<144xf32, #tpu.memory_space<smem>>
    %545 = vector.broadcast %544 : f32 to vector<16x16xf32>
    %546 = arith.mulf %545, %531 : vector<16x16xf32>
    %547 = arith.addf %527, %546 : vector<16x16xf32>
    %c0_81 = arith.constant 0 : index
    %c3_82 = arith.constant 3 : index
    %c0_83 = arith.constant 0 : index
    %c0_84 = arith.constant 0 : index
    %548 = vector.load %arg1[%c0_81, %c3_82, %c0_83, %c0_84] : memref<1x4x16x16xf32, #tpu.memory_space<vmem>>, vector<1x1x16x16xf32>
    %549 = vector.shape_cast %548 : vector<1x1x16x16xf32> to vector<16x16xf32>
    %c1_i32_85 = arith.constant 1 : i32
    %550 = tpu.dynamic_rotate %549 by %c1_i32_85 dim 0 : vector<16x16xf32>, i32 -> vector<16x16xf32>
    %c1_i32_86 = arith.constant 1 : i32
    %551 = tpu.dynamic_rotate %550 by %c1_i32_86 dim 1 : vector<16x16xf32>, i32 -> vector<16x16xf32>
    %cst_87 = arith.constant 0.000000e+00 : f32
    %552 = vector.broadcast %cst_87 : f32 to vector<16x16xf32>
    %553 = arith.select %6, %551, %552 : vector<16x16xi1>, vector<16x16xf32>
    %c27 = arith.constant 27 : index
    %554 = memref.load %arg2[%c27] : memref<144xf32, #tpu.memory_space<smem>>
    %555 = vector.broadcast %554 : f32 to vector<16x16xf32>
    %556 = arith.mulf %555, %553 : vector<16x16xf32>
    %557 = arith.addf %535, %556 : vector<16x16xf32>
    %c63 = arith.constant 63 : index
    %558 = memref.load %arg2[%c63] : memref<144xf32, #tpu.memory_space<smem>>
    %559 = vector.broadcast %558 : f32 to vector<16x16xf32>
    %560 = arith.mulf %559, %553 : vector<16x16xf32>
    %561 = arith.addf %539, %560 : vector<16x16xf32>
    %c99 = arith.constant 99 : index
    %562 = memref.load %arg2[%c99] : memref<144xf32, #tpu.memory_space<smem>>
    %563 = vector.broadcast %562 : f32 to vector<16x16xf32>
    %564 = arith.mulf %563, %553 : vector<16x16xf32>
    %565 = arith.addf %543, %564 : vector<16x16xf32>
    %c135 = arith.constant 135 : index
    %566 = memref.load %arg2[%c135] : memref<144xf32, #tpu.memory_space<smem>>
    %567 = vector.broadcast %566 : f32 to vector<16x16xf32>
    %568 = arith.mulf %567, %553 : vector<16x16xf32>
    %569 = arith.addf %547, %568 : vector<16x16xf32>
    %c1_i32_88 = arith.constant 1 : i32
    %570 = tpu.dynamic_rotate %549 by %c1_i32_88 dim 0 : vector<16x16xf32>, i32 -> vector<16x16xf32>
    %cst_89 = arith.constant 0.000000e+00 : f32
    %571 = vector.broadcast %cst_89 : f32 to vector<16x16xf32>
    %572 = arith.select %8, %570, %571 : vector<16x16xi1>, vector<16x16xf32>
    %c28 = arith.constant 28 : index
    %573 = memref.load %arg2[%c28] : memref<144xf32, #tpu.memory_space<smem>>
    %574 = vector.broadcast %573 : f32 to vector<16x16xf32>
    %575 = arith.mulf %574, %572 : vector<16x16xf32>
    %576 = arith.addf %557, %575 : vector<16x16xf32>
    %c64 = arith.constant 64 : index
    %577 = memref.load %arg2[%c64] : memref<144xf32, #tpu.memory_space<smem>>
    %578 = vector.broadcast %577 : f32 to vector<16x16xf32>
    %579 = arith.mulf %578, %572 : vector<16x16xf32>
    %580 = arith.addf %561, %579 : vector<16x16xf32>
    %c100 = arith.constant 100 : index
    %581 = memref.load %arg2[%c100] : memref<144xf32, #tpu.memory_space<smem>>
    %582 = vector.broadcast %581 : f32 to vector<16x16xf32>
    %583 = arith.mulf %582, %572 : vector<16x16xf32>
    %584 = arith.addf %565, %583 : vector<16x16xf32>
    %c136 = arith.constant 136 : index
    %585 = memref.load %arg2[%c136] : memref<144xf32, #tpu.memory_space<smem>>
    %586 = vector.broadcast %585 : f32 to vector<16x16xf32>
    %587 = arith.mulf %586, %572 : vector<16x16xf32>
    %588 = arith.addf %569, %587 : vector<16x16xf32>
    %c1_i32_90 = arith.constant 1 : i32
    %589 = tpu.dynamic_rotate %549 by %c1_i32_90 dim 0 : vector<16x16xf32>, i32 -> vector<16x16xf32>
    %c15_i32_91 = arith.constant 15 : i32
    %590 = tpu.dynamic_rotate %589 by %c15_i32_91 dim 1 : vector<16x16xf32>, i32 -> vector<16x16xf32>
    %cst_92 = arith.constant 0.000000e+00 : f32
    %591 = vector.broadcast %cst_92 : f32 to vector<16x16xf32>
    %592 = arith.select %13, %590, %591 : vector<16x16xi1>, vector<16x16xf32>
    %c29 = arith.constant 29 : index
    %593 = memref.load %arg2[%c29] : memref<144xf32, #tpu.memory_space<smem>>
    %594 = vector.broadcast %593 : f32 to vector<16x16xf32>
    %595 = arith.mulf %594, %592 : vector<16x16xf32>
    %596 = arith.addf %576, %595 : vector<16x16xf32>
    %c65 = arith.constant 65 : index
    %597 = memref.load %arg2[%c65] : memref<144xf32, #tpu.memory_space<smem>>
    %598 = vector.broadcast %597 : f32 to vector<16x16xf32>
    %599 = arith.mulf %598, %592 : vector<16x16xf32>
    %600 = arith.addf %580, %599 : vector<16x16xf32>
    %c101 = arith.constant 101 : index
    %601 = memref.load %arg2[%c101] : memref<144xf32, #tpu.memory_space<smem>>
    %602 = vector.broadcast %601 : f32 to vector<16x16xf32>
    %603 = arith.mulf %602, %592 : vector<16x16xf32>
    %604 = arith.addf %584, %603 : vector<16x16xf32>
    %c137 = arith.constant 137 : index
    %605 = memref.load %arg2[%c137] : memref<144xf32, #tpu.memory_space<smem>>
    %606 = vector.broadcast %605 : f32 to vector<16x16xf32>
    %607 = arith.mulf %606, %592 : vector<16x16xf32>
    %608 = arith.addf %588, %607 : vector<16x16xf32>
    %c1_i32_93 = arith.constant 1 : i32
    %609 = tpu.dynamic_rotate %549 by %c1_i32_93 dim 1 : vector<16x16xf32>, i32 -> vector<16x16xf32>
    %cst_94 = arith.constant 0.000000e+00 : f32
    %610 = vector.broadcast %cst_94 : f32 to vector<16x16xf32>
    %611 = arith.select %15, %609, %610 : vector<16x16xi1>, vector<16x16xf32>
    %c30 = arith.constant 30 : index
    %612 = memref.load %arg2[%c30] : memref<144xf32, #tpu.memory_space<smem>>
    %613 = vector.broadcast %612 : f32 to vector<16x16xf32>
    %614 = arith.mulf %613, %611 : vector<16x16xf32>
    %615 = arith.addf %596, %614 : vector<16x16xf32>
    %c66 = arith.constant 66 : index
    %616 = memref.load %arg2[%c66] : memref<144xf32, #tpu.memory_space<smem>>
    %617 = vector.broadcast %616 : f32 to vector<16x16xf32>
    %618 = arith.mulf %617, %611 : vector<16x16xf32>
    %619 = arith.addf %600, %618 : vector<16x16xf32>
    %c102 = arith.constant 102 : index
    %620 = memref.load %arg2[%c102] : memref<144xf32, #tpu.memory_space<smem>>
    %621 = vector.broadcast %620 : f32 to vector<16x16xf32>
    %622 = arith.mulf %621, %611 : vector<16x16xf32>
    %623 = arith.addf %604, %622 : vector<16x16xf32>
    %c138 = arith.constant 138 : index
    %624 = memref.load %arg2[%c138] : memref<144xf32, #tpu.memory_space<smem>>
    %625 = vector.broadcast %624 : f32 to vector<16x16xf32>
    %626 = arith.mulf %625, %611 : vector<16x16xf32>
    %627 = arith.addf %608, %626 : vector<16x16xf32>
    %c31 = arith.constant 31 : index
    %628 = memref.load %arg2[%c31] : memref<144xf32, #tpu.memory_space<smem>>
    %629 = vector.broadcast %628 : f32 to vector<16x16xf32>
    %630 = arith.mulf %629, %549 : vector<16x16xf32>
    %631 = arith.addf %615, %630 : vector<16x16xf32>
    %c67 = arith.constant 67 : index
    %632 = memref.load %arg2[%c67] : memref<144xf32, #tpu.memory_space<smem>>
    %633 = vector.broadcast %632 : f32 to vector<16x16xf32>
    %634 = arith.mulf %633, %549 : vector<16x16xf32>
    %635 = arith.addf %619, %634 : vector<16x16xf32>
    %c103 = arith.constant 103 : index
    %636 = memref.load %arg2[%c103] : memref<144xf32, #tpu.memory_space<smem>>
    %637 = vector.broadcast %636 : f32 to vector<16x16xf32>
    %638 = arith.mulf %637, %549 : vector<16x16xf32>
    %639 = arith.addf %623, %638 : vector<16x16xf32>
    %c139 = arith.constant 139 : index
    %640 = memref.load %arg2[%c139] : memref<144xf32, #tpu.memory_space<smem>>
    %641 = vector.broadcast %640 : f32 to vector<16x16xf32>
    %642 = arith.mulf %641, %549 : vector<16x16xf32>
    %643 = arith.addf %627, %642 : vector<16x16xf32>
    %c15_i32_95 = arith.constant 15 : i32
    %644 = tpu.dynamic_rotate %549 by %c15_i32_95 dim 1 : vector<16x16xf32>, i32 -> vector<16x16xf32>
    %cst_96 = arith.constant 0.000000e+00 : f32
    %645 = vector.broadcast %cst_96 : f32 to vector<16x16xf32>
    %646 = arith.select %17, %644, %645 : vector<16x16xi1>, vector<16x16xf32>
    %c32 = arith.constant 32 : index
    %647 = memref.load %arg2[%c32] : memref<144xf32, #tpu.memory_space<smem>>
    %648 = vector.broadcast %647 : f32 to vector<16x16xf32>
    %649 = arith.mulf %648, %646 : vector<16x16xf32>
    %650 = arith.addf %631, %649 : vector<16x16xf32>
    %c68 = arith.constant 68 : index
    %651 = memref.load %arg2[%c68] : memref<144xf32, #tpu.memory_space<smem>>
    %652 = vector.broadcast %651 : f32 to vector<16x16xf32>
    %653 = arith.mulf %652, %646 : vector<16x16xf32>
    %654 = arith.addf %635, %653 : vector<16x16xf32>
    %c104 = arith.constant 104 : index
    %655 = memref.load %arg2[%c104] : memref<144xf32, #tpu.memory_space<smem>>
    %656 = vector.broadcast %655 : f32 to vector<16x16xf32>
    %657 = arith.mulf %656, %646 : vector<16x16xf32>
    %658 = arith.addf %639, %657 : vector<16x16xf32>
    %c140 = arith.constant 140 : index
    %659 = memref.load %arg2[%c140] : memref<144xf32, #tpu.memory_space<smem>>
    %660 = vector.broadcast %659 : f32 to vector<16x16xf32>
    %661 = arith.mulf %660, %646 : vector<16x16xf32>
    %662 = arith.addf %643, %661 : vector<16x16xf32>
    %c15_i32_97 = arith.constant 15 : i32
    %663 = tpu.dynamic_rotate %549 by %c15_i32_97 dim 0 : vector<16x16xf32>, i32 -> vector<16x16xf32>
    %c1_i32_98 = arith.constant 1 : i32
    %664 = tpu.dynamic_rotate %663 by %c1_i32_98 dim 1 : vector<16x16xf32>, i32 -> vector<16x16xf32>
    %cst_99 = arith.constant 0.000000e+00 : f32
    %665 = vector.broadcast %cst_99 : f32 to vector<16x16xf32>
    %666 = arith.select %22, %664, %665 : vector<16x16xi1>, vector<16x16xf32>
    %c33 = arith.constant 33 : index
    %667 = memref.load %arg2[%c33] : memref<144xf32, #tpu.memory_space<smem>>
    %668 = vector.broadcast %667 : f32 to vector<16x16xf32>
    %669 = arith.mulf %668, %666 : vector<16x16xf32>
    %670 = arith.addf %650, %669 : vector<16x16xf32>
    %c69 = arith.constant 69 : index
    %671 = memref.load %arg2[%c69] : memref<144xf32, #tpu.memory_space<smem>>
    %672 = vector.broadcast %671 : f32 to vector<16x16xf32>
    %673 = arith.mulf %672, %666 : vector<16x16xf32>
    %674 = arith.addf %654, %673 : vector<16x16xf32>
    %c105 = arith.constant 105 : index
    %675 = memref.load %arg2[%c105] : memref<144xf32, #tpu.memory_space<smem>>
    %676 = vector.broadcast %675 : f32 to vector<16x16xf32>
    %677 = arith.mulf %676, %666 : vector<16x16xf32>
    %678 = arith.addf %658, %677 : vector<16x16xf32>
    %c141 = arith.constant 141 : index
    %679 = memref.load %arg2[%c141] : memref<144xf32, #tpu.memory_space<smem>>
    %680 = vector.broadcast %679 : f32 to vector<16x16xf32>
    %681 = arith.mulf %680, %666 : vector<16x16xf32>
    %682 = arith.addf %662, %681 : vector<16x16xf32>
    %c15_i32_100 = arith.constant 15 : i32
    %683 = tpu.dynamic_rotate %549 by %c15_i32_100 dim 0 : vector<16x16xf32>, i32 -> vector<16x16xf32>
    %cst_101 = arith.constant 0.000000e+00 : f32
    %684 = vector.broadcast %cst_101 : f32 to vector<16x16xf32>
    %685 = arith.select %24, %683, %684 : vector<16x16xi1>, vector<16x16xf32>
    %c34 = arith.constant 34 : index
    %686 = memref.load %arg2[%c34] : memref<144xf32, #tpu.memory_space<smem>>
    %687 = vector.broadcast %686 : f32 to vector<16x16xf32>
    %688 = arith.mulf %687, %685 : vector<16x16xf32>
    %689 = arith.addf %670, %688 : vector<16x16xf32>
    %c70 = arith.constant 70 : index
    %690 = memref.load %arg2[%c70] : memref<144xf32, #tpu.memory_space<smem>>
    %691 = vector.broadcast %690 : f32 to vector<16x16xf32>
    %692 = arith.mulf %691, %685 : vector<16x16xf32>
    %693 = arith.addf %674, %692 : vector<16x16xf32>
    %c106 = arith.constant 106 : index
    %694 = memref.load %arg2[%c106] : memref<144xf32, #tpu.memory_space<smem>>
    %695 = vector.broadcast %694 : f32 to vector<16x16xf32>
    %696 = arith.mulf %695, %685 : vector<16x16xf32>
    %697 = arith.addf %678, %696 : vector<16x16xf32>
    %c142 = arith.constant 142 : index
    %698 = memref.load %arg2[%c142] : memref<144xf32, #tpu.memory_space<smem>>
    %699 = vector.broadcast %698 : f32 to vector<16x16xf32>
    %700 = arith.mulf %699, %685 : vector<16x16xf32>
    %701 = arith.addf %682, %700 : vector<16x16xf32>
    %c15_i32_102 = arith.constant 15 : i32
    %702 = tpu.dynamic_rotate %549 by %c15_i32_102 dim 0 : vector<16x16xf32>, i32 -> vector<16x16xf32>
    %c15_i32_103 = arith.constant 15 : i32
    %703 = tpu.dynamic_rotate %702 by %c15_i32_103 dim 1 : vector<16x16xf32>, i32 -> vector<16x16xf32>
    %cst_104 = arith.constant 0.000000e+00 : f32
    %704 = vector.broadcast %cst_104 : f32 to vector<16x16xf32>
    %705 = arith.select %29, %703, %704 : vector<16x16xi1>, vector<16x16xf32>
    %c35 = arith.constant 35 : index
    %706 = memref.load %arg2[%c35] : memref<144xf32, #tpu.memory_space<smem>>
    %707 = vector.broadcast %706 : f32 to vector<16x16xf32>
    %708 = arith.mulf %707, %705 : vector<16x16xf32>
    %709 = arith.addf %689, %708 : vector<16x16xf32>
    %c71 = arith.constant 71 : index
    %710 = memref.load %arg2[%c71] : memref<144xf32, #tpu.memory_space<smem>>
    %711 = vector.broadcast %710 : f32 to vector<16x16xf32>
    %712 = arith.mulf %711, %705 : vector<16x16xf32>
    %713 = arith.addf %693, %712 : vector<16x16xf32>
    %c107 = arith.constant 107 : index
    %714 = memref.load %arg2[%c107] : memref<144xf32, #tpu.memory_space<smem>>
    %715 = vector.broadcast %714 : f32 to vector<16x16xf32>
    %716 = arith.mulf %715, %705 : vector<16x16xf32>
    %717 = arith.addf %697, %716 : vector<16x16xf32>
    %c143 = arith.constant 143 : index
    %718 = memref.load %arg2[%c143] : memref<144xf32, #tpu.memory_space<smem>>
    %719 = vector.broadcast %718 : f32 to vector<16x16xf32>
    %720 = arith.mulf %719, %705 : vector<16x16xf32>
    %721 = arith.addf %701, %720 : vector<16x16xf32>
    %c0_105 = arith.constant 0 : index
    %c0_106 = arith.constant 0 : index
    %c0_107 = arith.constant 0 : index
    %c0_108 = arith.constant 0 : index
    %722 = vector.load %arg3[%c0_105, %c0_106, %c0_107, %c0_108] : memref<1x4x16x16xf32, #tpu.memory_space<vmem>>, vector<1x1x16x16xf32>
    %723 = vector.shape_cast %722 : vector<1x1x16x16xf32> to vector<16x16xf32>
    %724 = vector.shape_cast %709 : vector<16x16xf32> to vector<1x1x16x16xf32>
    tpu.vector_store %arg3[%c0_105, %c0_106, %c0_107, %c0_108], %724 {strides = array<i32>} : memref<1x4x16x16xf32, #tpu.memory_space<vmem>>, vector<1x1x16x16xf32>,
    %cst_109 = arith.constant dense<0.000000e+00> : vector<16xf32>
    %725 = vector.multi_reduction <add>, %709, %cst_109 [1] : vector<16x16xf32> to vector<16xf32>
    %726 = vector.shape_cast %725 : vector<16xf32> to vector<16x1xf32>
    %cst_110 = arith.constant dense<0.000000e+00> : vector<1xf32>
    %727 = vector.multi_reduction <add>, %726, %cst_110 [0] : vector<16x1xf32> to vector<1xf32>
    %728 = vector.shape_cast %727 : vector<1xf32> to vector<1x1xf32>
    %729 = arith.mulf %709, %709 : vector<16x16xf32>
    %cst_111 = arith.constant dense<0.000000e+00> : vector<16xf32>
    %730 = vector.multi_reduction <add>, %729, %cst_111 [1] : vector<16x16xf32> to vector<16xf32>
    %731 = vector.shape_cast %730 : vector<16xf32> to vector<16x1xf32>
    %cst_112 = arith.constant dense<0.000000e+00> : vector<1xf32>
    %732 = vector.multi_reduction <add>, %731, %cst_112 [0] : vector<16x1xf32> to vector<1xf32>
    %733 = vector.shape_cast %732 : vector<1xf32> to vector<1x1xf32>
    %c0_113 = arith.constant 0 : index
    %c1_114 = arith.constant 1 : index
    %c0_115 = arith.constant 0 : index
    %c0_116 = arith.constant 0 : index
    %734 = vector.load %arg3[%c0_113, %c1_114, %c0_115, %c0_116] : memref<1x4x16x16xf32, #tpu.memory_space<vmem>>, vector<1x1x16x16xf32>
    %735 = vector.shape_cast %734 : vector<1x1x16x16xf32> to vector<16x16xf32>
    %736 = vector.shape_cast %713 : vector<16x16xf32> to vector<1x1x16x16xf32>
    tpu.vector_store %arg3[%c0_113, %c1_114, %c0_115, %c0_116], %736 {strides = array<i32>} : memref<1x4x16x16xf32, #tpu.memory_space<vmem>>, vector<1x1x16x16xf32>,
    %cst_117 = arith.constant dense<0.000000e+00> : vector<16xf32>
    %737 = vector.multi_reduction <add>, %713, %cst_117 [1] : vector<16x16xf32> to vector<16xf32>
    %738 = vector.shape_cast %737 : vector<16xf32> to vector<16x1xf32>
    %cst_118 = arith.constant dense<0.000000e+00> : vector<1xf32>
    %739 = vector.multi_reduction <add>, %738, %cst_118 [0] : vector<16x1xf32> to vector<1xf32>
    %740 = vector.shape_cast %739 : vector<1xf32> to vector<1x1xf32>
    %741 = arith.mulf %713, %713 : vector<16x16xf32>
    %cst_119 = arith.constant dense<0.000000e+00> : vector<16xf32>
    %742 = vector.multi_reduction <add>, %741, %cst_119 [1] : vector<16x16xf32> to vector<16xf32>
    %743 = vector.shape_cast %742 : vector<16xf32> to vector<16x1xf32>
    %cst_120 = arith.constant dense<0.000000e+00> : vector<1xf32>
    %744 = vector.multi_reduction <add>, %743, %cst_120 [0] : vector<16x1xf32> to vector<1xf32>
    %745 = vector.shape_cast %744 : vector<1xf32> to vector<1x1xf32>
    %c0_121 = arith.constant 0 : index
    %c2_122 = arith.constant 2 : index
    %c0_123 = arith.constant 0 : index
    %c0_124 = arith.constant 0 : index
    %746 = vector.load %arg3[%c0_121, %c2_122, %c0_123, %c0_124] : memref<1x4x16x16xf32, #tpu.memory_space<vmem>>, vector<1x1x16x16xf32>
    %747 = vector.shape_cast %746 : vector<1x1x16x16xf32> to vector<16x16xf32>
    %748 = vector.shape_cast %717 : vector<16x16xf32> to vector<1x1x16x16xf32>
    tpu.vector_store %arg3[%c0_121, %c2_122, %c0_123, %c0_124], %748 {strides = array<i32>} : memref<1x4x16x16xf32, #tpu.memory_space<vmem>>, vector<1x1x16x16xf32>,
    %cst_125 = arith.constant dense<0.000000e+00> : vector<16xf32>
    %749 = vector.multi_reduction <add>, %717, %cst_125 [1] : vector<16x16xf32> to vector<16xf32>
    %750 = vector.shape_cast %749 : vector<16xf32> to vector<16x1xf32>
    %cst_126 = arith.constant dense<0.000000e+00> : vector<1xf32>
    %751 = vector.multi_reduction <add>, %750, %cst_126 [0] : vector<16x1xf32> to vector<1xf32>
    %752 = vector.shape_cast %751 : vector<1xf32> to vector<1x1xf32>
    %753 = arith.mulf %717, %717 : vector<16x16xf32>
    %cst_127 = arith.constant dense<0.000000e+00> : vector<16xf32>
    %754 = vector.multi_reduction <add>, %753, %cst_127 [1] : vector<16x16xf32> to vector<16xf32>
    %755 = vector.shape_cast %754 : vector<16xf32> to vector<16x1xf32>
    %cst_128 = arith.constant dense<0.000000e+00> : vector<1xf32>
    %756 = vector.multi_reduction <add>, %755, %cst_128 [0] : vector<16x1xf32> to vector<1xf32>
    %757 = vector.shape_cast %756 : vector<1xf32> to vector<1x1xf32>
    %c0_129 = arith.constant 0 : index
    %c3_130 = arith.constant 3 : index
    %c0_131 = arith.constant 0 : index
    %c0_132 = arith.constant 0 : index
    %758 = vector.load %arg3[%c0_129, %c3_130, %c0_131, %c0_132] : memref<1x4x16x16xf32, #tpu.memory_space<vmem>>, vector<1x1x16x16xf32>
    %759 = vector.shape_cast %758 : vector<1x1x16x16xf32> to vector<16x16xf32>
    %760 = vector.shape_cast %721 : vector<16x16xf32> to vector<1x1x16x16xf32>
    tpu.vector_store %arg3[%c0_129, %c3_130, %c0_131, %c0_132], %760 {strides = array<i32>} : memref<1x4x16x16xf32, #tpu.memory_space<vmem>>, vector<1x1x16x16xf32>,
    %cst_133 = arith.constant dense<0.000000e+00> : vector<16xf32>
    %761 = vector.multi_reduction <add>, %721, %cst_133 [1] : vector<16x16xf32> to vector<16xf32>
    %762 = vector.shape_cast %761 : vector<16xf32> to vector<16x1xf32>
    %cst_134 = arith.constant dense<0.000000e+00> : vector<1xf32>
    %763 = vector.multi_reduction <add>, %762, %cst_134 [0] : vector<16x1xf32> to vector<1xf32>
    %764 = vector.shape_cast %763 : vector<1xf32> to vector<1x1xf32>
    %765 = arith.mulf %721, %721 : vector<16x16xf32>
    %cst_135 = arith.constant dense<0.000000e+00> : vector<16xf32>
    %766 = vector.multi_reduction <add>, %765, %cst_135 [1] : vector<16x16xf32> to vector<16xf32>
    %767 = vector.shape_cast %766 : vector<16xf32> to vector<16x1xf32>
    %cst_136 = arith.constant dense<0.000000e+00> : vector<1xf32>
    %768 = vector.multi_reduction <add>, %767, %cst_136 [0] : vector<16x1xf32> to vector<1xf32>
    %769 = vector.shape_cast %768 : vector<1xf32> to vector<1x1xf32>
    %770 = tpu.concatenate %728, %733 in 1 : vector<1x1xf32>, vector<1x1xf32> -> vector<1x2xf32>
    %771 = tpu.concatenate %740, %745 in 1 : vector<1x1xf32>, vector<1x1xf32> -> vector<1x2xf32>
    %772 = tpu.concatenate %752, %757 in 1 : vector<1x1xf32>, vector<1x1xf32> -> vector<1x2xf32>
    %773 = tpu.concatenate %764, %769 in 1 : vector<1x1xf32>, vector<1x1xf32> -> vector<1x2xf32>
    %774 = tpu.concatenate %770, %771, %772, %773 in 0 : vector<1x2xf32>, vector<1x2xf32>, vector<1x2xf32>, vector<1x2xf32> -> vector<4x2xf32>
    %c0_137 = arith.constant 0 : index
    %c0_138 = arith.constant 0 : index
    %c0_139 = arith.constant 0 : index
    %775 = vector.load %arg4[%c0_137, %c0_138, %c0_139] : memref<1x4x2xf32, #tpu.memory_space<vmem>>, vector<1x4x2xf32>
    %776 = vector.shape_cast %775 : vector<1x4x2xf32> to vector<4x2xf32>
    %777 = vector.shape_cast %774 : vector<4x2xf32> to vector<1x4x2xf32>
    tpu.vector_store %arg4[%c0_137, %c0_138, %c0_139], %777 {strides = array<i32>} : memref<1x4x2xf32, #tpu.memory_space<vmem>>, vector<1x4x2xf32>,
    return
  }
  func.func @transform_0(%arg0: i32) -> (i32, i32, i32, i32) {
    %c0_i32 = arith.constant 0 : i32
    %c0_i32_0 = arith.constant 0 : i32
    %c0_i32_1 = arith.constant 0 : i32
    %c0_i32_2 = arith.constant 0 : i32
    return %arg0, %c0_i32, %c0_i32_0, %c0_i32_1 : i32, i32, i32, i32
  }
  func.func @transform_1(%arg0: i32) -> i32 {
    %c0_i32 = arith.constant 0 : i32
    %c0_i32_0 = arith.constant 0 : i32
    return %c0_i32 : i32
  }
  func.func @transform_2(%arg0: i32) -> (i32, i32, i32, i32) {
    %c0_i32 = arith.constant 0 : i32
    %c0_i32_0 = arith.constant 0 : i32
    %c0_i32_1 = arith.constant 0 : i32
    %c0_i32_2 = arith.constant 0 : i32
    return %arg0, %c0_i32, %c0_i32_0, %c0_i32_1 : i32, i32, i32, i32
  }
  func.func @transform_3(%arg0: i32) -> (i32, i32, i32) {
    %c0_i32 = arith.constant 0 : i32
    %c0_i32_0 = arith.constant 0 : i32
    %c0_i32_1 = arith.constant 0 : i32
    return %arg0, %c0_i32, %c0_i32_0 : i32, i32, i32
  }
}

module attributes {stable_mosaic.version = 11 : i64} {
  func.func @bn_add_relu_kernel(%arg0: i32, %arg1: memref<1x4x256xf32, #tpu.memory_space<vmem>>, %arg2: memref<1x4x256xf32, #tpu.memory_space<vmem>>, %arg3: memref<8xf32, #tpu.memory_space<smem>>, %arg4: memref<1x4x256xf32, #tpu.memory_space<vmem>>) attributes {dimension_semantics = [#tpu.dimension_semantics<parallel>], iteration_bounds = array<i64: 2>, scalar_prefetch = 0 : i64, scratch_operands = 0 : i64, tpu.core_type = #tpu.core_type<tc>, window_params = [{transform_indices = @transform_0, window_bounds = array<i64: 1, 4, 256>}, {transform_indices = @transform_1, window_bounds = array<i64: 1, 4, 256>}, {transform_indices = @transform_2, window_bounds = array<i64: 8>}, {transform_indices = @transform_3, window_bounds = array<i64: 1, 4, 256>}]} {
    %c0 = arith.constant 0 : index
    %c0_0 = arith.constant 0 : index
    %c0_1 = arith.constant 0 : index
    %0 = vector.load %arg1[%c0, %c0_0, %c0_1] : memref<1x4x256xf32, #tpu.memory_space<vmem>>, vector<1x1x256xf32>
    %1 = vector.shape_cast %0 : vector<1x1x256xf32> to vector<1x256xf32>
    %c0_2 = arith.constant 0 : index
    %2 = memref.load %arg3[%c0_2] : memref<8xf32, #tpu.memory_space<smem>>
    %3 = vector.broadcast %2 : f32 to vector<1x256xf32>
    %4 = arith.mulf %1, %3 : vector<1x256xf32>
    %c4 = arith.constant 4 : index
    %5 = memref.load %arg3[%c4] : memref<8xf32, #tpu.memory_space<smem>>
    %6 = vector.broadcast %5 : f32 to vector<1x256xf32>
    %7 = arith.addf %4, %6 : vector<1x256xf32>
    %c0_3 = arith.constant 0 : index
    %c0_4 = arith.constant 0 : index
    %c0_5 = arith.constant 0 : index
    %8 = vector.load %arg2[%c0_3, %c0_4, %c0_5] : memref<1x4x256xf32, #tpu.memory_space<vmem>>, vector<1x1x256xf32>
    %9 = vector.shape_cast %8 : vector<1x1x256xf32> to vector<1x256xf32>
    %10 = arith.addf %7, %9 : vector<1x256xf32>
    %cst = arith.constant 0.000000e+00 : f32
    %11 = vector.broadcast %cst : f32 to vector<1x256xf32>
    %12 = arith.maximumf %10, %11 : vector<1x256xf32>
    %c0_6 = arith.constant 0 : index
    %c0_7 = arith.constant 0 : index
    %c0_8 = arith.constant 0 : index
    %13 = vector.load %arg4[%c0_6, %c0_7, %c0_8] : memref<1x4x256xf32, #tpu.memory_space<vmem>>, vector<1x1x256xf32>
    %14 = vector.shape_cast %13 : vector<1x1x256xf32> to vector<1x256xf32>
    %15 = vector.shape_cast %12 : vector<1x256xf32> to vector<1x1x256xf32>
    tpu.vector_store %arg4[%c0_6, %c0_7, %c0_8], %15 {strides = array<i32>} : memref<1x4x256xf32, #tpu.memory_space<vmem>>, vector<1x1x256xf32>,
    %c0_9 = arith.constant 0 : index
    %c1 = arith.constant 1 : index
    %c0_10 = arith.constant 0 : index
    %16 = vector.load %arg1[%c0_9, %c1, %c0_10] : memref<1x4x256xf32, #tpu.memory_space<vmem>>, vector<1x1x256xf32>
    %17 = vector.shape_cast %16 : vector<1x1x256xf32> to vector<1x256xf32>
    %c1_11 = arith.constant 1 : index
    %18 = memref.load %arg3[%c1_11] : memref<8xf32, #tpu.memory_space<smem>>
    %19 = vector.broadcast %18 : f32 to vector<1x256xf32>
    %20 = arith.mulf %17, %19 : vector<1x256xf32>
    %c5 = arith.constant 5 : index
    %21 = memref.load %arg3[%c5] : memref<8xf32, #tpu.memory_space<smem>>
    %22 = vector.broadcast %21 : f32 to vector<1x256xf32>
    %23 = arith.addf %20, %22 : vector<1x256xf32>
    %c0_12 = arith.constant 0 : index
    %c1_13 = arith.constant 1 : index
    %c0_14 = arith.constant 0 : index
    %24 = vector.load %arg2[%c0_12, %c1_13, %c0_14] : memref<1x4x256xf32, #tpu.memory_space<vmem>>, vector<1x1x256xf32>
    %25 = vector.shape_cast %24 : vector<1x1x256xf32> to vector<1x256xf32>
    %26 = arith.addf %23, %25 : vector<1x256xf32>
    %cst_15 = arith.constant 0.000000e+00 : f32
    %27 = vector.broadcast %cst_15 : f32 to vector<1x256xf32>
    %28 = arith.maximumf %26, %27 : vector<1x256xf32>
    %c0_16 = arith.constant 0 : index
    %c1_17 = arith.constant 1 : index
    %c0_18 = arith.constant 0 : index
    %29 = vector.load %arg4[%c0_16, %c1_17, %c0_18] : memref<1x4x256xf32, #tpu.memory_space<vmem>>, vector<1x1x256xf32>
    %30 = vector.shape_cast %29 : vector<1x1x256xf32> to vector<1x256xf32>
    %31 = vector.shape_cast %28 : vector<1x256xf32> to vector<1x1x256xf32>
    tpu.vector_store %arg4[%c0_16, %c1_17, %c0_18], %31 {strides = array<i32>} : memref<1x4x256xf32, #tpu.memory_space<vmem>>, vector<1x1x256xf32>,
    %c0_19 = arith.constant 0 : index
    %c2 = arith.constant 2 : index
    %c0_20 = arith.constant 0 : index
    %32 = vector.load %arg1[%c0_19, %c2, %c0_20] : memref<1x4x256xf32, #tpu.memory_space<vmem>>, vector<1x1x256xf32>
    %33 = vector.shape_cast %32 : vector<1x1x256xf32> to vector<1x256xf32>
    %c2_21 = arith.constant 2 : index
    %34 = memref.load %arg3[%c2_21] : memref<8xf32, #tpu.memory_space<smem>>
    %35 = vector.broadcast %34 : f32 to vector<1x256xf32>
    %36 = arith.mulf %33, %35 : vector<1x256xf32>
    %c6 = arith.constant 6 : index
    %37 = memref.load %arg3[%c6] : memref<8xf32, #tpu.memory_space<smem>>
    %38 = vector.broadcast %37 : f32 to vector<1x256xf32>
    %39 = arith.addf %36, %38 : vector<1x256xf32>
    %c0_22 = arith.constant 0 : index
    %c2_23 = arith.constant 2 : index
    %c0_24 = arith.constant 0 : index
    %40 = vector.load %arg2[%c0_22, %c2_23, %c0_24] : memref<1x4x256xf32, #tpu.memory_space<vmem>>, vector<1x1x256xf32>
    %41 = vector.shape_cast %40 : vector<1x1x256xf32> to vector<1x256xf32>
    %42 = arith.addf %39, %41 : vector<1x256xf32>
    %cst_25 = arith.constant 0.000000e+00 : f32
    %43 = vector.broadcast %cst_25 : f32 to vector<1x256xf32>
    %44 = arith.maximumf %42, %43 : vector<1x256xf32>
    %c0_26 = arith.constant 0 : index
    %c2_27 = arith.constant 2 : index
    %c0_28 = arith.constant 0 : index
    %45 = vector.load %arg4[%c0_26, %c2_27, %c0_28] : memref<1x4x256xf32, #tpu.memory_space<vmem>>, vector<1x1x256xf32>
    %46 = vector.shape_cast %45 : vector<1x1x256xf32> to vector<1x256xf32>
    %47 = vector.shape_cast %44 : vector<1x256xf32> to vector<1x1x256xf32>
    tpu.vector_store %arg4[%c0_26, %c2_27, %c0_28], %47 {strides = array<i32>} : memref<1x4x256xf32, #tpu.memory_space<vmem>>, vector<1x1x256xf32>,
    %c0_29 = arith.constant 0 : index
    %c3 = arith.constant 3 : index
    %c0_30 = arith.constant 0 : index
    %48 = vector.load %arg1[%c0_29, %c3, %c0_30] : memref<1x4x256xf32, #tpu.memory_space<vmem>>, vector<1x1x256xf32>
    %49 = vector.shape_cast %48 : vector<1x1x256xf32> to vector<1x256xf32>
    %c3_31 = arith.constant 3 : index
    %50 = memref.load %arg3[%c3_31] : memref<8xf32, #tpu.memory_space<smem>>
    %51 = vector.broadcast %50 : f32 to vector<1x256xf32>
    %52 = arith.mulf %49, %51 : vector<1x256xf32>
    %c7 = arith.constant 7 : index
    %53 = memref.load %arg3[%c7] : memref<8xf32, #tpu.memory_space<smem>>
    %54 = vector.broadcast %53 : f32 to vector<1x256xf32>
    %55 = arith.addf %52, %54 : vector<1x256xf32>
    %c0_32 = arith.constant 0 : index
    %c3_33 = arith.constant 3 : index
    %c0_34 = arith.constant 0 : index
    %56 = vector.load %arg2[%c0_32, %c3_33, %c0_34] : memref<1x4x256xf32, #tpu.memory_space<vmem>>, vector<1x1x256xf32>
    %57 = vector.shape_cast %56 : vector<1x1x256xf32> to vector<1x256xf32>
    %58 = arith.addf %55, %57 : vector<1x256xf32>
    %cst_35 = arith.constant 0.000000e+00 : f32
    %59 = vector.broadcast %cst_35 : f32 to vector<1x256xf32>
    %60 = arith.maximumf %58, %59 : vector<1x256xf32>
    %c0_36 = arith.constant 0 : index
    %c3_37 = arith.constant 3 : index
    %c0_38 = arith.constant 0 : index
    %61 = vector.load %arg4[%c0_36, %c3_37, %c0_38] : memref<1x4x256xf32, #tpu.memory_space<vmem>>, vector<1x1x256xf32>
    %62 = vector.shape_cast %61 : vector<1x1x256xf32> to vector<1x256xf32>
    %63 = vector.shape_cast %60 : vector<1x256xf32> to vector<1x1x256xf32>
    tpu.vector_store %arg4[%c0_36, %c3_37, %c0_38], %63 {strides = array<i32>} : memref<1x4x256xf32, #tpu.memory_space<vmem>>, vector<1x1x256xf32>,
    return
  }
  func.func @transform_0(%arg0: i32) -> (i32, i32, i32) {
    %c0_i32 = arith.constant 0 : i32
    %c0_i32_0 = arith.constant 0 : i32
    %c0_i32_1 = arith.constant 0 : i32
    return %arg0, %c0_i32, %c0_i32_0 : i32, i32, i32
  }
  func.func @transform_1(%arg0: i32) -> (i32, i32, i32) {
    %c0_i32 = arith.constant 0 : i32
    %c0_i32_0 = arith.constant 0 : i32
    %c0_i32_1 = arith.constant 0 : i32
    return %arg0, %c0_i32, %c0_i32_0 : i32, i32, i32
  }
  func.func @transform_2(%arg0: i32) -> i32 {
    %c0_i32 = arith.constant 0 : i32
    %c0_i32_0 = arith.constant 0 : i32
    return %c0_i32 : i32
  }
  func.func @transform_3(%arg0: i32) -> (i32, i32, i32) {
    %c0_i32 = arith.constant 0 : i32
    %c0_i32_0 = arith.constant 0 : i32
    %c0_i32_1 = arith.constant 0 : i32
    return %arg0, %c0_i32, %c0_i32_0 : i32, i32, i32
  }
}

module attributes {stable_mosaic.version = 11 : i64} {
  func.func @bn_relu_conv2_kernel(%arg0: i32, %arg1: memref<1x4x16x16xf32, #tpu.memory_space<vmem>>, %arg2: memref<8xf32, #tpu.memory_space<smem>>, %arg3: memref<144xf32, #tpu.memory_space<smem>>, %arg4: memref<1x4x16x16xf32, #tpu.memory_space<vmem>>, %arg5: memref<1x4x2xf32, #tpu.memory_space<vmem>>) attributes {dimension_semantics = [#tpu.dimension_semantics<parallel>], iteration_bounds = array<i64: 2>, scalar_prefetch = 0 : i64, scratch_operands = 0 : i64, tpu.core_type = #tpu.core_type<tc>, window_params = [{transform_indices = @transform_0, window_bounds = array<i64: 1, 4, 16, 16>}, {transform_indices = @transform_1, window_bounds = array<i64: 8>}, {transform_indices = @transform_2, window_bounds = array<i64: 144>}, {transform_indices = @transform_3, window_bounds = array<i64: 1, 4, 16, 16>}, {transform_indices = @transform_4, window_bounds = array<i64: 1, 4, 2>}]} {
    %0 = tpu.iota {dimensions = array<i32: 0>} : vector<16x16xi32>
    %1 = tpu.iota {dimensions = array<i32: 1>} : vector<16x16xi32>
    %c1_i32 = arith.constant 1 : i32
    %2 = vector.broadcast %c1_i32 : i32 to vector<16x16xi32>
    %3 = arith.cmpi sge, %0, %2 : vector<16x16xi32>
    %c1_i32_0 = arith.constant 1 : i32
    %4 = vector.broadcast %c1_i32_0 : i32 to vector<16x16xi32>
    %5 = arith.cmpi sge, %1, %4 : vector<16x16xi32>
    %6 = arith.andi %3, %5 : vector<16x16xi1>
    %c1_i32_1 = arith.constant 1 : i32
    %7 = vector.broadcast %c1_i32_1 : i32 to vector<16x16xi32>
    %8 = arith.cmpi sge, %0, %7 : vector<16x16xi32>
    %c1_i32_2 = arith.constant 1 : i32
    %9 = vector.broadcast %c1_i32_2 : i32 to vector<16x16xi32>
    %10 = arith.cmpi sge, %0, %9 : vector<16x16xi32>
    %c15_i32 = arith.constant 15 : i32
    %11 = vector.broadcast %c15_i32 : i32 to vector<16x16xi32>
    %12 = arith.cmpi slt, %1, %11 : vector<16x16xi32>
    %13 = arith.andi %10, %12 : vector<16x16xi1>
    %c1_i32_3 = arith.constant 1 : i32
    %14 = vector.broadcast %c1_i32_3 : i32 to vector<16x16xi32>
    %15 = arith.cmpi sge, %1, %14 : vector<16x16xi32>
    %c15_i32_4 = arith.constant 15 : i32
    %16 = vector.broadcast %c15_i32_4 : i32 to vector<16x16xi32>
    %17 = arith.cmpi slt, %1, %16 : vector<16x16xi32>
    %c15_i32_5 = arith.constant 15 : i32
    %18 = vector.broadcast %c15_i32_5 : i32 to vector<16x16xi32>
    %19 = arith.cmpi slt, %0, %18 : vector<16x16xi32>
    %c1_i32_6 = arith.constant 1 : i32
    %20 = vector.broadcast %c1_i32_6 : i32 to vector<16x16xi32>
    %21 = arith.cmpi sge, %1, %20 : vector<16x16xi32>
    %22 = arith.andi %19, %21 : vector<16x16xi1>
    %c15_i32_7 = arith.constant 15 : i32
    %23 = vector.broadcast %c15_i32_7 : i32 to vector<16x16xi32>
    %24 = arith.cmpi slt, %0, %23 : vector<16x16xi32>
    %c15_i32_8 = arith.constant 15 : i32
    %25 = vector.broadcast %c15_i32_8 : i32 to vector<16x16xi32>
    %26 = arith.cmpi slt, %0, %25 : vector<16x16xi32>
    %c15_i32_9 = arith.constant 15 : i32
    %27 = vector.broadcast %c15_i32_9 : i32 to vector<16x16xi32>
    %28 = arith.cmpi slt, %1, %27 : vector<16x16xi32>
    %29 = arith.andi %26, %28 : vector<16x16xi1>
    %c0 = arith.constant 0 : index
    %c0_10 = arith.constant 0 : index
    %c0_11 = arith.constant 0 : index
    %c0_12 = arith.constant 0 : index
    %30 = vector.load %arg1[%c0, %c0_10, %c0_11, %c0_12] : memref<1x4x16x16xf32, #tpu.memory_space<vmem>>, vector<1x1x16x16xf32>
    %31 = vector.shape_cast %30 : vector<1x1x16x16xf32> to vector<16x16xf32>
    %c0_13 = arith.constant 0 : index
    %32 = memref.load %arg2[%c0_13] : memref<8xf32, #tpu.memory_space<smem>>
    %33 = vector.broadcast %32 : f32 to vector<16x16xf32>
    %34 = arith.mulf %31, %33 : vector<16x16xf32>
    %c4 = arith.constant 4 : index
    %35 = memref.load %arg2[%c4] : memref<8xf32, #tpu.memory_space<smem>>
    %36 = vector.broadcast %35 : f32 to vector<16x16xf32>
    %37 = arith.addf %34, %36 : vector<16x16xf32>
    %cst = arith.constant 0.000000e+00 : f32
    %38 = vector.broadcast %cst : f32 to vector<16x16xf32>
    %39 = arith.maximumf %37, %38 : vector<16x16xf32>
    %c1_i32_14 = arith.constant 1 : i32
    %40 = tpu.dynamic_rotate %39 by %c1_i32_14 dim 0 : vector<16x16xf32>, i32 -> vector<16x16xf32>
    %c1_i32_15 = arith.constant 1 : i32
    %41 = tpu.dynamic_rotate %40 by %c1_i32_15 dim 1 : vector<16x16xf32>, i32 -> vector<16x16xf32>
    %cst_16 = arith.constant 0.000000e+00 : f32
    %42 = vector.broadcast %cst_16 : f32 to vector<16x16xf32>
    %43 = arith.select %6, %41, %42 : vector<16x16xi1>, vector<16x16xf32>
    %c0_17 = arith.constant 0 : index
    %44 = memref.load %arg3[%c0_17] : memref<144xf32, #tpu.memory_space<smem>>
    %45 = vector.broadcast %44 : f32 to vector<16x16xf32>
    %46 = arith.mulf %45, %43 : vector<16x16xf32>
    %c36 = arith.constant 36 : index
    %47 = memref.load %arg3[%c36] : memref<144xf32, #tpu.memory_space<smem>>
    %48 = vector.broadcast %47 : f32 to vector<16x16xf32>
    %49 = arith.mulf %48, %43 : vector<16x16xf32>
    %c72 = arith.constant 72 : index
    %50 = memref.load %arg3[%c72] : memref<144xf32, #tpu.memory_space<smem>>
    %51 = vector.broadcast %50 : f32 to vector<16x16xf32>
    %52 = arith.mulf %51, %43 : vector<16x16xf32>
    %c108 = arith.constant 108 : index
    %53 = memref.load %arg3[%c108] : memref<144xf32, #tpu.memory_space<smem>>
    %54 = vector.broadcast %53 : f32 to vector<16x16xf32>
    %55 = arith.mulf %54, %43 : vector<16x16xf32>
    %c1_i32_18 = arith.constant 1 : i32
    %56 = tpu.dynamic_rotate %39 by %c1_i32_18 dim 0 : vector<16x16xf32>, i32 -> vector<16x16xf32>
    %cst_19 = arith.constant 0.000000e+00 : f32
    %57 = vector.broadcast %cst_19 : f32 to vector<16x16xf32>
    %58 = arith.select %8, %56, %57 : vector<16x16xi1>, vector<16x16xf32>
    %c1 = arith.constant 1 : index
    %59 = memref.load %arg3[%c1] : memref<144xf32, #tpu.memory_space<smem>>
    %60 = vector.broadcast %59 : f32 to vector<16x16xf32>
    %61 = arith.mulf %60, %58 : vector<16x16xf32>
    %62 = arith.addf %46, %61 : vector<16x16xf32>
    %c37 = arith.constant 37 : index
    %63 = memref.load %arg3[%c37] : memref<144xf32, #tpu.memory_space<smem>>
    %64 = vector.broadcast %63 : f32 to vector<16x16xf32>
    %65 = arith.mulf %64, %58 : vector<16x16xf32>
    %66 = arith.addf %49, %65 : vector<16x16xf32>
    %c73 = arith.constant 73 : index
    %67 = memref.load %arg3[%c73] : memref<144xf32, #tpu.memory_space<smem>>
    %68 = vector.broadcast %67 : f32 to vector<16x16xf32>
    %69 = arith.mulf %68, %58 : vector<16x16xf32>
    %70 = arith.addf %52, %69 : vector<16x16xf32>
    %c109 = arith.constant 109 : index
    %71 = memref.load %arg3[%c109] : memref<144xf32, #tpu.memory_space<smem>>
    %72 = vector.broadcast %71 : f32 to vector<16x16xf32>
    %73 = arith.mulf %72, %58 : vector<16x16xf32>
    %74 = arith.addf %55, %73 : vector<16x16xf32>
    %c1_i32_20 = arith.constant 1 : i32
    %75 = tpu.dynamic_rotate %39 by %c1_i32_20 dim 0 : vector<16x16xf32>, i32 -> vector<16x16xf32>
    %c15_i32_21 = arith.constant 15 : i32
    %76 = tpu.dynamic_rotate %75 by %c15_i32_21 dim 1 : vector<16x16xf32>, i32 -> vector<16x16xf32>
    %cst_22 = arith.constant 0.000000e+00 : f32
    %77 = vector.broadcast %cst_22 : f32 to vector<16x16xf32>
    %78 = arith.select %13, %76, %77 : vector<16x16xi1>, vector<16x16xf32>
    %c2 = arith.constant 2 : index
    %79 = memref.load %arg3[%c2] : memref<144xf32, #tpu.memory_space<smem>>
    %80 = vector.broadcast %79 : f32 to vector<16x16xf32>
    %81 = arith.mulf %80, %78 : vector<16x16xf32>
    %82 = arith.addf %62, %81 : vector<16x16xf32>
    %c38 = arith.constant 38 : index
    %83 = memref.load %arg3[%c38] : memref<144xf32, #tpu.memory_space<smem>>
    %84 = vector.broadcast %83 : f32 to vector<16x16xf32>
    %85 = arith.mulf %84, %78 : vector<16x16xf32>
    %86 = arith.addf %66, %85 : vector<16x16xf32>
    %c74 = arith.constant 74 : index
    %87 = memref.load %arg3[%c74] : memref<144xf32, #tpu.memory_space<smem>>
    %88 = vector.broadcast %87 : f32 to vector<16x16xf32>
    %89 = arith.mulf %88, %78 : vector<16x16xf32>
    %90 = arith.addf %70, %89 : vector<16x16xf32>
    %c110 = arith.constant 110 : index
    %91 = memref.load %arg3[%c110] : memref<144xf32, #tpu.memory_space<smem>>
    %92 = vector.broadcast %91 : f32 to vector<16x16xf32>
    %93 = arith.mulf %92, %78 : vector<16x16xf32>
    %94 = arith.addf %74, %93 : vector<16x16xf32>
    %c1_i32_23 = arith.constant 1 : i32
    %95 = tpu.dynamic_rotate %39 by %c1_i32_23 dim 1 : vector<16x16xf32>, i32 -> vector<16x16xf32>
    %cst_24 = arith.constant 0.000000e+00 : f32
    %96 = vector.broadcast %cst_24 : f32 to vector<16x16xf32>
    %97 = arith.select %15, %95, %96 : vector<16x16xi1>, vector<16x16xf32>
    %c3 = arith.constant 3 : index
    %98 = memref.load %arg3[%c3] : memref<144xf32, #tpu.memory_space<smem>>
    %99 = vector.broadcast %98 : f32 to vector<16x16xf32>
    %100 = arith.mulf %99, %97 : vector<16x16xf32>
    %101 = arith.addf %82, %100 : vector<16x16xf32>
    %c39 = arith.constant 39 : index
    %102 = memref.load %arg3[%c39] : memref<144xf32, #tpu.memory_space<smem>>
    %103 = vector.broadcast %102 : f32 to vector<16x16xf32>
    %104 = arith.mulf %103, %97 : vector<16x16xf32>
    %105 = arith.addf %86, %104 : vector<16x16xf32>
    %c75 = arith.constant 75 : index
    %106 = memref.load %arg3[%c75] : memref<144xf32, #tpu.memory_space<smem>>
    %107 = vector.broadcast %106 : f32 to vector<16x16xf32>
    %108 = arith.mulf %107, %97 : vector<16x16xf32>
    %109 = arith.addf %90, %108 : vector<16x16xf32>
    %c111 = arith.constant 111 : index
    %110 = memref.load %arg3[%c111] : memref<144xf32, #tpu.memory_space<smem>>
    %111 = vector.broadcast %110 : f32 to vector<16x16xf32>
    %112 = arith.mulf %111, %97 : vector<16x16xf32>
    %113 = arith.addf %94, %112 : vector<16x16xf32>
    %c4_25 = arith.constant 4 : index
    %114 = memref.load %arg3[%c4_25] : memref<144xf32, #tpu.memory_space<smem>>
    %115 = vector.broadcast %114 : f32 to vector<16x16xf32>
    %116 = arith.mulf %115, %39 : vector<16x16xf32>
    %117 = arith.addf %101, %116 : vector<16x16xf32>
    %c40 = arith.constant 40 : index
    %118 = memref.load %arg3[%c40] : memref<144xf32, #tpu.memory_space<smem>>
    %119 = vector.broadcast %118 : f32 to vector<16x16xf32>
    %120 = arith.mulf %119, %39 : vector<16x16xf32>
    %121 = arith.addf %105, %120 : vector<16x16xf32>
    %c76 = arith.constant 76 : index
    %122 = memref.load %arg3[%c76] : memref<144xf32, #tpu.memory_space<smem>>
    %123 = vector.broadcast %122 : f32 to vector<16x16xf32>
    %124 = arith.mulf %123, %39 : vector<16x16xf32>
    %125 = arith.addf %109, %124 : vector<16x16xf32>
    %c112 = arith.constant 112 : index
    %126 = memref.load %arg3[%c112] : memref<144xf32, #tpu.memory_space<smem>>
    %127 = vector.broadcast %126 : f32 to vector<16x16xf32>
    %128 = arith.mulf %127, %39 : vector<16x16xf32>
    %129 = arith.addf %113, %128 : vector<16x16xf32>
    %c15_i32_26 = arith.constant 15 : i32
    %130 = tpu.dynamic_rotate %39 by %c15_i32_26 dim 1 : vector<16x16xf32>, i32 -> vector<16x16xf32>
    %cst_27 = arith.constant 0.000000e+00 : f32
    %131 = vector.broadcast %cst_27 : f32 to vector<16x16xf32>
    %132 = arith.select %17, %130, %131 : vector<16x16xi1>, vector<16x16xf32>
    %c5 = arith.constant 5 : index
    %133 = memref.load %arg3[%c5] : memref<144xf32, #tpu.memory_space<smem>>
    %134 = vector.broadcast %133 : f32 to vector<16x16xf32>
    %135 = arith.mulf %134, %132 : vector<16x16xf32>
    %136 = arith.addf %117, %135 : vector<16x16xf32>
    %c41 = arith.constant 41 : index
    %137 = memref.load %arg3[%c41] : memref<144xf32, #tpu.memory_space<smem>>
    %138 = vector.broadcast %137 : f32 to vector<16x16xf32>
    %139 = arith.mulf %138, %132 : vector<16x16xf32>
    %140 = arith.addf %121, %139 : vector<16x16xf32>
    %c77 = arith.constant 77 : index
    %141 = memref.load %arg3[%c77] : memref<144xf32, #tpu.memory_space<smem>>
    %142 = vector.broadcast %141 : f32 to vector<16x16xf32>
    %143 = arith.mulf %142, %132 : vector<16x16xf32>
    %144 = arith.addf %125, %143 : vector<16x16xf32>
    %c113 = arith.constant 113 : index
    %145 = memref.load %arg3[%c113] : memref<144xf32, #tpu.memory_space<smem>>
    %146 = vector.broadcast %145 : f32 to vector<16x16xf32>
    %147 = arith.mulf %146, %132 : vector<16x16xf32>
    %148 = arith.addf %129, %147 : vector<16x16xf32>
    %c15_i32_28 = arith.constant 15 : i32
    %149 = tpu.dynamic_rotate %39 by %c15_i32_28 dim 0 : vector<16x16xf32>, i32 -> vector<16x16xf32>
    %c1_i32_29 = arith.constant 1 : i32
    %150 = tpu.dynamic_rotate %149 by %c1_i32_29 dim 1 : vector<16x16xf32>, i32 -> vector<16x16xf32>
    %cst_30 = arith.constant 0.000000e+00 : f32
    %151 = vector.broadcast %cst_30 : f32 to vector<16x16xf32>
    %152 = arith.select %22, %150, %151 : vector<16x16xi1>, vector<16x16xf32>
    %c6 = arith.constant 6 : index
    %153 = memref.load %arg3[%c6] : memref<144xf32, #tpu.memory_space<smem>>
    %154 = vector.broadcast %153 : f32 to vector<16x16xf32>
    %155 = arith.mulf %154, %152 : vector<16x16xf32>
    %156 = arith.addf %136, %155 : vector<16x16xf32>
    %c42 = arith.constant 42 : index
    %157 = memref.load %arg3[%c42] : memref<144xf32, #tpu.memory_space<smem>>
    %158 = vector.broadcast %157 : f32 to vector<16x16xf32>
    %159 = arith.mulf %158, %152 : vector<16x16xf32>
    %160 = arith.addf %140, %159 : vector<16x16xf32>
    %c78 = arith.constant 78 : index
    %161 = memref.load %arg3[%c78] : memref<144xf32, #tpu.memory_space<smem>>
    %162 = vector.broadcast %161 : f32 to vector<16x16xf32>
    %163 = arith.mulf %162, %152 : vector<16x16xf32>
    %164 = arith.addf %144, %163 : vector<16x16xf32>
    %c114 = arith.constant 114 : index
    %165 = memref.load %arg3[%c114] : memref<144xf32, #tpu.memory_space<smem>>
    %166 = vector.broadcast %165 : f32 to vector<16x16xf32>
    %167 = arith.mulf %166, %152 : vector<16x16xf32>
    %168 = arith.addf %148, %167 : vector<16x16xf32>
    %c15_i32_31 = arith.constant 15 : i32
    %169 = tpu.dynamic_rotate %39 by %c15_i32_31 dim 0 : vector<16x16xf32>, i32 -> vector<16x16xf32>
    %cst_32 = arith.constant 0.000000e+00 : f32
    %170 = vector.broadcast %cst_32 : f32 to vector<16x16xf32>
    %171 = arith.select %24, %169, %170 : vector<16x16xi1>, vector<16x16xf32>
    %c7 = arith.constant 7 : index
    %172 = memref.load %arg3[%c7] : memref<144xf32, #tpu.memory_space<smem>>
    %173 = vector.broadcast %172 : f32 to vector<16x16xf32>
    %174 = arith.mulf %173, %171 : vector<16x16xf32>
    %175 = arith.addf %156, %174 : vector<16x16xf32>
    %c43 = arith.constant 43 : index
    %176 = memref.load %arg3[%c43] : memref<144xf32, #tpu.memory_space<smem>>
    %177 = vector.broadcast %176 : f32 to vector<16x16xf32>
    %178 = arith.mulf %177, %171 : vector<16x16xf32>
    %179 = arith.addf %160, %178 : vector<16x16xf32>
    %c79 = arith.constant 79 : index
    %180 = memref.load %arg3[%c79] : memref<144xf32, #tpu.memory_space<smem>>
    %181 = vector.broadcast %180 : f32 to vector<16x16xf32>
    %182 = arith.mulf %181, %171 : vector<16x16xf32>
    %183 = arith.addf %164, %182 : vector<16x16xf32>
    %c115 = arith.constant 115 : index
    %184 = memref.load %arg3[%c115] : memref<144xf32, #tpu.memory_space<smem>>
    %185 = vector.broadcast %184 : f32 to vector<16x16xf32>
    %186 = arith.mulf %185, %171 : vector<16x16xf32>
    %187 = arith.addf %168, %186 : vector<16x16xf32>
    %c15_i32_33 = arith.constant 15 : i32
    %188 = tpu.dynamic_rotate %39 by %c15_i32_33 dim 0 : vector<16x16xf32>, i32 -> vector<16x16xf32>
    %c15_i32_34 = arith.constant 15 : i32
    %189 = tpu.dynamic_rotate %188 by %c15_i32_34 dim 1 : vector<16x16xf32>, i32 -> vector<16x16xf32>
    %cst_35 = arith.constant 0.000000e+00 : f32
    %190 = vector.broadcast %cst_35 : f32 to vector<16x16xf32>
    %191 = arith.select %29, %189, %190 : vector<16x16xi1>, vector<16x16xf32>
    %c8 = arith.constant 8 : index
    %192 = memref.load %arg3[%c8] : memref<144xf32, #tpu.memory_space<smem>>
    %193 = vector.broadcast %192 : f32 to vector<16x16xf32>
    %194 = arith.mulf %193, %191 : vector<16x16xf32>
    %195 = arith.addf %175, %194 : vector<16x16xf32>
    %c44 = arith.constant 44 : index
    %196 = memref.load %arg3[%c44] : memref<144xf32, #tpu.memory_space<smem>>
    %197 = vector.broadcast %196 : f32 to vector<16x16xf32>
    %198 = arith.mulf %197, %191 : vector<16x16xf32>
    %199 = arith.addf %179, %198 : vector<16x16xf32>
    %c80 = arith.constant 80 : index
    %200 = memref.load %arg3[%c80] : memref<144xf32, #tpu.memory_space<smem>>
    %201 = vector.broadcast %200 : f32 to vector<16x16xf32>
    %202 = arith.mulf %201, %191 : vector<16x16xf32>
    %203 = arith.addf %183, %202 : vector<16x16xf32>
    %c116 = arith.constant 116 : index
    %204 = memref.load %arg3[%c116] : memref<144xf32, #tpu.memory_space<smem>>
    %205 = vector.broadcast %204 : f32 to vector<16x16xf32>
    %206 = arith.mulf %205, %191 : vector<16x16xf32>
    %207 = arith.addf %187, %206 : vector<16x16xf32>
    %c0_36 = arith.constant 0 : index
    %c1_37 = arith.constant 1 : index
    %c0_38 = arith.constant 0 : index
    %c0_39 = arith.constant 0 : index
    %208 = vector.load %arg1[%c0_36, %c1_37, %c0_38, %c0_39] : memref<1x4x16x16xf32, #tpu.memory_space<vmem>>, vector<1x1x16x16xf32>
    %209 = vector.shape_cast %208 : vector<1x1x16x16xf32> to vector<16x16xf32>
    %c1_40 = arith.constant 1 : index
    %210 = memref.load %arg2[%c1_40] : memref<8xf32, #tpu.memory_space<smem>>
    %211 = vector.broadcast %210 : f32 to vector<16x16xf32>
    %212 = arith.mulf %209, %211 : vector<16x16xf32>
    %c5_41 = arith.constant 5 : index
    %213 = memref.load %arg2[%c5_41] : memref<8xf32, #tpu.memory_space<smem>>
    %214 = vector.broadcast %213 : f32 to vector<16x16xf32>
    %215 = arith.addf %212, %214 : vector<16x16xf32>
    %cst_42 = arith.constant 0.000000e+00 : f32
    %216 = vector.broadcast %cst_42 : f32 to vector<16x16xf32>
    %217 = arith.maximumf %215, %216 : vector<16x16xf32>
    %c1_i32_43 = arith.constant 1 : i32
    %218 = tpu.dynamic_rotate %217 by %c1_i32_43 dim 0 : vector<16x16xf32>, i32 -> vector<16x16xf32>
    %c1_i32_44 = arith.constant 1 : i32
    %219 = tpu.dynamic_rotate %218 by %c1_i32_44 dim 1 : vector<16x16xf32>, i32 -> vector<16x16xf32>
    %cst_45 = arith.constant 0.000000e+00 : f32
    %220 = vector.broadcast %cst_45 : f32 to vector<16x16xf32>
    %221 = arith.select %6, %219, %220 : vector<16x16xi1>, vector<16x16xf32>
    %c9 = arith.constant 9 : index
    %222 = memref.load %arg3[%c9] : memref<144xf32, #tpu.memory_space<smem>>
    %223 = vector.broadcast %222 : f32 to vector<16x16xf32>
    %224 = arith.mulf %223, %221 : vector<16x16xf32>
    %225 = arith.addf %195, %224 : vector<16x16xf32>
    %c45 = arith.constant 45 : index
    %226 = memref.load %arg3[%c45] : memref<144xf32, #tpu.memory_space<smem>>
    %227 = vector.broadcast %226 : f32 to vector<16x16xf32>
    %228 = arith.mulf %227, %221 : vector<16x16xf32>
    %229 = arith.addf %199, %228 : vector<16x16xf32>
    %c81 = arith.constant 81 : index
    %230 = memref.load %arg3[%c81] : memref<144xf32, #tpu.memory_space<smem>>
    %231 = vector.broadcast %230 : f32 to vector<16x16xf32>
    %232 = arith.mulf %231, %221 : vector<16x16xf32>
    %233 = arith.addf %203, %232 : vector<16x16xf32>
    %c117 = arith.constant 117 : index
    %234 = memref.load %arg3[%c117] : memref<144xf32, #tpu.memory_space<smem>>
    %235 = vector.broadcast %234 : f32 to vector<16x16xf32>
    %236 = arith.mulf %235, %221 : vector<16x16xf32>
    %237 = arith.addf %207, %236 : vector<16x16xf32>
    %c1_i32_46 = arith.constant 1 : i32
    %238 = tpu.dynamic_rotate %217 by %c1_i32_46 dim 0 : vector<16x16xf32>, i32 -> vector<16x16xf32>
    %cst_47 = arith.constant 0.000000e+00 : f32
    %239 = vector.broadcast %cst_47 : f32 to vector<16x16xf32>
    %240 = arith.select %8, %238, %239 : vector<16x16xi1>, vector<16x16xf32>
    %c10 = arith.constant 10 : index
    %241 = memref.load %arg3[%c10] : memref<144xf32, #tpu.memory_space<smem>>
    %242 = vector.broadcast %241 : f32 to vector<16x16xf32>
    %243 = arith.mulf %242, %240 : vector<16x16xf32>
    %244 = arith.addf %225, %243 : vector<16x16xf32>
    %c46 = arith.constant 46 : index
    %245 = memref.load %arg3[%c46] : memref<144xf32, #tpu.memory_space<smem>>
    %246 = vector.broadcast %245 : f32 to vector<16x16xf32>
    %247 = arith.mulf %246, %240 : vector<16x16xf32>
    %248 = arith.addf %229, %247 : vector<16x16xf32>
    %c82 = arith.constant 82 : index
    %249 = memref.load %arg3[%c82] : memref<144xf32, #tpu.memory_space<smem>>
    %250 = vector.broadcast %249 : f32 to vector<16x16xf32>
    %251 = arith.mulf %250, %240 : vector<16x16xf32>
    %252 = arith.addf %233, %251 : vector<16x16xf32>
    %c118 = arith.constant 118 : index
    %253 = memref.load %arg3[%c118] : memref<144xf32, #tpu.memory_space<smem>>
    %254 = vector.broadcast %253 : f32 to vector<16x16xf32>
    %255 = arith.mulf %254, %240 : vector<16x16xf32>
    %256 = arith.addf %237, %255 : vector<16x16xf32>
    %c1_i32_48 = arith.constant 1 : i32
    %257 = tpu.dynamic_rotate %217 by %c1_i32_48 dim 0 : vector<16x16xf32>, i32 -> vector<16x16xf32>
    %c15_i32_49 = arith.constant 15 : i32
    %258 = tpu.dynamic_rotate %257 by %c15_i32_49 dim 1 : vector<16x16xf32>, i32 -> vector<16x16xf32>
    %cst_50 = arith.constant 0.000000e+00 : f32
    %259 = vector.broadcast %cst_50 : f32 to vector<16x16xf32>
    %260 = arith.select %13, %258, %259 : vector<16x16xi1>, vector<16x16xf32>
    %c11 = arith.constant 11 : index
    %261 = memref.load %arg3[%c11] : memref<144xf32, #tpu.memory_space<smem>>
    %262 = vector.broadcast %261 : f32 to vector<16x16xf32>
    %263 = arith.mulf %262, %260 : vector<16x16xf32>
    %264 = arith.addf %244, %263 : vector<16x16xf32>
    %c47 = arith.constant 47 : index
    %265 = memref.load %arg3[%c47] : memref<144xf32, #tpu.memory_space<smem>>
    %266 = vector.broadcast %265 : f32 to vector<16x16xf32>
    %267 = arith.mulf %266, %260 : vector<16x16xf32>
    %268 = arith.addf %248, %267 : vector<16x16xf32>
    %c83 = arith.constant 83 : index
    %269 = memref.load %arg3[%c83] : memref<144xf32, #tpu.memory_space<smem>>
    %270 = vector.broadcast %269 : f32 to vector<16x16xf32>
    %271 = arith.mulf %270, %260 : vector<16x16xf32>
    %272 = arith.addf %252, %271 : vector<16x16xf32>
    %c119 = arith.constant 119 : index
    %273 = memref.load %arg3[%c119] : memref<144xf32, #tpu.memory_space<smem>>
    %274 = vector.broadcast %273 : f32 to vector<16x16xf32>
    %275 = arith.mulf %274, %260 : vector<16x16xf32>
    %276 = arith.addf %256, %275 : vector<16x16xf32>
    %c1_i32_51 = arith.constant 1 : i32
    %277 = tpu.dynamic_rotate %217 by %c1_i32_51 dim 1 : vector<16x16xf32>, i32 -> vector<16x16xf32>
    %cst_52 = arith.constant 0.000000e+00 : f32
    %278 = vector.broadcast %cst_52 : f32 to vector<16x16xf32>
    %279 = arith.select %15, %277, %278 : vector<16x16xi1>, vector<16x16xf32>
    %c12 = arith.constant 12 : index
    %280 = memref.load %arg3[%c12] : memref<144xf32, #tpu.memory_space<smem>>
    %281 = vector.broadcast %280 : f32 to vector<16x16xf32>
    %282 = arith.mulf %281, %279 : vector<16x16xf32>
    %283 = arith.addf %264, %282 : vector<16x16xf32>
    %c48 = arith.constant 48 : index
    %284 = memref.load %arg3[%c48] : memref<144xf32, #tpu.memory_space<smem>>
    %285 = vector.broadcast %284 : f32 to vector<16x16xf32>
    %286 = arith.mulf %285, %279 : vector<16x16xf32>
    %287 = arith.addf %268, %286 : vector<16x16xf32>
    %c84 = arith.constant 84 : index
    %288 = memref.load %arg3[%c84] : memref<144xf32, #tpu.memory_space<smem>>
    %289 = vector.broadcast %288 : f32 to vector<16x16xf32>
    %290 = arith.mulf %289, %279 : vector<16x16xf32>
    %291 = arith.addf %272, %290 : vector<16x16xf32>
    %c120 = arith.constant 120 : index
    %292 = memref.load %arg3[%c120] : memref<144xf32, #tpu.memory_space<smem>>
    %293 = vector.broadcast %292 : f32 to vector<16x16xf32>
    %294 = arith.mulf %293, %279 : vector<16x16xf32>
    %295 = arith.addf %276, %294 : vector<16x16xf32>
    %c13 = arith.constant 13 : index
    %296 = memref.load %arg3[%c13] : memref<144xf32, #tpu.memory_space<smem>>
    %297 = vector.broadcast %296 : f32 to vector<16x16xf32>
    %298 = arith.mulf %297, %217 : vector<16x16xf32>
    %299 = arith.addf %283, %298 : vector<16x16xf32>
    %c49 = arith.constant 49 : index
    %300 = memref.load %arg3[%c49] : memref<144xf32, #tpu.memory_space<smem>>
    %301 = vector.broadcast %300 : f32 to vector<16x16xf32>
    %302 = arith.mulf %301, %217 : vector<16x16xf32>
    %303 = arith.addf %287, %302 : vector<16x16xf32>
    %c85 = arith.constant 85 : index
    %304 = memref.load %arg3[%c85] : memref<144xf32, #tpu.memory_space<smem>>
    %305 = vector.broadcast %304 : f32 to vector<16x16xf32>
    %306 = arith.mulf %305, %217 : vector<16x16xf32>
    %307 = arith.addf %291, %306 : vector<16x16xf32>
    %c121 = arith.constant 121 : index
    %308 = memref.load %arg3[%c121] : memref<144xf32, #tpu.memory_space<smem>>
    %309 = vector.broadcast %308 : f32 to vector<16x16xf32>
    %310 = arith.mulf %309, %217 : vector<16x16xf32>
    %311 = arith.addf %295, %310 : vector<16x16xf32>
    %c15_i32_53 = arith.constant 15 : i32
    %312 = tpu.dynamic_rotate %217 by %c15_i32_53 dim 1 : vector<16x16xf32>, i32 -> vector<16x16xf32>
    %cst_54 = arith.constant 0.000000e+00 : f32
    %313 = vector.broadcast %cst_54 : f32 to vector<16x16xf32>
    %314 = arith.select %17, %312, %313 : vector<16x16xi1>, vector<16x16xf32>
    %c14 = arith.constant 14 : index
    %315 = memref.load %arg3[%c14] : memref<144xf32, #tpu.memory_space<smem>>
    %316 = vector.broadcast %315 : f32 to vector<16x16xf32>
    %317 = arith.mulf %316, %314 : vector<16x16xf32>
    %318 = arith.addf %299, %317 : vector<16x16xf32>
    %c50 = arith.constant 50 : index
    %319 = memref.load %arg3[%c50] : memref<144xf32, #tpu.memory_space<smem>>
    %320 = vector.broadcast %319 : f32 to vector<16x16xf32>
    %321 = arith.mulf %320, %314 : vector<16x16xf32>
    %322 = arith.addf %303, %321 : vector<16x16xf32>
    %c86 = arith.constant 86 : index
    %323 = memref.load %arg3[%c86] : memref<144xf32, #tpu.memory_space<smem>>
    %324 = vector.broadcast %323 : f32 to vector<16x16xf32>
    %325 = arith.mulf %324, %314 : vector<16x16xf32>
    %326 = arith.addf %307, %325 : vector<16x16xf32>
    %c122 = arith.constant 122 : index
    %327 = memref.load %arg3[%c122] : memref<144xf32, #tpu.memory_space<smem>>
    %328 = vector.broadcast %327 : f32 to vector<16x16xf32>
    %329 = arith.mulf %328, %314 : vector<16x16xf32>
    %330 = arith.addf %311, %329 : vector<16x16xf32>
    %c15_i32_55 = arith.constant 15 : i32
    %331 = tpu.dynamic_rotate %217 by %c15_i32_55 dim 0 : vector<16x16xf32>, i32 -> vector<16x16xf32>
    %c1_i32_56 = arith.constant 1 : i32
    %332 = tpu.dynamic_rotate %331 by %c1_i32_56 dim 1 : vector<16x16xf32>, i32 -> vector<16x16xf32>
    %cst_57 = arith.constant 0.000000e+00 : f32
    %333 = vector.broadcast %cst_57 : f32 to vector<16x16xf32>
    %334 = arith.select %22, %332, %333 : vector<16x16xi1>, vector<16x16xf32>
    %c15 = arith.constant 15 : index
    %335 = memref.load %arg3[%c15] : memref<144xf32, #tpu.memory_space<smem>>
    %336 = vector.broadcast %335 : f32 to vector<16x16xf32>
    %337 = arith.mulf %336, %334 : vector<16x16xf32>
    %338 = arith.addf %318, %337 : vector<16x16xf32>
    %c51 = arith.constant 51 : index
    %339 = memref.load %arg3[%c51] : memref<144xf32, #tpu.memory_space<smem>>
    %340 = vector.broadcast %339 : f32 to vector<16x16xf32>
    %341 = arith.mulf %340, %334 : vector<16x16xf32>
    %342 = arith.addf %322, %341 : vector<16x16xf32>
    %c87 = arith.constant 87 : index
    %343 = memref.load %arg3[%c87] : memref<144xf32, #tpu.memory_space<smem>>
    %344 = vector.broadcast %343 : f32 to vector<16x16xf32>
    %345 = arith.mulf %344, %334 : vector<16x16xf32>
    %346 = arith.addf %326, %345 : vector<16x16xf32>
    %c123 = arith.constant 123 : index
    %347 = memref.load %arg3[%c123] : memref<144xf32, #tpu.memory_space<smem>>
    %348 = vector.broadcast %347 : f32 to vector<16x16xf32>
    %349 = arith.mulf %348, %334 : vector<16x16xf32>
    %350 = arith.addf %330, %349 : vector<16x16xf32>
    %c15_i32_58 = arith.constant 15 : i32
    %351 = tpu.dynamic_rotate %217 by %c15_i32_58 dim 0 : vector<16x16xf32>, i32 -> vector<16x16xf32>
    %cst_59 = arith.constant 0.000000e+00 : f32
    %352 = vector.broadcast %cst_59 : f32 to vector<16x16xf32>
    %353 = arith.select %24, %351, %352 : vector<16x16xi1>, vector<16x16xf32>
    %c16 = arith.constant 16 : index
    %354 = memref.load %arg3[%c16] : memref<144xf32, #tpu.memory_space<smem>>
    %355 = vector.broadcast %354 : f32 to vector<16x16xf32>
    %356 = arith.mulf %355, %353 : vector<16x16xf32>
    %357 = arith.addf %338, %356 : vector<16x16xf32>
    %c52 = arith.constant 52 : index
    %358 = memref.load %arg3[%c52] : memref<144xf32, #tpu.memory_space<smem>>
    %359 = vector.broadcast %358 : f32 to vector<16x16xf32>
    %360 = arith.mulf %359, %353 : vector<16x16xf32>
    %361 = arith.addf %342, %360 : vector<16x16xf32>
    %c88 = arith.constant 88 : index
    %362 = memref.load %arg3[%c88] : memref<144xf32, #tpu.memory_space<smem>>
    %363 = vector.broadcast %362 : f32 to vector<16x16xf32>
    %364 = arith.mulf %363, %353 : vector<16x16xf32>
    %365 = arith.addf %346, %364 : vector<16x16xf32>
    %c124 = arith.constant 124 : index
    %366 = memref.load %arg3[%c124] : memref<144xf32, #tpu.memory_space<smem>>
    %367 = vector.broadcast %366 : f32 to vector<16x16xf32>
    %368 = arith.mulf %367, %353 : vector<16x16xf32>
    %369 = arith.addf %350, %368 : vector<16x16xf32>
    %c15_i32_60 = arith.constant 15 : i32
    %370 = tpu.dynamic_rotate %217 by %c15_i32_60 dim 0 : vector<16x16xf32>, i32 -> vector<16x16xf32>
    %c15_i32_61 = arith.constant 15 : i32
    %371 = tpu.dynamic_rotate %370 by %c15_i32_61 dim 1 : vector<16x16xf32>, i32 -> vector<16x16xf32>
    %cst_62 = arith.constant 0.000000e+00 : f32
    %372 = vector.broadcast %cst_62 : f32 to vector<16x16xf32>
    %373 = arith.select %29, %371, %372 : vector<16x16xi1>, vector<16x16xf32>
    %c17 = arith.constant 17 : index
    %374 = memref.load %arg3[%c17] : memref<144xf32, #tpu.memory_space<smem>>
    %375 = vector.broadcast %374 : f32 to vector<16x16xf32>
    %376 = arith.mulf %375, %373 : vector<16x16xf32>
    %377 = arith.addf %357, %376 : vector<16x16xf32>
    %c53 = arith.constant 53 : index
    %378 = memref.load %arg3[%c53] : memref<144xf32, #tpu.memory_space<smem>>
    %379 = vector.broadcast %378 : f32 to vector<16x16xf32>
    %380 = arith.mulf %379, %373 : vector<16x16xf32>
    %381 = arith.addf %361, %380 : vector<16x16xf32>
    %c89 = arith.constant 89 : index
    %382 = memref.load %arg3[%c89] : memref<144xf32, #tpu.memory_space<smem>>
    %383 = vector.broadcast %382 : f32 to vector<16x16xf32>
    %384 = arith.mulf %383, %373 : vector<16x16xf32>
    %385 = arith.addf %365, %384 : vector<16x16xf32>
    %c125 = arith.constant 125 : index
    %386 = memref.load %arg3[%c125] : memref<144xf32, #tpu.memory_space<smem>>
    %387 = vector.broadcast %386 : f32 to vector<16x16xf32>
    %388 = arith.mulf %387, %373 : vector<16x16xf32>
    %389 = arith.addf %369, %388 : vector<16x16xf32>
    %c0_63 = arith.constant 0 : index
    %c2_64 = arith.constant 2 : index
    %c0_65 = arith.constant 0 : index
    %c0_66 = arith.constant 0 : index
    %390 = vector.load %arg1[%c0_63, %c2_64, %c0_65, %c0_66] : memref<1x4x16x16xf32, #tpu.memory_space<vmem>>, vector<1x1x16x16xf32>
    %391 = vector.shape_cast %390 : vector<1x1x16x16xf32> to vector<16x16xf32>
    %c2_67 = arith.constant 2 : index
    %392 = memref.load %arg2[%c2_67] : memref<8xf32, #tpu.memory_space<smem>>
    %393 = vector.broadcast %392 : f32 to vector<16x16xf32>
    %394 = arith.mulf %391, %393 : vector<16x16xf32>
    %c6_68 = arith.constant 6 : index
    %395 = memref.load %arg2[%c6_68] : memref<8xf32, #tpu.memory_space<smem>>
    %396 = vector.broadcast %395 : f32 to vector<16x16xf32>
    %397 = arith.addf %394, %396 : vector<16x16xf32>
    %cst_69 = arith.constant 0.000000e+00 : f32
    %398 = vector.broadcast %cst_69 : f32 to vector<16x16xf32>
    %399 = arith.maximumf %397, %398 : vector<16x16xf32>
    %c1_i32_70 = arith.constant 1 : i32
    %400 = tpu.dynamic_rotate %399 by %c1_i32_70 dim 0 : vector<16x16xf32>, i32 -> vector<16x16xf32>
    %c1_i32_71 = arith.constant 1 : i32
    %401 = tpu.dynamic_rotate %400 by %c1_i32_71 dim 1 : vector<16x16xf32>, i32 -> vector<16x16xf32>
    %cst_72 = arith.constant 0.000000e+00 : f32
    %402 = vector.broadcast %cst_72 : f32 to vector<16x16xf32>
    %403 = arith.select %6, %401, %402 : vector<16x16xi1>, vector<16x16xf32>
    %c18 = arith.constant 18 : index
    %404 = memref.load %arg3[%c18] : memref<144xf32, #tpu.memory_space<smem>>
    %405 = vector.broadcast %404 : f32 to vector<16x16xf32>
    %406 = arith.mulf %405, %403 : vector<16x16xf32>
    %407 = arith.addf %377, %406 : vector<16x16xf32>
    %c54 = arith.constant 54 : index
    %408 = memref.load %arg3[%c54] : memref<144xf32, #tpu.memory_space<smem>>
    %409 = vector.broadcast %408 : f32 to vector<16x16xf32>
    %410 = arith.mulf %409, %403 : vector<16x16xf32>
    %411 = arith.addf %381, %410 : vector<16x16xf32>
    %c90 = arith.constant 90 : index
    %412 = memref.load %arg3[%c90] : memref<144xf32, #tpu.memory_space<smem>>
    %413 = vector.broadcast %412 : f32 to vector<16x16xf32>
    %414 = arith.mulf %413, %403 : vector<16x16xf32>
    %415 = arith.addf %385, %414 : vector<16x16xf32>
    %c126 = arith.constant 126 : index
    %416 = memref.load %arg3[%c126] : memref<144xf32, #tpu.memory_space<smem>>
    %417 = vector.broadcast %416 : f32 to vector<16x16xf32>
    %418 = arith.mulf %417, %403 : vector<16x16xf32>
    %419 = arith.addf %389, %418 : vector<16x16xf32>
    %c1_i32_73 = arith.constant 1 : i32
    %420 = tpu.dynamic_rotate %399 by %c1_i32_73 dim 0 : vector<16x16xf32>, i32 -> vector<16x16xf32>
    %cst_74 = arith.constant 0.000000e+00 : f32
    %421 = vector.broadcast %cst_74 : f32 to vector<16x16xf32>
    %422 = arith.select %8, %420, %421 : vector<16x16xi1>, vector<16x16xf32>
    %c19 = arith.constant 19 : index
    %423 = memref.load %arg3[%c19] : memref<144xf32, #tpu.memory_space<smem>>
    %424 = vector.broadcast %423 : f32 to vector<16x16xf32>
    %425 = arith.mulf %424, %422 : vector<16x16xf32>
    %426 = arith.addf %407, %425 : vector<16x16xf32>
    %c55 = arith.constant 55 : index
    %427 = memref.load %arg3[%c55] : memref<144xf32, #tpu.memory_space<smem>>
    %428 = vector.broadcast %427 : f32 to vector<16x16xf32>
    %429 = arith.mulf %428, %422 : vector<16x16xf32>
    %430 = arith.addf %411, %429 : vector<16x16xf32>
    %c91 = arith.constant 91 : index
    %431 = memref.load %arg3[%c91] : memref<144xf32, #tpu.memory_space<smem>>
    %432 = vector.broadcast %431 : f32 to vector<16x16xf32>
    %433 = arith.mulf %432, %422 : vector<16x16xf32>
    %434 = arith.addf %415, %433 : vector<16x16xf32>
    %c127 = arith.constant 127 : index
    %435 = memref.load %arg3[%c127] : memref<144xf32, #tpu.memory_space<smem>>
    %436 = vector.broadcast %435 : f32 to vector<16x16xf32>
    %437 = arith.mulf %436, %422 : vector<16x16xf32>
    %438 = arith.addf %419, %437 : vector<16x16xf32>
    %c1_i32_75 = arith.constant 1 : i32
    %439 = tpu.dynamic_rotate %399 by %c1_i32_75 dim 0 : vector<16x16xf32>, i32 -> vector<16x16xf32>
    %c15_i32_76 = arith.constant 15 : i32
    %440 = tpu.dynamic_rotate %439 by %c15_i32_76 dim 1 : vector<16x16xf32>, i32 -> vector<16x16xf32>
    %cst_77 = arith.constant 0.000000e+00 : f32
    %441 = vector.broadcast %cst_77 : f32 to vector<16x16xf32>
    %442 = arith.select %13, %440, %441 : vector<16x16xi1>, vector<16x16xf32>
    %c20 = arith.constant 20 : index
    %443 = memref.load %arg3[%c20] : memref<144xf32, #tpu.memory_space<smem>>
    %444 = vector.broadcast %443 : f32 to vector<16x16xf32>
    %445 = arith.mulf %444, %442 : vector<16x16xf32>
    %446 = arith.addf %426, %445 : vector<16x16xf32>
    %c56 = arith.constant 56 : index
    %447 = memref.load %arg3[%c56] : memref<144xf32, #tpu.memory_space<smem>>
    %448 = vector.broadcast %447 : f32 to vector<16x16xf32>
    %449 = arith.mulf %448, %442 : vector<16x16xf32>
    %450 = arith.addf %430, %449 : vector<16x16xf32>
    %c92 = arith.constant 92 : index
    %451 = memref.load %arg3[%c92] : memref<144xf32, #tpu.memory_space<smem>>
    %452 = vector.broadcast %451 : f32 to vector<16x16xf32>
    %453 = arith.mulf %452, %442 : vector<16x16xf32>
    %454 = arith.addf %434, %453 : vector<16x16xf32>
    %c128 = arith.constant 128 : index
    %455 = memref.load %arg3[%c128] : memref<144xf32, #tpu.memory_space<smem>>
    %456 = vector.broadcast %455 : f32 to vector<16x16xf32>
    %457 = arith.mulf %456, %442 : vector<16x16xf32>
    %458 = arith.addf %438, %457 : vector<16x16xf32>
    %c1_i32_78 = arith.constant 1 : i32
    %459 = tpu.dynamic_rotate %399 by %c1_i32_78 dim 1 : vector<16x16xf32>, i32 -> vector<16x16xf32>
    %cst_79 = arith.constant 0.000000e+00 : f32
    %460 = vector.broadcast %cst_79 : f32 to vector<16x16xf32>
    %461 = arith.select %15, %459, %460 : vector<16x16xi1>, vector<16x16xf32>
    %c21 = arith.constant 21 : index
    %462 = memref.load %arg3[%c21] : memref<144xf32, #tpu.memory_space<smem>>
    %463 = vector.broadcast %462 : f32 to vector<16x16xf32>
    %464 = arith.mulf %463, %461 : vector<16x16xf32>
    %465 = arith.addf %446, %464 : vector<16x16xf32>
    %c57 = arith.constant 57 : index
    %466 = memref.load %arg3[%c57] : memref<144xf32, #tpu.memory_space<smem>>
    %467 = vector.broadcast %466 : f32 to vector<16x16xf32>
    %468 = arith.mulf %467, %461 : vector<16x16xf32>
    %469 = arith.addf %450, %468 : vector<16x16xf32>
    %c93 = arith.constant 93 : index
    %470 = memref.load %arg3[%c93] : memref<144xf32, #tpu.memory_space<smem>>
    %471 = vector.broadcast %470 : f32 to vector<16x16xf32>
    %472 = arith.mulf %471, %461 : vector<16x16xf32>
    %473 = arith.addf %454, %472 : vector<16x16xf32>
    %c129 = arith.constant 129 : index
    %474 = memref.load %arg3[%c129] : memref<144xf32, #tpu.memory_space<smem>>
    %475 = vector.broadcast %474 : f32 to vector<16x16xf32>
    %476 = arith.mulf %475, %461 : vector<16x16xf32>
    %477 = arith.addf %458, %476 : vector<16x16xf32>
    %c22 = arith.constant 22 : index
    %478 = memref.load %arg3[%c22] : memref<144xf32, #tpu.memory_space<smem>>
    %479 = vector.broadcast %478 : f32 to vector<16x16xf32>
    %480 = arith.mulf %479, %399 : vector<16x16xf32>
    %481 = arith.addf %465, %480 : vector<16x16xf32>
    %c58 = arith.constant 58 : index
    %482 = memref.load %arg3[%c58] : memref<144xf32, #tpu.memory_space<smem>>
    %483 = vector.broadcast %482 : f32 to vector<16x16xf32>
    %484 = arith.mulf %483, %399 : vector<16x16xf32>
    %485 = arith.addf %469, %484 : vector<16x16xf32>
    %c94 = arith.constant 94 : index
    %486 = memref.load %arg3[%c94] : memref<144xf32, #tpu.memory_space<smem>>
    %487 = vector.broadcast %486 : f32 to vector<16x16xf32>
    %488 = arith.mulf %487, %399 : vector<16x16xf32>
    %489 = arith.addf %473, %488 : vector<16x16xf32>
    %c130 = arith.constant 130 : index
    %490 = memref.load %arg3[%c130] : memref<144xf32, #tpu.memory_space<smem>>
    %491 = vector.broadcast %490 : f32 to vector<16x16xf32>
    %492 = arith.mulf %491, %399 : vector<16x16xf32>
    %493 = arith.addf %477, %492 : vector<16x16xf32>
    %c15_i32_80 = arith.constant 15 : i32
    %494 = tpu.dynamic_rotate %399 by %c15_i32_80 dim 1 : vector<16x16xf32>, i32 -> vector<16x16xf32>
    %cst_81 = arith.constant 0.000000e+00 : f32
    %495 = vector.broadcast %cst_81 : f32 to vector<16x16xf32>
    %496 = arith.select %17, %494, %495 : vector<16x16xi1>, vector<16x16xf32>
    %c23 = arith.constant 23 : index
    %497 = memref.load %arg3[%c23] : memref<144xf32, #tpu.memory_space<smem>>
    %498 = vector.broadcast %497 : f32 to vector<16x16xf32>
    %499 = arith.mulf %498, %496 : vector<16x16xf32>
    %500 = arith.addf %481, %499 : vector<16x16xf32>
    %c59 = arith.constant 59 : index
    %501 = memref.load %arg3[%c59] : memref<144xf32, #tpu.memory_space<smem>>
    %502 = vector.broadcast %501 : f32 to vector<16x16xf32>
    %503 = arith.mulf %502, %496 : vector<16x16xf32>
    %504 = arith.addf %485, %503 : vector<16x16xf32>
    %c95 = arith.constant 95 : index
    %505 = memref.load %arg3[%c95] : memref<144xf32, #tpu.memory_space<smem>>
    %506 = vector.broadcast %505 : f32 to vector<16x16xf32>
    %507 = arith.mulf %506, %496 : vector<16x16xf32>
    %508 = arith.addf %489, %507 : vector<16x16xf32>
    %c131 = arith.constant 131 : index
    %509 = memref.load %arg3[%c131] : memref<144xf32, #tpu.memory_space<smem>>
    %510 = vector.broadcast %509 : f32 to vector<16x16xf32>
    %511 = arith.mulf %510, %496 : vector<16x16xf32>
    %512 = arith.addf %493, %511 : vector<16x16xf32>
    %c15_i32_82 = arith.constant 15 : i32
    %513 = tpu.dynamic_rotate %399 by %c15_i32_82 dim 0 : vector<16x16xf32>, i32 -> vector<16x16xf32>
    %c1_i32_83 = arith.constant 1 : i32
    %514 = tpu.dynamic_rotate %513 by %c1_i32_83 dim 1 : vector<16x16xf32>, i32 -> vector<16x16xf32>
    %cst_84 = arith.constant 0.000000e+00 : f32
    %515 = vector.broadcast %cst_84 : f32 to vector<16x16xf32>
    %516 = arith.select %22, %514, %515 : vector<16x16xi1>, vector<16x16xf32>
    %c24 = arith.constant 24 : index
    %517 = memref.load %arg3[%c24] : memref<144xf32, #tpu.memory_space<smem>>
    %518 = vector.broadcast %517 : f32 to vector<16x16xf32>
    %519 = arith.mulf %518, %516 : vector<16x16xf32>
    %520 = arith.addf %500, %519 : vector<16x16xf32>
    %c60 = arith.constant 60 : index
    %521 = memref.load %arg3[%c60] : memref<144xf32, #tpu.memory_space<smem>>
    %522 = vector.broadcast %521 : f32 to vector<16x16xf32>
    %523 = arith.mulf %522, %516 : vector<16x16xf32>
    %524 = arith.addf %504, %523 : vector<16x16xf32>
    %c96 = arith.constant 96 : index
    %525 = memref.load %arg3[%c96] : memref<144xf32, #tpu.memory_space<smem>>
    %526 = vector.broadcast %525 : f32 to vector<16x16xf32>
    %527 = arith.mulf %526, %516 : vector<16x16xf32>
    %528 = arith.addf %508, %527 : vector<16x16xf32>
    %c132 = arith.constant 132 : index
    %529 = memref.load %arg3[%c132] : memref<144xf32, #tpu.memory_space<smem>>
    %530 = vector.broadcast %529 : f32 to vector<16x16xf32>
    %531 = arith.mulf %530, %516 : vector<16x16xf32>
    %532 = arith.addf %512, %531 : vector<16x16xf32>
    %c15_i32_85 = arith.constant 15 : i32
    %533 = tpu.dynamic_rotate %399 by %c15_i32_85 dim 0 : vector<16x16xf32>, i32 -> vector<16x16xf32>
    %cst_86 = arith.constant 0.000000e+00 : f32
    %534 = vector.broadcast %cst_86 : f32 to vector<16x16xf32>
    %535 = arith.select %24, %533, %534 : vector<16x16xi1>, vector<16x16xf32>
    %c25 = arith.constant 25 : index
    %536 = memref.load %arg3[%c25] : memref<144xf32, #tpu.memory_space<smem>>
    %537 = vector.broadcast %536 : f32 to vector<16x16xf32>
    %538 = arith.mulf %537, %535 : vector<16x16xf32>
    %539 = arith.addf %520, %538 : vector<16x16xf32>
    %c61 = arith.constant 61 : index
    %540 = memref.load %arg3[%c61] : memref<144xf32, #tpu.memory_space<smem>>
    %541 = vector.broadcast %540 : f32 to vector<16x16xf32>
    %542 = arith.mulf %541, %535 : vector<16x16xf32>
    %543 = arith.addf %524, %542 : vector<16x16xf32>
    %c97 = arith.constant 97 : index
    %544 = memref.load %arg3[%c97] : memref<144xf32, #tpu.memory_space<smem>>
    %545 = vector.broadcast %544 : f32 to vector<16x16xf32>
    %546 = arith.mulf %545, %535 : vector<16x16xf32>
    %547 = arith.addf %528, %546 : vector<16x16xf32>
    %c133 = arith.constant 133 : index
    %548 = memref.load %arg3[%c133] : memref<144xf32, #tpu.memory_space<smem>>
    %549 = vector.broadcast %548 : f32 to vector<16x16xf32>
    %550 = arith.mulf %549, %535 : vector<16x16xf32>
    %551 = arith.addf %532, %550 : vector<16x16xf32>
    %c15_i32_87 = arith.constant 15 : i32
    %552 = tpu.dynamic_rotate %399 by %c15_i32_87 dim 0 : vector<16x16xf32>, i32 -> vector<16x16xf32>
    %c15_i32_88 = arith.constant 15 : i32
    %553 = tpu.dynamic_rotate %552 by %c15_i32_88 dim 1 : vector<16x16xf32>, i32 -> vector<16x16xf32>
    %cst_89 = arith.constant 0.000000e+00 : f32
    %554 = vector.broadcast %cst_89 : f32 to vector<16x16xf32>
    %555 = arith.select %29, %553, %554 : vector<16x16xi1>, vector<16x16xf32>
    %c26 = arith.constant 26 : index
    %556 = memref.load %arg3[%c26] : memref<144xf32, #tpu.memory_space<smem>>
    %557 = vector.broadcast %556 : f32 to vector<16x16xf32>
    %558 = arith.mulf %557, %555 : vector<16x16xf32>
    %559 = arith.addf %539, %558 : vector<16x16xf32>
    %c62 = arith.constant 62 : index
    %560 = memref.load %arg3[%c62] : memref<144xf32, #tpu.memory_space<smem>>
    %561 = vector.broadcast %560 : f32 to vector<16x16xf32>
    %562 = arith.mulf %561, %555 : vector<16x16xf32>
    %563 = arith.addf %543, %562 : vector<16x16xf32>
    %c98 = arith.constant 98 : index
    %564 = memref.load %arg3[%c98] : memref<144xf32, #tpu.memory_space<smem>>
    %565 = vector.broadcast %564 : f32 to vector<16x16xf32>
    %566 = arith.mulf %565, %555 : vector<16x16xf32>
    %567 = arith.addf %547, %566 : vector<16x16xf32>
    %c134 = arith.constant 134 : index
    %568 = memref.load %arg3[%c134] : memref<144xf32, #tpu.memory_space<smem>>
    %569 = vector.broadcast %568 : f32 to vector<16x16xf32>
    %570 = arith.mulf %569, %555 : vector<16x16xf32>
    %571 = arith.addf %551, %570 : vector<16x16xf32>
    %c0_90 = arith.constant 0 : index
    %c3_91 = arith.constant 3 : index
    %c0_92 = arith.constant 0 : index
    %c0_93 = arith.constant 0 : index
    %572 = vector.load %arg1[%c0_90, %c3_91, %c0_92, %c0_93] : memref<1x4x16x16xf32, #tpu.memory_space<vmem>>, vector<1x1x16x16xf32>
    %573 = vector.shape_cast %572 : vector<1x1x16x16xf32> to vector<16x16xf32>
    %c3_94 = arith.constant 3 : index
    %574 = memref.load %arg2[%c3_94] : memref<8xf32, #tpu.memory_space<smem>>
    %575 = vector.broadcast %574 : f32 to vector<16x16xf32>
    %576 = arith.mulf %573, %575 : vector<16x16xf32>
    %c7_95 = arith.constant 7 : index
    %577 = memref.load %arg2[%c7_95] : memref<8xf32, #tpu.memory_space<smem>>
    %578 = vector.broadcast %577 : f32 to vector<16x16xf32>
    %579 = arith.addf %576, %578 : vector<16x16xf32>
    %cst_96 = arith.constant 0.000000e+00 : f32
    %580 = vector.broadcast %cst_96 : f32 to vector<16x16xf32>
    %581 = arith.maximumf %579, %580 : vector<16x16xf32>
    %c1_i32_97 = arith.constant 1 : i32
    %582 = tpu.dynamic_rotate %581 by %c1_i32_97 dim 0 : vector<16x16xf32>, i32 -> vector<16x16xf32>
    %c1_i32_98 = arith.constant 1 : i32
    %583 = tpu.dynamic_rotate %582 by %c1_i32_98 dim 1 : vector<16x16xf32>, i32 -> vector<16x16xf32>
    %cst_99 = arith.constant 0.000000e+00 : f32
    %584 = vector.broadcast %cst_99 : f32 to vector<16x16xf32>
    %585 = arith.select %6, %583, %584 : vector<16x16xi1>, vector<16x16xf32>
    %c27 = arith.constant 27 : index
    %586 = memref.load %arg3[%c27] : memref<144xf32, #tpu.memory_space<smem>>
    %587 = vector.broadcast %586 : f32 to vector<16x16xf32>
    %588 = arith.mulf %587, %585 : vector<16x16xf32>
    %589 = arith.addf %559, %588 : vector<16x16xf32>
    %c63 = arith.constant 63 : index
    %590 = memref.load %arg3[%c63] : memref<144xf32, #tpu.memory_space<smem>>
    %591 = vector.broadcast %590 : f32 to vector<16x16xf32>
    %592 = arith.mulf %591, %585 : vector<16x16xf32>
    %593 = arith.addf %563, %592 : vector<16x16xf32>
    %c99 = arith.constant 99 : index
    %594 = memref.load %arg3[%c99] : memref<144xf32, #tpu.memory_space<smem>>
    %595 = vector.broadcast %594 : f32 to vector<16x16xf32>
    %596 = arith.mulf %595, %585 : vector<16x16xf32>
    %597 = arith.addf %567, %596 : vector<16x16xf32>
    %c135 = arith.constant 135 : index
    %598 = memref.load %arg3[%c135] : memref<144xf32, #tpu.memory_space<smem>>
    %599 = vector.broadcast %598 : f32 to vector<16x16xf32>
    %600 = arith.mulf %599, %585 : vector<16x16xf32>
    %601 = arith.addf %571, %600 : vector<16x16xf32>
    %c1_i32_100 = arith.constant 1 : i32
    %602 = tpu.dynamic_rotate %581 by %c1_i32_100 dim 0 : vector<16x16xf32>, i32 -> vector<16x16xf32>
    %cst_101 = arith.constant 0.000000e+00 : f32
    %603 = vector.broadcast %cst_101 : f32 to vector<16x16xf32>
    %604 = arith.select %8, %602, %603 : vector<16x16xi1>, vector<16x16xf32>
    %c28 = arith.constant 28 : index
    %605 = memref.load %arg3[%c28] : memref<144xf32, #tpu.memory_space<smem>>
    %606 = vector.broadcast %605 : f32 to vector<16x16xf32>
    %607 = arith.mulf %606, %604 : vector<16x16xf32>
    %608 = arith.addf %589, %607 : vector<16x16xf32>
    %c64 = arith.constant 64 : index
    %609 = memref.load %arg3[%c64] : memref<144xf32, #tpu.memory_space<smem>>
    %610 = vector.broadcast %609 : f32 to vector<16x16xf32>
    %611 = arith.mulf %610, %604 : vector<16x16xf32>
    %612 = arith.addf %593, %611 : vector<16x16xf32>
    %c100 = arith.constant 100 : index
    %613 = memref.load %arg3[%c100] : memref<144xf32, #tpu.memory_space<smem>>
    %614 = vector.broadcast %613 : f32 to vector<16x16xf32>
    %615 = arith.mulf %614, %604 : vector<16x16xf32>
    %616 = arith.addf %597, %615 : vector<16x16xf32>
    %c136 = arith.constant 136 : index
    %617 = memref.load %arg3[%c136] : memref<144xf32, #tpu.memory_space<smem>>
    %618 = vector.broadcast %617 : f32 to vector<16x16xf32>
    %619 = arith.mulf %618, %604 : vector<16x16xf32>
    %620 = arith.addf %601, %619 : vector<16x16xf32>
    %c1_i32_102 = arith.constant 1 : i32
    %621 = tpu.dynamic_rotate %581 by %c1_i32_102 dim 0 : vector<16x16xf32>, i32 -> vector<16x16xf32>
    %c15_i32_103 = arith.constant 15 : i32
    %622 = tpu.dynamic_rotate %621 by %c15_i32_103 dim 1 : vector<16x16xf32>, i32 -> vector<16x16xf32>
    %cst_104 = arith.constant 0.000000e+00 : f32
    %623 = vector.broadcast %cst_104 : f32 to vector<16x16xf32>
    %624 = arith.select %13, %622, %623 : vector<16x16xi1>, vector<16x16xf32>
    %c29 = arith.constant 29 : index
    %625 = memref.load %arg3[%c29] : memref<144xf32, #tpu.memory_space<smem>>
    %626 = vector.broadcast %625 : f32 to vector<16x16xf32>
    %627 = arith.mulf %626, %624 : vector<16x16xf32>
    %628 = arith.addf %608, %627 : vector<16x16xf32>
    %c65 = arith.constant 65 : index
    %629 = memref.load %arg3[%c65] : memref<144xf32, #tpu.memory_space<smem>>
    %630 = vector.broadcast %629 : f32 to vector<16x16xf32>
    %631 = arith.mulf %630, %624 : vector<16x16xf32>
    %632 = arith.addf %612, %631 : vector<16x16xf32>
    %c101 = arith.constant 101 : index
    %633 = memref.load %arg3[%c101] : memref<144xf32, #tpu.memory_space<smem>>
    %634 = vector.broadcast %633 : f32 to vector<16x16xf32>
    %635 = arith.mulf %634, %624 : vector<16x16xf32>
    %636 = arith.addf %616, %635 : vector<16x16xf32>
    %c137 = arith.constant 137 : index
    %637 = memref.load %arg3[%c137] : memref<144xf32, #tpu.memory_space<smem>>
    %638 = vector.broadcast %637 : f32 to vector<16x16xf32>
    %639 = arith.mulf %638, %624 : vector<16x16xf32>
    %640 = arith.addf %620, %639 : vector<16x16xf32>
    %c1_i32_105 = arith.constant 1 : i32
    %641 = tpu.dynamic_rotate %581 by %c1_i32_105 dim 1 : vector<16x16xf32>, i32 -> vector<16x16xf32>
    %cst_106 = arith.constant 0.000000e+00 : f32
    %642 = vector.broadcast %cst_106 : f32 to vector<16x16xf32>
    %643 = arith.select %15, %641, %642 : vector<16x16xi1>, vector<16x16xf32>
    %c30 = arith.constant 30 : index
    %644 = memref.load %arg3[%c30] : memref<144xf32, #tpu.memory_space<smem>>
    %645 = vector.broadcast %644 : f32 to vector<16x16xf32>
    %646 = arith.mulf %645, %643 : vector<16x16xf32>
    %647 = arith.addf %628, %646 : vector<16x16xf32>
    %c66 = arith.constant 66 : index
    %648 = memref.load %arg3[%c66] : memref<144xf32, #tpu.memory_space<smem>>
    %649 = vector.broadcast %648 : f32 to vector<16x16xf32>
    %650 = arith.mulf %649, %643 : vector<16x16xf32>
    %651 = arith.addf %632, %650 : vector<16x16xf32>
    %c102 = arith.constant 102 : index
    %652 = memref.load %arg3[%c102] : memref<144xf32, #tpu.memory_space<smem>>
    %653 = vector.broadcast %652 : f32 to vector<16x16xf32>
    %654 = arith.mulf %653, %643 : vector<16x16xf32>
    %655 = arith.addf %636, %654 : vector<16x16xf32>
    %c138 = arith.constant 138 : index
    %656 = memref.load %arg3[%c138] : memref<144xf32, #tpu.memory_space<smem>>
    %657 = vector.broadcast %656 : f32 to vector<16x16xf32>
    %658 = arith.mulf %657, %643 : vector<16x16xf32>
    %659 = arith.addf %640, %658 : vector<16x16xf32>
    %c31 = arith.constant 31 : index
    %660 = memref.load %arg3[%c31] : memref<144xf32, #tpu.memory_space<smem>>
    %661 = vector.broadcast %660 : f32 to vector<16x16xf32>
    %662 = arith.mulf %661, %581 : vector<16x16xf32>
    %663 = arith.addf %647, %662 : vector<16x16xf32>
    %c67 = arith.constant 67 : index
    %664 = memref.load %arg3[%c67] : memref<144xf32, #tpu.memory_space<smem>>
    %665 = vector.broadcast %664 : f32 to vector<16x16xf32>
    %666 = arith.mulf %665, %581 : vector<16x16xf32>
    %667 = arith.addf %651, %666 : vector<16x16xf32>
    %c103 = arith.constant 103 : index
    %668 = memref.load %arg3[%c103] : memref<144xf32, #tpu.memory_space<smem>>
    %669 = vector.broadcast %668 : f32 to vector<16x16xf32>
    %670 = arith.mulf %669, %581 : vector<16x16xf32>
    %671 = arith.addf %655, %670 : vector<16x16xf32>
    %c139 = arith.constant 139 : index
    %672 = memref.load %arg3[%c139] : memref<144xf32, #tpu.memory_space<smem>>
    %673 = vector.broadcast %672 : f32 to vector<16x16xf32>
    %674 = arith.mulf %673, %581 : vector<16x16xf32>
    %675 = arith.addf %659, %674 : vector<16x16xf32>
    %c15_i32_107 = arith.constant 15 : i32
    %676 = tpu.dynamic_rotate %581 by %c15_i32_107 dim 1 : vector<16x16xf32>, i32 -> vector<16x16xf32>
    %cst_108 = arith.constant 0.000000e+00 : f32
    %677 = vector.broadcast %cst_108 : f32 to vector<16x16xf32>
    %678 = arith.select %17, %676, %677 : vector<16x16xi1>, vector<16x16xf32>
    %c32 = arith.constant 32 : index
    %679 = memref.load %arg3[%c32] : memref<144xf32, #tpu.memory_space<smem>>
    %680 = vector.broadcast %679 : f32 to vector<16x16xf32>
    %681 = arith.mulf %680, %678 : vector<16x16xf32>
    %682 = arith.addf %663, %681 : vector<16x16xf32>
    %c68 = arith.constant 68 : index
    %683 = memref.load %arg3[%c68] : memref<144xf32, #tpu.memory_space<smem>>
    %684 = vector.broadcast %683 : f32 to vector<16x16xf32>
    %685 = arith.mulf %684, %678 : vector<16x16xf32>
    %686 = arith.addf %667, %685 : vector<16x16xf32>
    %c104 = arith.constant 104 : index
    %687 = memref.load %arg3[%c104] : memref<144xf32, #tpu.memory_space<smem>>
    %688 = vector.broadcast %687 : f32 to vector<16x16xf32>
    %689 = arith.mulf %688, %678 : vector<16x16xf32>
    %690 = arith.addf %671, %689 : vector<16x16xf32>
    %c140 = arith.constant 140 : index
    %691 = memref.load %arg3[%c140] : memref<144xf32, #tpu.memory_space<smem>>
    %692 = vector.broadcast %691 : f32 to vector<16x16xf32>
    %693 = arith.mulf %692, %678 : vector<16x16xf32>
    %694 = arith.addf %675, %693 : vector<16x16xf32>
    %c15_i32_109 = arith.constant 15 : i32
    %695 = tpu.dynamic_rotate %581 by %c15_i32_109 dim 0 : vector<16x16xf32>, i32 -> vector<16x16xf32>
    %c1_i32_110 = arith.constant 1 : i32
    %696 = tpu.dynamic_rotate %695 by %c1_i32_110 dim 1 : vector<16x16xf32>, i32 -> vector<16x16xf32>
    %cst_111 = arith.constant 0.000000e+00 : f32
    %697 = vector.broadcast %cst_111 : f32 to vector<16x16xf32>
    %698 = arith.select %22, %696, %697 : vector<16x16xi1>, vector<16x16xf32>
    %c33 = arith.constant 33 : index
    %699 = memref.load %arg3[%c33] : memref<144xf32, #tpu.memory_space<smem>>
    %700 = vector.broadcast %699 : f32 to vector<16x16xf32>
    %701 = arith.mulf %700, %698 : vector<16x16xf32>
    %702 = arith.addf %682, %701 : vector<16x16xf32>
    %c69 = arith.constant 69 : index
    %703 = memref.load %arg3[%c69] : memref<144xf32, #tpu.memory_space<smem>>
    %704 = vector.broadcast %703 : f32 to vector<16x16xf32>
    %705 = arith.mulf %704, %698 : vector<16x16xf32>
    %706 = arith.addf %686, %705 : vector<16x16xf32>
    %c105 = arith.constant 105 : index
    %707 = memref.load %arg3[%c105] : memref<144xf32, #tpu.memory_space<smem>>
    %708 = vector.broadcast %707 : f32 to vector<16x16xf32>
    %709 = arith.mulf %708, %698 : vector<16x16xf32>
    %710 = arith.addf %690, %709 : vector<16x16xf32>
    %c141 = arith.constant 141 : index
    %711 = memref.load %arg3[%c141] : memref<144xf32, #tpu.memory_space<smem>>
    %712 = vector.broadcast %711 : f32 to vector<16x16xf32>
    %713 = arith.mulf %712, %698 : vector<16x16xf32>
    %714 = arith.addf %694, %713 : vector<16x16xf32>
    %c15_i32_112 = arith.constant 15 : i32
    %715 = tpu.dynamic_rotate %581 by %c15_i32_112 dim 0 : vector<16x16xf32>, i32 -> vector<16x16xf32>
    %cst_113 = arith.constant 0.000000e+00 : f32
    %716 = vector.broadcast %cst_113 : f32 to vector<16x16xf32>
    %717 = arith.select %24, %715, %716 : vector<16x16xi1>, vector<16x16xf32>
    %c34 = arith.constant 34 : index
    %718 = memref.load %arg3[%c34] : memref<144xf32, #tpu.memory_space<smem>>
    %719 = vector.broadcast %718 : f32 to vector<16x16xf32>
    %720 = arith.mulf %719, %717 : vector<16x16xf32>
    %721 = arith.addf %702, %720 : vector<16x16xf32>
    %c70 = arith.constant 70 : index
    %722 = memref.load %arg3[%c70] : memref<144xf32, #tpu.memory_space<smem>>
    %723 = vector.broadcast %722 : f32 to vector<16x16xf32>
    %724 = arith.mulf %723, %717 : vector<16x16xf32>
    %725 = arith.addf %706, %724 : vector<16x16xf32>
    %c106 = arith.constant 106 : index
    %726 = memref.load %arg3[%c106] : memref<144xf32, #tpu.memory_space<smem>>
    %727 = vector.broadcast %726 : f32 to vector<16x16xf32>
    %728 = arith.mulf %727, %717 : vector<16x16xf32>
    %729 = arith.addf %710, %728 : vector<16x16xf32>
    %c142 = arith.constant 142 : index
    %730 = memref.load %arg3[%c142] : memref<144xf32, #tpu.memory_space<smem>>
    %731 = vector.broadcast %730 : f32 to vector<16x16xf32>
    %732 = arith.mulf %731, %717 : vector<16x16xf32>
    %733 = arith.addf %714, %732 : vector<16x16xf32>
    %c15_i32_114 = arith.constant 15 : i32
    %734 = tpu.dynamic_rotate %581 by %c15_i32_114 dim 0 : vector<16x16xf32>, i32 -> vector<16x16xf32>
    %c15_i32_115 = arith.constant 15 : i32
    %735 = tpu.dynamic_rotate %734 by %c15_i32_115 dim 1 : vector<16x16xf32>, i32 -> vector<16x16xf32>
    %cst_116 = arith.constant 0.000000e+00 : f32
    %736 = vector.broadcast %cst_116 : f32 to vector<16x16xf32>
    %737 = arith.select %29, %735, %736 : vector<16x16xi1>, vector<16x16xf32>
    %c35 = arith.constant 35 : index
    %738 = memref.load %arg3[%c35] : memref<144xf32, #tpu.memory_space<smem>>
    %739 = vector.broadcast %738 : f32 to vector<16x16xf32>
    %740 = arith.mulf %739, %737 : vector<16x16xf32>
    %741 = arith.addf %721, %740 : vector<16x16xf32>
    %c71 = arith.constant 71 : index
    %742 = memref.load %arg3[%c71] : memref<144xf32, #tpu.memory_space<smem>>
    %743 = vector.broadcast %742 : f32 to vector<16x16xf32>
    %744 = arith.mulf %743, %737 : vector<16x16xf32>
    %745 = arith.addf %725, %744 : vector<16x16xf32>
    %c107 = arith.constant 107 : index
    %746 = memref.load %arg3[%c107] : memref<144xf32, #tpu.memory_space<smem>>
    %747 = vector.broadcast %746 : f32 to vector<16x16xf32>
    %748 = arith.mulf %747, %737 : vector<16x16xf32>
    %749 = arith.addf %729, %748 : vector<16x16xf32>
    %c143 = arith.constant 143 : index
    %750 = memref.load %arg3[%c143] : memref<144xf32, #tpu.memory_space<smem>>
    %751 = vector.broadcast %750 : f32 to vector<16x16xf32>
    %752 = arith.mulf %751, %737 : vector<16x16xf32>
    %753 = arith.addf %733, %752 : vector<16x16xf32>
    %c0_117 = arith.constant 0 : index
    %c0_118 = arith.constant 0 : index
    %c0_119 = arith.constant 0 : index
    %c0_120 = arith.constant 0 : index
    %754 = vector.load %arg4[%c0_117, %c0_118, %c0_119, %c0_120] : memref<1x4x16x16xf32, #tpu.memory_space<vmem>>, vector<1x1x16x16xf32>
    %755 = vector.shape_cast %754 : vector<1x1x16x16xf32> to vector<16x16xf32>
    %756 = vector.shape_cast %741 : vector<16x16xf32> to vector<1x1x16x16xf32>
    tpu.vector_store %arg4[%c0_117, %c0_118, %c0_119, %c0_120], %756 {strides = array<i32>} : memref<1x4x16x16xf32, #tpu.memory_space<vmem>>, vector<1x1x16x16xf32>,
    %cst_121 = arith.constant dense<0.000000e+00> : vector<16xf32>
    %757 = vector.multi_reduction <add>, %741, %cst_121 [1] : vector<16x16xf32> to vector<16xf32>
    %758 = vector.shape_cast %757 : vector<16xf32> to vector<16x1xf32>
    %cst_122 = arith.constant dense<0.000000e+00> : vector<1xf32>
    %759 = vector.multi_reduction <add>, %758, %cst_122 [0] : vector<16x1xf32> to vector<1xf32>
    %760 = vector.shape_cast %759 : vector<1xf32> to vector<1x1xf32>
    %761 = arith.mulf %741, %741 : vector<16x16xf32>
    %cst_123 = arith.constant dense<0.000000e+00> : vector<16xf32>
    %762 = vector.multi_reduction <add>, %761, %cst_123 [1] : vector<16x16xf32> to vector<16xf32>
    %763 = vector.shape_cast %762 : vector<16xf32> to vector<16x1xf32>
    %cst_124 = arith.constant dense<0.000000e+00> : vector<1xf32>
    %764 = vector.multi_reduction <add>, %763, %cst_124 [0] : vector<16x1xf32> to vector<1xf32>
    %765 = vector.shape_cast %764 : vector<1xf32> to vector<1x1xf32>
    %c0_125 = arith.constant 0 : index
    %c1_126 = arith.constant 1 : index
    %c0_127 = arith.constant 0 : index
    %c0_128 = arith.constant 0 : index
    %766 = vector.load %arg4[%c0_125, %c1_126, %c0_127, %c0_128] : memref<1x4x16x16xf32, #tpu.memory_space<vmem>>, vector<1x1x16x16xf32>
    %767 = vector.shape_cast %766 : vector<1x1x16x16xf32> to vector<16x16xf32>
    %768 = vector.shape_cast %745 : vector<16x16xf32> to vector<1x1x16x16xf32>
    tpu.vector_store %arg4[%c0_125, %c1_126, %c0_127, %c0_128], %768 {strides = array<i32>} : memref<1x4x16x16xf32, #tpu.memory_space<vmem>>, vector<1x1x16x16xf32>,
    %cst_129 = arith.constant dense<0.000000e+00> : vector<16xf32>
    %769 = vector.multi_reduction <add>, %745, %cst_129 [1] : vector<16x16xf32> to vector<16xf32>
    %770 = vector.shape_cast %769 : vector<16xf32> to vector<16x1xf32>
    %cst_130 = arith.constant dense<0.000000e+00> : vector<1xf32>
    %771 = vector.multi_reduction <add>, %770, %cst_130 [0] : vector<16x1xf32> to vector<1xf32>
    %772 = vector.shape_cast %771 : vector<1xf32> to vector<1x1xf32>
    %773 = arith.mulf %745, %745 : vector<16x16xf32>
    %cst_131 = arith.constant dense<0.000000e+00> : vector<16xf32>
    %774 = vector.multi_reduction <add>, %773, %cst_131 [1] : vector<16x16xf32> to vector<16xf32>
    %775 = vector.shape_cast %774 : vector<16xf32> to vector<16x1xf32>
    %cst_132 = arith.constant dense<0.000000e+00> : vector<1xf32>
    %776 = vector.multi_reduction <add>, %775, %cst_132 [0] : vector<16x1xf32> to vector<1xf32>
    %777 = vector.shape_cast %776 : vector<1xf32> to vector<1x1xf32>
    %c0_133 = arith.constant 0 : index
    %c2_134 = arith.constant 2 : index
    %c0_135 = arith.constant 0 : index
    %c0_136 = arith.constant 0 : index
    %778 = vector.load %arg4[%c0_133, %c2_134, %c0_135, %c0_136] : memref<1x4x16x16xf32, #tpu.memory_space<vmem>>, vector<1x1x16x16xf32>
    %779 = vector.shape_cast %778 : vector<1x1x16x16xf32> to vector<16x16xf32>
    %780 = vector.shape_cast %749 : vector<16x16xf32> to vector<1x1x16x16xf32>
    tpu.vector_store %arg4[%c0_133, %c2_134, %c0_135, %c0_136], %780 {strides = array<i32>} : memref<1x4x16x16xf32, #tpu.memory_space<vmem>>, vector<1x1x16x16xf32>,
    %cst_137 = arith.constant dense<0.000000e+00> : vector<16xf32>
    %781 = vector.multi_reduction <add>, %749, %cst_137 [1] : vector<16x16xf32> to vector<16xf32>
    %782 = vector.shape_cast %781 : vector<16xf32> to vector<16x1xf32>
    %cst_138 = arith.constant dense<0.000000e+00> : vector<1xf32>
    %783 = vector.multi_reduction <add>, %782, %cst_138 [0] : vector<16x1xf32> to vector<1xf32>
    %784 = vector.shape_cast %783 : vector<1xf32> to vector<1x1xf32>
    %785 = arith.mulf %749, %749 : vector<16x16xf32>
    %cst_139 = arith.constant dense<0.000000e+00> : vector<16xf32>
    %786 = vector.multi_reduction <add>, %785, %cst_139 [1] : vector<16x16xf32> to vector<16xf32>
    %787 = vector.shape_cast %786 : vector<16xf32> to vector<16x1xf32>
    %cst_140 = arith.constant dense<0.000000e+00> : vector<1xf32>
    %788 = vector.multi_reduction <add>, %787, %cst_140 [0] : vector<16x1xf32> to vector<1xf32>
    %789 = vector.shape_cast %788 : vector<1xf32> to vector<1x1xf32>
    %c0_141 = arith.constant 0 : index
    %c3_142 = arith.constant 3 : index
    %c0_143 = arith.constant 0 : index
    %c0_144 = arith.constant 0 : index
    %790 = vector.load %arg4[%c0_141, %c3_142, %c0_143, %c0_144] : memref<1x4x16x16xf32, #tpu.memory_space<vmem>>, vector<1x1x16x16xf32>
    %791 = vector.shape_cast %790 : vector<1x1x16x16xf32> to vector<16x16xf32>
    %792 = vector.shape_cast %753 : vector<16x16xf32> to vector<1x1x16x16xf32>
    tpu.vector_store %arg4[%c0_141, %c3_142, %c0_143, %c0_144], %792 {strides = array<i32>} : memref<1x4x16x16xf32, #tpu.memory_space<vmem>>, vector<1x1x16x16xf32>,
    %cst_145 = arith.constant dense<0.000000e+00> : vector<16xf32>
    %793 = vector.multi_reduction <add>, %753, %cst_145 [1] : vector<16x16xf32> to vector<16xf32>
    %794 = vector.shape_cast %793 : vector<16xf32> to vector<16x1xf32>
    %cst_146 = arith.constant dense<0.000000e+00> : vector<1xf32>
    %795 = vector.multi_reduction <add>, %794, %cst_146 [0] : vector<16x1xf32> to vector<1xf32>
    %796 = vector.shape_cast %795 : vector<1xf32> to vector<1x1xf32>
    %797 = arith.mulf %753, %753 : vector<16x16xf32>
    %cst_147 = arith.constant dense<0.000000e+00> : vector<16xf32>
    %798 = vector.multi_reduction <add>, %797, %cst_147 [1] : vector<16x16xf32> to vector<16xf32>
    %799 = vector.shape_cast %798 : vector<16xf32> to vector<16x1xf32>
    %cst_148 = arith.constant dense<0.000000e+00> : vector<1xf32>
    %800 = vector.multi_reduction <add>, %799, %cst_148 [0] : vector<16x1xf32> to vector<1xf32>
    %801 = vector.shape_cast %800 : vector<1xf32> to vector<1x1xf32>
    %802 = tpu.concatenate %760, %765 in 1 : vector<1x1xf32>, vector<1x1xf32> -> vector<1x2xf32>
    %803 = tpu.concatenate %772, %777 in 1 : vector<1x1xf32>, vector<1x1xf32> -> vector<1x2xf32>
    %804 = tpu.concatenate %784, %789 in 1 : vector<1x1xf32>, vector<1x1xf32> -> vector<1x2xf32>
    %805 = tpu.concatenate %796, %801 in 1 : vector<1x1xf32>, vector<1x1xf32> -> vector<1x2xf32>
    %806 = tpu.concatenate %802, %803, %804, %805 in 0 : vector<1x2xf32>, vector<1x2xf32>, vector<1x2xf32>, vector<1x2xf32> -> vector<4x2xf32>
    %c0_149 = arith.constant 0 : index
    %c0_150 = arith.constant 0 : index
    %c0_151 = arith.constant 0 : index
    %807 = vector.load %arg5[%c0_149, %c0_150, %c0_151] : memref<1x4x2xf32, #tpu.memory_space<vmem>>, vector<1x4x2xf32>
    %808 = vector.shape_cast %807 : vector<1x4x2xf32> to vector<4x2xf32>
    %809 = vector.shape_cast %806 : vector<4x2xf32> to vector<1x4x2xf32>
    tpu.vector_store %arg5[%c0_149, %c0_150, %c0_151], %809 {strides = array<i32>} : memref<1x4x2xf32, #tpu.memory_space<vmem>>, vector<1x4x2xf32>,
    return
  }
  func.func @transform_0(%arg0: i32) -> (i32, i32, i32, i32) {
    %c0_i32 = arith.constant 0 : i32
    %c0_i32_0 = arith.constant 0 : i32
    %c0_i32_1 = arith.constant 0 : i32
    %c0_i32_2 = arith.constant 0 : i32
    return %arg0, %c0_i32, %c0_i32_0, %c0_i32_1 : i32, i32, i32, i32
  }
  func.func @transform_1(%arg0: i32) -> i32 {
    %c0_i32 = arith.constant 0 : i32
    %c0_i32_0 = arith.constant 0 : i32
    return %c0_i32 : i32
  }
  func.func @transform_2(%arg0: i32) -> i32 {
    %c0_i32 = arith.constant 0 : i32
    %c0_i32_0 = arith.constant 0 : i32
    return %c0_i32 : i32
  }
  func.func @transform_3(%arg0: i32) -> (i32, i32, i32, i32) {
    %c0_i32 = arith.constant 0 : i32
    %c0_i32_0 = arith.constant 0 : i32
    %c0_i32_1 = arith.constant 0 : i32
    %c0_i32_2 = arith.constant 0 : i32
    return %arg0, %c0_i32, %c0_i32_0, %c0_i32_1 : i32, i32, i32, i32
  }
  func.func @transform_4(%arg0: i32) -> (i32, i32, i32) {
    %c0_i32 = arith.constant 0 : i32
    %c0_i32_0 = arith.constant 0 : i32
    %c0_i32_1 = arith.constant 0 : i32
    return %arg0, %c0_i32, %c0_i32_0 : i32, i32, i32
  }
}

</mosaic_0001>

<llo_original>
// kernel: resblock_forward.5
$region0: #{resblock_forward.5}
  #allocation0 [shape = 'u32[]', space=smem, size = 0x4, offset = 0x4, fixed_abs, tag = 'smem constant byte address 0x4 - core index']
  #allocation1 [shape = 'u32[72,128]{1,0:T(1,128)}', space=vmem, size = 0x9000, scoped, tag = 'internal scratch']
  %s0 = inlined_call_operand.vmem [shape: f32[2,4,256], index: 0, kind: input, shape index: {}, may-alias: {0,3}]
  %s1 = inlined_call_operand.vmem [shape: f32[2,4,256], index: 1, kind: input, shape index: {}]
  %s2 = inlined_call_operand.vmem [shape: f32[8], index: 2, kind: input, shape index: {}]
  %s3 = inlined_call_operand.vmem [shape: f32[2,4,256], index: 3, kind: output, shape index: {}, may-alias: {0,3}]
  %s4 = sld [smem:[#allocation0]]
  $region49: #{resblock_forward.5} parent=0
    _
  %s6 = ssub.s32 1, %s4
  %s7 = scalar_select 0, %s6, %s4
  $region1: #{resblock_forward.5} parent=0
    #allocation2 [shape = 'u8[512]{0}', space=smem, size = 0x200, scoped, tag = 'input window, operand 2, single buffered']
    #allocation3 [shape = 's32[2]{0}', space=sflag, size = 0x8, scoped, tag = 'scoped memory for resblock_forward.5']
    %8 = vsyncpa [#allocation3], 0
    loop: start=0, step=1, limit=4
    $region2: #{resblock_forward.5} parent=1 // loop_pre_header
      _
    $region3: #{resblock_forward.5} parent=1 // loop_header
      %s10 = sphi 0, %s14
      %p11 = scmp.ge.s32.totalorder %s10, 4
      %s20 = sphi 0, %s22
      %s23 = sphi 0, %s20
      %s24 = sphi 0, %s23
      %s40 = sphi 0, %s24
      %s46 = sphi 0, %s48
      %s49 = sphi 0, %s46
      %s50 = sphi 0, %s49
      %s66 = sphi 0, %s50
      %s70 = sphi 0, %s70
      %s72 = sphi 0, %s70
      %s73 = sphi 0, %s72
      %s87 = sphi 0, %s73
      %s93 = sphi 0, %s95
      %s96 = sphi 0, %s93
      %s97 = sphi 0, %s96
      %s113 = sphi 0, %s97
    $region4: #{resblock_forward.5} parent=1 // loop_header_branch
      %13 = sbr.rel (%p11) target = $region8
    $region5: #{resblock_forward.5} parent=1 // loop_body
      %s15 = ssub.s32 %s10, 1
      %s16 = ssub.s32 %s10, 2
      %s17 = sadd.s32 %s10, 1
      %s18 = ssub.s32 %s10, %s17
      %p19 = scmp.eq.s32.totalorder %s18, 0
      %s21 = sadd.s32 %s20, 1
      %s22 = scalar_select %p19, %s20, %s21
      %p25 = pneg %p19
      %p26 = scmp.eq.s32.totalorder %s10, 1
      %p27 = por %p25, %p26
      %p28 = scmp.ne.s32.totalorder %s20, %s23
      %p29 = scmp.eq.s32.totalorder %s10, 0
      %p30 = por %p28, %p29
      %p31 = scmp.ne.s32.totalorder %s20, %s23
      %p32 = scmp.eq.s32.totalorder %s15, 1
      %p33 = por %p31, %p32
      %p34 = scmp.ne.s32.totalorder %s23, %s24
      %p35 = scmp.eq.s32.totalorder %s15, 0
      %p36 = por %p34, %p35
      %p37 = scmp.ne.s32.totalorder %s23, %s24
      %p38 = scmp.eq.s32.totalorder %s16, 1
      %p39 = por %p37, %p38
      %p41 = scmp.ne.s32.totalorder %s24, %s40
      %p42 = scmp.eq.s32.totalorder %s16, 0
      %p43 = por %p41, %p42
      %s44 = ssub.s32 %s10, %s17
      %p45 = scmp.eq.s32.totalorder %s44, 0
      %s47 = sadd.s32 %s46, 1
      %s48 = scalar_select %p45, %s46, %s47
      %p51 = pneg %p45
      %p52 = scmp.eq.s32.totalorder %s10, 1
      %p53 = por %p51, %p52
      %p54 = scmp.ne.s32.totalorder %s46, %s49
      %p55 = scmp.eq.s32.totalorder %s10, 0
      %p56 = por %p54, %p55
      %p57 = scmp.ne.s32.totalorder %s46, %s49
      %p58 = scmp.eq.s32.totalorder %s15, 1
      %p59 = por %p57, %p58
      %p60 = scmp.ne.s32.totalorder %s49, %s50
      %p61 = scmp.eq.s32.totalorder %s15, 0
      %p62 = por %p60, %p61
      %p63 = scmp.ne.s32.totalorder %s49, %s50
      %p64 = scmp.eq.s32.totalorder %s16, 1
      %p65 = por %p63, %p64
      %p67 = scmp.ne.s32.totalorder %s50, %s66
      %p68 = scmp.eq.s32.totalorder %s16, 0
      %p69 = por %p67, %p68
      %s71 = sadd.s32 %s70, 1
      %p74 = scmp.eq.s32.totalorder %s10, 1
      %p75 = scmp.ne.s32.totalorder %s70, %s72
      %p76 = scmp.eq.s32.totalorder %s10, 0
      %p77 = por %p75, %p76
      %p78 = scmp.ne.s32.totalorder %s70, %s72
      %p79 = scmp.eq.s32.totalorder %s15, 1
      %p80 = por %p78, %p79
      %p81 = scmp.ne.s32.totalorder %s72, %s73
      %p82 = scmp.eq.s32.totalorder %s15, 0
      %p83 = por %p81, %p82
      %p84 = scmp.ne.s32.totalorder %s72, %s73
      %p85 = scmp.eq.s32.totalorder %s16, 1
      %p86 = por %p84, %p85
      %p88 = scmp.ne.s32.totalorder %s73, %s87
      %p89 = scmp.eq.s32.totalorder %s16, 0
      %p90 = por %p88, %p89
      %s91 = ssub.s32 %s10, %s17
      %p92 = scmp.eq.s32.totalorder %s91, 0
      %s94 = sadd.s32 %s93, 1
      %s95 = scalar_select %p92, %s93, %s94
      %p98 = pneg %p92
      %p99 = scmp.eq.s32.totalorder %s10, 1
      %p100 = por %p98, %p99
      %p101 = scmp.ne.s32.totalorder %s93, %s96
      %p102 = scmp.eq.s32.totalorder %s10, 0
      %p103 = por %p101, %p102
      %p104 = scmp.ne.s32.totalorder %s93, %s96
      %p105 = scmp.eq.s32.totalorder %s15, 1
      %p106 = por %p104, %p105
      %p107 = scmp.ne.s32.totalorder %s96, %s97
      %p108 = scmp.eq.s32.totalorder %s15, 0
      %p109 = por %p107, %p108
      %p110 = scmp.ne.s32.totalorder %s96, %s97
      %p111 = scmp.eq.s32.totalorder %s16, 1
      %p112 = por %p110, %p111
      %p114 = scmp.ne.s32.totalorder %s97, %s113
      %p115 = scmp.eq.s32.totalorder %s16, 0
      %p116 = por %p114, %p115
      %p117 = scmp.le.s32.totalorder 1, %s10
      %p118 = scmp.lt.s32.totalorder %s10, 3
      %p119 = pnand %p117, %p118
      %p120 = pneg %p119
      // Predicated region
      $region9: #{resblock_forward.5} parent=5 // pred_check
        _
      $region10: #{resblock_forward.5} parent=5 // pred_check_branch
        %122 = sbr.rel (%p119) target = $region12
      $region11: #{resblock_forward.5} parent=5 // pred_region
        %s123 = ssub.s32 %s10, 1
        // Predicated region
        $region13: #{resblock_forward.5} parent=11 // pred_check
          %p124 = pneg %p83
        $region14: #{resblock_forward.5} parent=11 // pred_check_branch
          %126 = sbr.rel (%p124) target = $region16
        $region15: #{resblock_forward.5} parent=11 // pred_region
          %128 = vsyncadd [#allocation3], 0
          %s130 = sshll.u32 %s2, 4
          %s131 = int_to_ptr.vmem [resolvable:$true] %s130
          %133 = dma.vmem_to_smem %s131, 16, [#allocation2], [#allocation3]
        $region16: #{resblock_forward.5} parent=11 // pred_fallthru
          _
      $region12: #{resblock_forward.5} parent=5 // pred_fallthru
        _
      %p134 = scmp.lt.s32.totalorder %s10, 2
      // Predicated region
      $region17: #{resblock_forward.5} parent=5 // pred_check
        %p135 = pneg %p134
      $region18: #{resblock_forward.5} parent=5 // pred_check_branch
        %137 = sbr.rel (%p135) target = $region20
      $region19: #{resblock_forward.5} parent=5 // pred_region
        // Predicated region
        $region21: #{resblock_forward.5} parent=19 // pred_check
          %p138 = pneg %p30
        $region22: #{resblock_forward.5} parent=19 // pred_check_branch
          %140 = sbr.rel (%p138) target = $region24
        $region23: #{resblock_forward.5} parent=19 // pred_region
          %p141 = scmp.lt.s32.totalorder %s10, 1
          %s142 = scalar_select %p141, %s10, 1
          %s143 = smul.addr %s142, 2
          %s144 = smul.addr %s143, 4
          %s145 = scalar_lea.vmem %s0, %s144
        $region24: #{resblock_forward.5} parent=19 // pred_fallthru
          _
        // Predicated region
        $region25: #{resblock_forward.5} parent=19 // pred_check
          %p146 = pneg %p56
        $region26: #{resblock_forward.5} parent=19 // pred_check_branch
          %148 = sbr.rel (%p146) target = $region28
        $region27: #{resblock_forward.5} parent=19 // pred_region
          %p149 = scmp.lt.s32.totalorder %s10, 1
          %s150 = scalar_select %p149, %s10, 1
          %s151 = smul.addr %s150, 2
          %s152 = smul.addr %s151, 4
          %s153 = scalar_lea.vmem %s1, %s152
        $region28: #{resblock_forward.5} parent=19 // pred_fallthru
          _
      $region20: #{resblock_forward.5} parent=5 // pred_fallthru
        _
      %p154 = scmp.le.s32.totalorder 1, %s10
      %p155 = scmp.lt.s32.totalorder %s10, 3
      %p156 = pnand %p154, %p155
      %p157 = pneg %p156
      // Predicated region
      $region29: #{resblock_forward.5} parent=5 // pred_check
        _
      $region30: #{resblock_forward.5} parent=5 // pred_check_branch
        %159 = sbr.rel (%p156) target = $region32
      $region31: #{resblock_forward.5} parent=5 // pred_region
        %s160 = ssub.s32 %s10, 1
        // Predicated region
        $region33: #{resblock_forward.5} parent=31 // pred_check
          %p161 = pneg %p83
        $region34: #{resblock_forward.5} parent=31 // pred_check_branch
          %163 = sbr.rel (%p161) target = $region36
        $region35: #{resblock_forward.5} parent=31 // pred_region
          %165 = dma.done [#allocation3], 16
        $region36: #{resblock_forward.5} parent=31 // pred_fallthru
          _
        %166 = sfence
        %p167 = scmp.lt.s32.totalorder %s15, 1
        %s168 = scalar_select %p167, %s15, 1
        %s169 = smul.addr %s168, 2
        %s170 = smul.addr %s169, 4
        %s171 = scalar_lea.vmem %s0, %s170
        %p172 = pneg %p36
        %p173 = pneg %p33
        %p174 = scmp.lt.s32.totalorder %s15, 1
        %s175 = scalar_select %p174, %s15, 1
        %s176 = smul.addr %s175, 2
        %s177 = smul.addr %s176, 4
        %s178 = scalar_lea.vmem %s1, %s177
        %p179 = pneg %p62
        %p180 = pneg %p59
        %p181 = pneg %p83
        %p182 = pneg %p80
        %p183 = pneg %p109
        %p184 = pneg %p106
        %p185 = scmp.lt.s32.totalorder %s15, 1
        %s186 = scalar_select %p185, %s15, 1
        %s187 = smul.addr %s186, 2
        %s188 = smul.addr %s187, 4
        %s189 = scalar_lea.vmem %s3, %s188
        %p190 = scmp.lt.s32.totalorder %s15, 1
        %s191 = scalar_select %p190, %s15, 1
        %s192 = smul.addr %s191, 2
        %s193 = smul.addr %s192, 4
        %s194 = scalar_lea.vmem %s0, %s193
        %p195 = scmp.lt.s32.totalorder %s15, 1
        %s196 = scalar_select %p195, %s15, 1
        %s197 = smul.addr %s196, 2
        %s198 = smul.addr %s197, 4
        %s199 = scalar_lea.vmem %s1, %s198
        %p200 = scmp.lt.s32.totalorder %s15, 1
        %s201 = scalar_select %p200, %s15, 1
        %s202 = smul.addr %s201, 2
        %s203 = smul.addr %s202, 4
        %s204 = scalar_lea.vmem %s3, %s203
        %v205 = vld [vmem:[%s194] ss:$4 sm:$0x3]
        %s206 = sld [smem:[#allocation2]]
        %v207 = vstv %s206
        %v208 = vmul.f32 %v205, %v207
        %s209 = sld [smem:[#allocation2 + $0x4]]
        %v210 = vstv %s209
        %v211 = vadd.f32 %v208, %v210
        %v212 = vld [vmem:[%s199] ss:$4 sm:$0x3]
        %v213 = vadd.f32 %v211, %v212
        %v214 = vmax.f32 %v213, 0.0
        %v215 = vlaneseq
        %vm216 = vcmp.ge.s32.totalorder %v215, 0
        %vm217 = vcmp.lt.s32.totalorder %v215, 256
        %vm218 = vmand %vm216, %vm217
        %219 = vst.msk [vmem:[%s204] ss:$4 sm:$0x3] %vm218, %v214
        %s220 = scalar_lea.vmem %s194, 1
        %v221 = vld [vmem:[%s220] ss:$4 sm:$0x3]
        %s222 = sld [smem:[#allocation2 + $0x1]]
        %v223 = vstv %s222
        %v224 = vmul.f32 %v221, %v223
        %s225 = sld [smem:[#allocation2 + $0x5]]
        %v226 = vstv %s225
        %v227 = vadd.f32 %v224, %v226
        %s228 = scalar_lea.vmem %s199, 1
        %v229 = vld [vmem:[%s228] ss:$4 sm:$0x3]
        %v230 = vadd.f32 %v227, %v229
        %v231 = vmax.f32 %v230, 0.0
        %s232 = scalar_lea.vmem %s204, 1
        %233 = vst.msk [vmem:[%s232] ss:$4 sm:$0x3] %vm218, %v231
        %s234 = scalar_lea.vmem %s194, 2
        %v235 = vld [vmem:[%s234] ss:$4 sm:$0x3]
        %s236 = sld [smem:[#allocation2 + $0x2]]
        %v237 = vstv %s236
        %v238 = vmul.f32 %v235, %v237
        %s239 = sld [smem:[#allocation2 + $0x6]]
        %v240 = vstv %s239
        %v241 = vadd.f32 %v238, %v240
        %s242 = scalar_lea.vmem %s199, 2
        %v243 = vld [vmem:[%s242] ss:$4 sm:$0x3]
        %v244 = vadd.f32 %v241, %v243
        %v245 = vmax.f32 %v244, 0.0
        %s246 = scalar_lea.vmem %s204, 2
        %247 = vst.msk [vmem:[%s246] ss:$4 sm:$0x3] %vm218, %v245
        %s248 = scalar_lea.vmem %s194, 3
        %v249 = vld [vmem:[%s248] ss:$4 sm:$0x3]
        %s250 = sld [smem:[#allocation2 + $0x3]]
        %v251 = vstv %s250
        %v252 = vmul.f32 %v249, %v251
        %s253 = sld [smem:[#allocation2 + $0x7]]
        %v254 = vstv %s253
        %v255 = vadd.f32 %v252, %v254
        %s256 = scalar_lea.vmem %s199, 3
        %v257 = vld [vmem:[%s256] ss:$4 sm:$0x3]
        %v258 = vadd.f32 %v255, %v257
        %v259 = vmax.f32 %v258, 0.0
        %s260 = scalar_lea.vmem %s204, 3
        %261 = vst.msk [vmem:[%s260] ss:$4 sm:$0x3] %vm218, %v259
        %p262 = scmp.lt.s32.totalorder %s15, 1
        %s263 = scalar_select %p262, %s15, 1
        %s264 = smul.addr %s263, 2
        %s265 = smul.addr %s264, 4
        %s266 = scalar_lea.vmem %s3, %s265
        // Predicated region
        $region37: #{resblock_forward.5} parent=31 // pred_check
          %p267 = pneg %p106
        $region38: #{resblock_forward.5} parent=31 // pred_check_branch
          %269 = sbr.rel (%p267) target = $region40
        $region39: #{resblock_forward.5} parent=31 // pred_region
          _
        $region40: #{resblock_forward.5} parent=31 // pred_fallthru
          _
      $region32: #{resblock_forward.5} parent=5 // pred_fallthru
        _
      %p270 = scmp.le.s32.totalorder 2, %s10
      // Predicated region
      $region41: #{resblock_forward.5} parent=5 // pred_check
        %p271 = pneg %p270
      $region42: #{resblock_forward.5} parent=5 // pred_check_branch
        %273 = sbr.rel (%p271) target = $region44
      $region43: #{resblock_forward.5} parent=5 // pred_region
        %s274 = ssub.s32 %s10, 2
        // Predicated region
        $region45: #{resblock_forward.5} parent=43 // pred_check
          %p275 = pneg %p112
        $region46: #{resblock_forward.5} parent=43 // pred_check_branch
          %277 = sbr.rel (%p275) target = $region48
        $region47: #{resblock_forward.5} parent=43 // pred_region
          %p278 = scmp.lt.s32.totalorder %s16, 1
          %s279 = scalar_select %p278, %s16, 1
          %s280 = smul.addr %s279, 2
          %s281 = smul.addr %s280, 4
          %s282 = scalar_lea.vmem %s3, %s281
        $region48: #{resblock_forward.5} parent=43 // pred_fallthru
          _
      $region44: #{resblock_forward.5} parent=5 // pred_fallthru
        _
    $region6: #{resblock_forward.5} parent=1 // loop_footer
      %s14 = sadd.s32 1, %s10
    $region7: #{resblock_forward.5} parent=1 // loop_footer_branch
      %9 = sbr.rel target = $region3
    $region8: #{resblock_forward.5} parent=1 // loop_exit
      _
    %283 = vsyncpa [#allocation3], 1
    %s284 = scalar_lea.sflag [#allocation3], 1
    %285 = vsyncpa %s284, 1

// kernel: resblock_forward.3
$region0: #{resblock_forward.3}
  #allocation0 [shape = 'u32[]', space=smem, size = 0x4, offset = 0x4, fixed_abs, tag = 'smem constant byte address 0x4 - core index']
  #allocation1 [shape = 'u32[72,128]{1,0:T(1,128)}', space=vmem, size = 0x9000, scoped, tag = 'internal scratch']
  %s0 = inlined_call_operand.vmem [shape: f32[2,4,16,16], index: 0, kind: input, shape index: {}]
  %s1 = inlined_call_operand.vmem [shape: f32[144], index: 1, kind: input, shape index: {}]
  %s2 = inlined_call_operand.vmem [shape: f32[2,4,16,16], index: 2, kind: output, shape index: {0}]
  %s3 = inlined_call_operand.vmem [shape: f32[2,4,2], index: 3, kind: output, shape index: {1}]
  %4 = xla_tuple %s2, %s3
  %s5 = sld [smem:[#allocation0]]
  $region53: #{resblock_forward.3} parent=0
    _
  %s7 = ssub.s32 1, %s5
  %s8 = scalar_select 0, %s7, %s5
  $region1: #{resblock_forward.3} parent=0
    #allocation2 [shape = 'u8[1024]{0}', space=smem, size = 0x400, scoped, tag = 'input window, operand 1, single buffered']
    #allocation3 [shape = 's32[2]{0}', space=sflag, size = 0x8, scoped, tag = 'scoped memory for resblock_forward.3']
    %9 = vsyncpa [#allocation3], 0
    loop: start=0, step=1, limit=4
    $region2: #{resblock_forward.3} parent=1 // loop_pre_header
      _
    $region3: #{resblock_forward.3} parent=1 // loop_header
      %s11 = sphi 0, %s15
      %p12 = scmp.ge.s32.totalorder %s11, 4
      %s21 = sphi 0, %s23
      %s24 = sphi 0, %s21
      %s25 = sphi 0, %s24
      %s41 = sphi 0, %s25
      %s45 = sphi 0, %s45
      %s47 = sphi 0, %s45
      %s48 = sphi 0, %s47
      %s62 = sphi 0, %s48
      %s68 = sphi 0, %s70
      %s71 = sphi 0, %s68
      %s72 = sphi 0, %s71
      %s88 = sphi 0, %s72
      %s94 = sphi 0, %s96
      %s97 = sphi 0, %s94
      %s98 = sphi 0, %s97
      %s114 = sphi 0, %s98
    $region4: #{resblock_forward.3} parent=1 // loop_header_branch
      %14 = sbr.rel (%p12) target = $region8
    $region5: #{resblock_forward.3} parent=1 // loop_body
      %s16 = ssub.s32 %s11, 1
      %s17 = ssub.s32 %s11, 2
      %s18 = sadd.s32 %s11, 1
      %s19 = ssub.s32 %s11, %s18
      %p20 = scmp.eq.s32.totalorder %s19, 0
      %s22 = sadd.s32 %s21, 1
      %s23 = scalar_select %p20, %s21, %s22
      %p26 = pneg %p20
      %p27 = scmp.eq.s32.totalorder %s11, 1
      %p28 = por %p26, %p27
      %p29 = scmp.ne.s32.totalorder %s21, %s24
      %p30 = scmp.eq.s32.totalorder %s11, 0
      %p31 = por %p29, %p30
      %p32 = scmp.ne.s32.totalorder %s21, %s24
      %p33 = scmp.eq.s32.totalorder %s16, 1
      %p34 = por %p32, %p33
      %p35 = scmp.ne.s32.totalorder %s24, %s25
      %p36 = scmp.eq.s32.totalorder %s16, 0
      %p37 = por %p35, %p36
      %p38 = scmp.ne.s32.totalorder %s24, %s25
      %p39 = scmp.eq.s32.totalorder %s17, 1
      %p40 = por %p38, %p39
      %p42 = scmp.ne.s32.totalorder %s25, %s41
      %p43 = scmp.eq.s32.totalorder %s17, 0
      %p44 = por %p42, %p43
      %s46 = sadd.s32 %s45, 1
      %p49 = scmp.eq.s32.totalorder %s11, 1
      %p50 = scmp.ne.s32.totalorder %s45, %s47
      %p51 = scmp.eq.s32.totalorder %s11, 0
      %p52 = por %p50, %p51
      %p53 = scmp.ne.s32.totalorder %s45, %s47
      %p54 = scmp.eq.s32.totalorder %s16, 1
      %p55 = por %p53, %p54
      %p56 = scmp.ne.s32.totalorder %s47, %s48
      %p57 = scmp.eq.s32.totalorder %s16, 0
      %p58 = por %p56, %p57
      %p59 = scmp.ne.s32.totalorder %s47, %s48
      %p60 = scmp.eq.s32.totalorder %s17, 1
      %p61 = por %p59, %p60
      %p63 = scmp.ne.s32.totalorder %s48, %s62
      %p64 = scmp.eq.s32.totalorder %s17, 0
      %p65 = por %p63, %p64
      %s66 = ssub.s32 %s11, %s18
      %p67 = scmp.eq.s32.totalorder %s66, 0
      %s69 = sadd.s32 %s68, 1
      %s70 = scalar_select %p67, %s68, %s69
      %p73 = pneg %p67
      %p74 = scmp.eq.s32.totalorder %s11, 1
      %p75 = por %p73, %p74
      %p76 = scmp.ne.s32.totalorder %s68, %s71
      %p77 = scmp.eq.s32.totalorder %s11, 0
      %p78 = por %p76, %p77
      %p79 = scmp.ne.s32.totalorder %s68, %s71
      %p80 = scmp.eq.s32.totalorder %s16, 1
      %p81 = por %p79, %p80
      %p82 = scmp.ne.s32.totalorder %s71, %s72
      %p83 = scmp.eq.s32.totalorder %s16, 0
      %p84 = por %p82, %p83
      %p85 = scmp.ne.s32.totalorder %s71, %s72
      %p86 = scmp.eq.s32.totalorder %s17, 1
      %p87 = por %p85, %p86
      %p89 = scmp.ne.s32.totalorder %s72, %s88
      %p90 = scmp.eq.s32.totalorder %s17, 0
      %p91 = por %p89, %p90
      %s92 = ssub.s32 %s11, %s18
      %p93 = scmp.eq.s32.totalorder %s92, 0
      %s95 = sadd.s32 %s94, 1
      %s96 = scalar_select %p93, %s94, %s95
      %p99 = pneg %p93
      %p100 = scmp.eq.s32.totalorder %s11, 1
      %p101 = por %p99, %p100
      %p102 = scmp.ne.s32.totalorder %s94, %s97
      %p103 = scmp.eq.s32.totalorder %s11, 0
      %p104 = por %p102, %p103
      %p105 = scmp.ne.s32.totalorder %s94, %s97
      %p106 = scmp.eq.s32.totalorder %s16, 1
      %p107 = por %p105, %p106
      %p108 = scmp.ne.s32.totalorder %s97, %s98
      %p109 = scmp.eq.s32.totalorder %s16, 0
      %p110 = por %p108, %p109
      %p111 = scmp.ne.s32.totalorder %s97, %s98
      %p112 = scmp.eq.s32.totalorder %s17, 1
      %p113 = por %p111, %p112
      %p115 = scmp.ne.s32.totalorder %s98, %s114
      %p116 = scmp.eq.s32.totalorder %s17, 0
      %p117 = por %p115, %p116
      %p118 = scmp.le.s32.totalorder 1, %s11
      %p119 = scmp.lt.s32.totalorder %s11, 3
      %p120 = pnand %p118, %p119
      %p121 = pneg %p120
      // Predicated region
      $region9: #{resblock_forward.3} parent=5 // pred_check
        _
      $region10: #{resblock_forward.3} parent=5 // pred_check_branch
        %123 = sbr.rel (%p120) target = $region12
      $region11: #{resblock_forward.3} parent=5 // pred_region
        %s124 = ssub.s32 %s11, 1
        // Predicated region
        $region13: #{resblock_forward.3} parent=11 // pred_check
          %p125 = pneg %p58
        $region14: #{resblock_forward.3} parent=11 // pred_check_branch
          %127 = sbr.rel (%p125) target = $region16
        $region15: #{resblock_forward.3} parent=11 // pred_region
          %129 = vsyncadd [#allocation3], 0
          %s131 = sshll.u32 %s1, 4
          %s132 = int_to_ptr.vmem [resolvable:$true] %s131
          %134 = dma.vmem_to_smem %s132, 32, [#allocation2], [#allocation3]
        $region16: #{resblock_forward.3} parent=11 // pred_fallthru
          _
      $region12: #{resblock_forward.3} parent=5 // pred_fallthru
        _
      %p135 = scmp.lt.s32.totalorder %s11, 2
      // Predicated region
      $region17: #{resblock_forward.3} parent=5 // pred_check
        %p136 = pneg %p135
      $region18: #{resblock_forward.3} parent=5 // pred_check_branch
        %138 = sbr.rel (%p136) target = $region20
      $region19: #{resblock_forward.3} parent=5 // pred_region
        // Predicated region
        $region21: #{resblock_forward.3} parent=19 // pred_check
          %p139 = pneg %p31
        $region22: #{resblock_forward.3} parent=19 // pred_check_branch
          %141 = sbr.rel (%p139) target = $region24
        $region23: #{resblock_forward.3} parent=19 // pred_region
          %p142 = scmp.lt.s32.totalorder %s11, 1
          %s143 = scalar_select %p142, %s11, 1
          %s144 = smul.addr %s143, 8
          %s145 = smul.addr %s144, 8
          %s146 = scalar_lea.vmem %s0, %s145
        $region24: #{resblock_forward.3} parent=19 // pred_fallthru
          _
      $region20: #{resblock_forward.3} parent=5 // pred_fallthru
        _
      %p147 = scmp.le.s32.totalorder 1, %s11
      %p148 = scmp.lt.s32.totalorder %s11, 3
      %p149 = pnand %p147, %p148
      %p150 = pneg %p149
      // Predicated region
      $region25: #{resblock_forward.3} parent=5 // pred_check
        _
      $region26: #{resblock_forward.3} parent=5 // pred_check_branch
        %152 = sbr.rel (%p149) target = $region28
      $region27: #{resblock_forward.3} parent=5 // pred_region
        %s153 = ssub.s32 %s11, 1
        // Predicated region
        $region29: #{resblock_forward.3} parent=27 // pred_check
          %p154 = pneg %p58
        $region30: #{resblock_forward.3} parent=27 // pred_check_branch
          %156 = sbr.rel (%p154) target = $region32
        $region31: #{resblock_forward.3} parent=27 // pred_region
          %158 = dma.done [#allocation3], 32
        $region32: #{resblock_forward.3} parent=27 // pred_fallthru
          _
        %159 = sfence
        %p160 = scmp.lt.s32.totalorder %s16, 1
        %s161 = scalar_select %p160, %s16, 1
        %s162 = smul.addr %s161, 8
        %s163 = smul.addr %s162, 8
        %s164 = scalar_lea.vmem %s0, %s163
        %p165 = pneg %p37
        %p166 = pneg %p34
        %p167 = pneg %p58
        %p168 = pneg %p55
        %p169 = pneg %p84
        %p170 = pneg %p81
        %p171 = scmp.lt.s32.totalorder %s16, 1
        %s172 = scalar_select %p171, %s16, 1
        %s173 = smul.addr %s172, 8
        %s174 = smul.addr %s173, 8
        %s175 = scalar_lea.vmem %s2, %s174
        %p176 = pneg %p110
        %p177 = pneg %p107
        %p178 = scmp.lt.s32.totalorder %s16, 1
        %s179 = scalar_select %p178, %s16, 1
        %s180 = smul.addr %s179, 4
        %s181 = scalar_lea.vmem %s3, %s180
        %p182 = scmp.lt.s32.totalorder %s16, 1
        %s183 = scalar_select %p182, %s16, 1
        %s184 = smul.addr %s183, 8
        %s185 = smul.addr %s184, 8
        %s186 = scalar_lea.vmem %s0, %s185
        %p187 = scmp.lt.s32.totalorder %s16, 1
        %s188 = scalar_select %p187, %s16, 1
        %s189 = smul.addr %s188, 8
        %s190 = smul.addr %s189, 8
        %s191 = scalar_lea.vmem %s2, %s190
        %p192 = scmp.lt.s32.totalorder %s16, 1
        %s193 = scalar_select %p192, %s16, 1
        %s194 = smul.addr %s193, 4
        %s195 = scalar_lea.vmem %s3, %s194
        %v196 = vlaneseq
        %v197 = vshrl.u32 %v196, 7
        %v198 = vadd.s32 %v197, 8
        %v199 = vlaneseq
        %v200 = vand.u32 %v199, 127
        %vm201 = vcmp.ge.s32.totalorder %v197, 1
        %vm202 = vcmp.ge.s32.totalorder %v198, 1
        %vm203 = vcmp.ge.s32.totalorder %v200, 1
        %vm204 = vmand %vm201, %vm203
        %vm205 = vmand %vm202, %vm203
        %vm206 = vcmp.lt.s32.totalorder %v200, 15
        %vm207 = vmand %vm201, %vm206
        %vm208 = vmand %vm202, %vm206
        %vm209 = vcmp.lt.s32.totalorder %v197, 15
        %vm210 = vcmp.lt.s32.totalorder %v198, 15
        %vm211 = vmand %vm209, %vm203
        %vm212 = vmand %vm210, %vm203
        %vm213 = vmand %vm209, %vm206
        %vm214 = vmand %vm210, %vm206
        %v215 = vld [vmem:[%s186] sm:$0xff]
        %v216 = vld [vmem:[%s186 + $0x8] sm:$0xff]
        %v217 = vrot.slane %v215, 7
        %v218 = vrot.slane %v216, 7
        %vm219 = vcmp.lt.s32.totalorder %v197, 1
        %v220 = vsel %vm219, %v217, %v218
        %v221 = vsel %vm219, %v218, %v217
        %vm222 = vcmask 1047680
        %223 = vrot.lane.b32.xlu0 %v221, 16
        %v224 = vpop.permute.xlu0 %223
        %v225 = vsel %vm222, %v224, %v221
        %226 = vrot.lane.b32.xlu0 %v220, 16
        %v227 = vpop.permute.xlu0 %226
        %v228 = vsel %vm222, %v227, %v220
        %229 = vrot.lane.b32.xlu0 %v225, 16
        %v230 = vpop.permute.xlu0 %229
        %231 = vrot.lane.b32.xlu0 %v228, 16
        %v232 = vpop.permute.xlu0 %231
        %v233 = vsel %vm222, %v230, %v221
        %v234 = vsel %vm222, %v232, %v220
        %237 = vrot.lane.b32.xlu0 %v233, 113
        %v238 = vpop.permute.xlu0 %237
        %239 = vrot.lane.b32.xlu0 %v234, 113
        %v240 = vpop.permute.xlu0 %239
        %v243 = vsel %vm204, %v238, 0.0
        %v244 = vsel %vm205, %v240, 0.0
        %s245 = sld [smem:[#allocation2]]
        %v246 = vstv %s245
        %v247 = vmul.f32 %v246, %v243
        %v248 = vmul.f32 %v246, %v244
        %s249 = sld [smem:[#allocation2 + $0x24]]
        %v250 = vstv %s249
        %v251 = vmul.f32 %v250, %v243
        %v252 = vmul.f32 %v250, %v244
        %s253 = sld [smem:[#allocation2 + $0x48]]
        %v254 = vstv %s253
        %v255 = vmul.f32 %v254, %v243
        %v256 = vmul.f32 %v254, %v244
        %s257 = sld [smem:[#allocation2 + $0x6c]]
        %v258 = vstv %s257
        %v259 = vmul.f32 %v258, %v243
        %v260 = vmul.f32 %v258, %v244
        %v261 = vsel %vm201, %v221, 0.0
        %v262 = vsel %vm202, %v220, 0.0
        %s263 = sld [smem:[#allocation2 + $0x1]]
        %v264 = vstv %s263
        %v265 = vmul.f32 %v264, %v261
        %v266 = vmul.f32 %v264, %v262
        %v267 = vadd.f32 %v247, %v265
        %v268 = vadd.f32 %v248, %v266
        %s269 = sld [smem:[#allocation2 + $0x25]]
        %v270 = vstv %s269
        %v271 = vmul.f32 %v270, %v261
        %v272 = vmul.f32 %v270, %v262
        %v273 = vadd.f32 %v251, %v271
        %v274 = vadd.f32 %v252, %v272
        %s275 = sld [smem:[#allocation2 + $0x49]]
        %v276 = vstv %s275
        %v277 = vmul.f32 %v276, %v261
        %v278 = vmul.f32 %v276, %v262
        %v279 = vadd.f32 %v255, %v277
        %v280 = vadd.f32 %v256, %v278
        %s281 = sld [smem:[#allocation2 + $0x6d]]
        %v282 = vstv %s281
        %v283 = vmul.f32 %v282, %v261
        %v284 = vmul.f32 %v282, %v262
        %v285 = vadd.f32 %v259, %v283
        %v286 = vadd.f32 %v260, %v284
        %287 = vrot.lane.b32.xlu0 %v233, 127
        %v288 = vpop.permute.xlu0 %287
        %289 = vrot.lane.b32.xlu0 %v234, 127
        %v290 = vpop.permute.xlu0 %289
        %v293 = vsel %vm207, %v288, 0.0
        %v294 = vsel %vm208, %v290, 0.0
        %s295 = sld [smem:[#allocation2 + $0x2]]
        %v296 = vstv %s295
        %v297 = vmul.f32 %v296, %v293
        %v298 = vmul.f32 %v296, %v294
        %v299 = vadd.f32 %v267, %v297
        %v300 = vadd.f32 %v268, %v298
        %s301 = sld [smem:[#allocation2 + $0x26]]
        %v302 = vstv %s301
        %v303 = vmul.f32 %v302, %v293
        %v304 = vmul.f32 %v302, %v294
        %v305 = vadd.f32 %v273, %v303
        %v306 = vadd.f32 %v274, %v304
        %s307 = sld [smem:[#allocation2 + $0x4a]]
        %v308 = vstv %s307
        %v309 = vmul.f32 %v308, %v293
        %v310 = vmul.f32 %v308, %v294
        %v311 = vadd.f32 %v279, %v309
        %v312 = vadd.f32 %v280, %v310
        %s313 = sld [smem:[#allocation2 + $0x6e]]
        %v314 = vstv %s313
        %v315 = vmul.f32 %v314, %v293
        %v316 = vmul.f32 %v314, %v294
        %v317 = vadd.f32 %v285, %v315
        %v318 = vadd.f32 %v286, %v316
        %319 = vrot.lane.b32.xlu0 %v215, 16
        %v320 = vpop.permute.xlu0 %319
        %v321 = vsel %vm222, %v320, %v215
        %322 = vrot.lane.b32.xlu0 %v216, 16
        %v323 = vpop.permute.xlu0 %322
        %v324 = vsel %vm222, %v323, %v216
        %325 = vrot.lane.b32.xlu0 %v321, 16
        %v326 = vpop.permute.xlu0 %325
        %327 = vrot.lane.b32.xlu0 %v324, 16
        %v328 = vpop.permute.xlu0 %327
        %v329 = vsel %vm222, %v326, %v215
        %v330 = vsel %vm222, %v328, %v216
        %333 = vrot.lane.b32.xlu0 %v329, 113
        %v334 = vpop.permute.xlu0 %333
        %335 = vrot.lane.b32.xlu0 %v330, 113
        %v336 = vpop.permute.xlu0 %335
        %v339 = vsel %vm203, %v334, 0.0
        %v340 = vsel %vm203, %v336, 0.0
        %s341 = sld [smem:[#allocation2 + $0x3]]
        %v342 = vstv %s341
        %v343 = vmul.f32 %v342, %v339
        %v344 = vmul.f32 %v342, %v340
        %v345 = vadd.f32 %v299, %v343
        %v346 = vadd.f32 %v300, %v344
        %s347 = sld [smem:[#allocation2 + $0x27]]
        %v348 = vstv %s347
        %v349 = vmul.f32 %v348, %v339
        %v350 = vmul.f32 %v348, %v340
        %v351 = vadd.f32 %v305, %v349
        %v352 = vadd.f32 %v306, %v350
        %s353 = sld [smem:[#allocation2 + $0x4b]]
        %v354 = vstv %s353
        %v355 = vmul.f32 %v354, %v339
        %v356 = vmul.f32 %v354, %v340
        %v357 = vadd.f32 %v311, %v355
        %v358 = vadd.f32 %v312, %v356
        %s359 = sld [smem:[#allocation2 + $0x6f]]
        %v360 = vstv %s359
        %v361 = vmul.f32 %v360, %v339
        %v362 = vmul.f32 %v360, %v340
        %v363 = vadd.f32 %v317, %v361
        %v364 = vadd.f32 %v318, %v362
        %s365 = sld [smem:[#allocation2 + $0x4]]
        %v366 = vstv %s365
        %v367 = vmul.f32 %v366, %v215
        %v368 = vmul.f32 %v366, %v216
        %v369 = vadd.f32 %v345, %v367
        %v370 = vadd.f32 %v346, %v368
        %s371 = sld [smem:[#allocation2 + $0x28]]
        %v372 = vstv %s371
        %v373 = vmul.f32 %v372, %v215
        %v374 = vmul.f32 %v372, %v216
        %v375 = vadd.f32 %v351, %v373
        %v376 = vadd.f32 %v352, %v374
        %s377 = sld [smem:[#allocation2 + $0x4c]]
        %v378 = vstv %s377
        %v379 = vmul.f32 %v378, %v215
        %v380 = vmul.f32 %v378, %v216
        %v381 = vadd.f32 %v357, %v379
        %v382 = vadd.f32 %v358, %v380
        %s383 = sld [smem:[#allocation2 + $0x70]]
        %v384 = vstv %s383
        %v385 = vmul.f32 %v384, %v215
        %v386 = vmul.f32 %v384, %v216
        %v387 = vadd.f32 %v363, %v385
        %v388 = vadd.f32 %v364, %v386
        %389 = vrot.lane.b32.xlu0 %v329, 127
        %v390 = vpop.permute.xlu0 %389
        %391 = vrot.lane.b32.xlu0 %v330, 127
        %v392 = vpop.permute.xlu0 %391
        %v395 = vsel %vm206, %v390, 0.0
        %v396 = vsel %vm206, %v392, 0.0
        %s397 = sld [smem:[#allocation2 + $0x5]]
        %v398 = vstv %s397
        %v399 = vmul.f32 %v398, %v395
        %v400 = vmul.f32 %v398, %v396
        %v401 = vadd.f32 %v369, %v399
        %v402 = vadd.f32 %v370, %v400
        %s403 = sld [smem:[#allocation2 + $0x29]]
        %v404 = vstv %s403
        %v405 = vmul.f32 %v404, %v395
        %v406 = vmul.f32 %v404, %v396
        %v407 = vadd.f32 %v375, %v405
        %v408 = vadd.f32 %v376, %v406
        %s409 = sld [smem:[#allocation2 + $0x4d]]
        %v410 = vstv %s409
        %v411 = vmul.f32 %v410, %v395
        %v412 = vmul.f32 %v410, %v396
        %v413 = vadd.f32 %v381, %v411
        %v414 = vadd.f32 %v382, %v412
        %s415 = sld [smem:[#allocation2 + $0x71]]
        %v416 = vstv %s415
        %v417 = vmul.f32 %v416, %v395
        %v418 = vmul.f32 %v416, %v396
        %v419 = vadd.f32 %v387, %v417
        %v420 = vadd.f32 %v388, %v418
        %v421 = vrot.slane %v215, 1
        %v422 = vrot.slane %v216, 1
        %vm423 = vcmp.lt.s32.totalorder %v197, 7
        %v424 = vsel %vm423, %v421, %v422
        %v425 = vsel %vm423, %v422, %v421
        %426 = vrot.lane.b32.xlu0 %v424, 16
        %v427 = vpop.permute.xlu0 %426
        %v428 = vsel %vm222, %v427, %v424
        %429 = vrot.lane.b32.xlu0 %v425, 16
        %v430 = vpop.permute.xlu0 %429
        %v431 = vsel %vm222, %v430, %v425
        %432 = vrot.lane.b32.xlu0 %v428, 16
        %v433 = vpop.permute.xlu0 %432
        %434 = vrot.lane.b32.xlu0 %v431, 16
        %v435 = vpop.permute.xlu0 %434
        %v436 = vsel %vm222, %v433, %v424
        %v437 = vsel %vm222, %v435, %v425
        %440 = vrot.lane.b32.xlu0 %v436, 113
        %v441 = vpop.permute.xlu0 %440
        %442 = vrot.lane.b32.xlu0 %v437, 113
        %v443 = vpop.permute.xlu0 %442
        %v446 = vsel %vm211, %v441, 0.0
        %v447 = vsel %vm212, %v443, 0.0
        %s448 = sld [smem:[#allocation2 + $0x6]]
        %v449 = vstv %s448
        %v450 = vmul.f32 %v449, %v446
        %v451 = vmul.f32 %v449, %v447
        %v452 = vadd.f32 %v401, %v450
        %v453 = vadd.f32 %v402, %v451
        %s454 = sld [smem:[#allocation2 + $0x2a]]
        %v455 = vstv %s454
        %v456 = vmul.f32 %v455, %v446
        %v457 = vmul.f32 %v455, %v447
        %v458 = vadd.f32 %v407, %v456
        %v459 = vadd.f32 %v408, %v457
        %s460 = sld [smem:[#allocation2 + $0x4e]]
        %v461 = vstv %s460
        %v462 = vmul.f32 %v461, %v446
        %v463 = vmul.f32 %v461, %v447
        %v464 = vadd.f32 %v413, %v462
        %v465 = vadd.f32 %v414, %v463
        %s466 = sld [smem:[#allocation2 + $0x72]]
        %v467 = vstv %s466
        %v468 = vmul.f32 %v467, %v446
        %v469 = vmul.f32 %v467, %v447
        %v470 = vadd.f32 %v419, %v468
        %v471 = vadd.f32 %v420, %v469
        %v472 = vsel %vm209, %v424, 0.0
        %v473 = vsel %vm210, %v425, 0.0
        %s474 = sld [smem:[#allocation2 + $0x7]]
        %v475 = vstv %s474
        %v476 = vmul.f32 %v475, %v472
        %v477 = vmul.f32 %v475, %v473
        %v478 = vadd.f32 %v452, %v476
        %v479 = vadd.f32 %v453, %v477
        %s480 = sld [smem:[#allocation2 + $0x2b]]
        %v481 = vstv %s480
        %v482 = vmul.f32 %v481, %v472
        %v483 = vmul.f32 %v481, %v473
        %v484 = vadd.f32 %v458, %v482
        %v485 = vadd.f32 %v459, %v483
        %s486 = sld [smem:[#allocation2 + $0x4f]]
        %v487 = vstv %s486
        %v488 = vmul.f32 %v487, %v472
        %v489 = vmul.f32 %v487, %v473
        %v490 = vadd.f32 %v464, %v488
        %v491 = vadd.f32 %v465, %v489
        %s492 = sld [smem:[#allocation2 + $0x73]]
        %v493 = vstv %s492
        %v494 = vmul.f32 %v493, %v472
        %v495 = vmul.f32 %v493, %v473
        %v496 = vadd.f32 %v470, %v494
        %v497 = vadd.f32 %v471, %v495
        %498 = vrot.lane.b32.xlu0 %v436, 127
        %v499 = vpop.permute.xlu0 %498
        %500 = vrot.lane.b32.xlu0 %v437, 127
        %v501 = vpop.permute.xlu0 %500
        %v504 = vsel %vm213, %v499, 0.0
        %v505 = vsel %vm214, %v501, 0.0
        %s506 = sld [smem:[#allocation2 + $0x8]]
        %v507 = vstv %s506
        %v508 = vmul.f32 %v507, %v504
        %v509 = vmul.f32 %v507, %v505
        %v510 = vadd.f32 %v478, %v508
        %v511 = vadd.f32 %v479, %v509
        %s512 = sld [smem:[#allocation2 + $0x2c]]
        %v513 = vstv %s512
        %v514 = vmul.f32 %v513, %v504
        %v515 = vmul.f32 %v513, %v505
        %v516 = vadd.f32 %v484, %v514
        %v517 = vadd.f32 %v485, %v515
        %s518 = sld [smem:[#allocation2 + $0x50]]
        %v519 = vstv %s518
        %v520 = vmul.f32 %v519, %v504
        %v521 = vmul.f32 %v519, %v505
        %v522 = vadd.f32 %v490, %v520
        %v523 = vadd.f32 %v491, %v521
        %s524 = sld [smem:[#allocation2 + $0x74]]
        %v525 = vstv %s524
        %v526 = vmul.f32 %v525, %v504
        %v527 = vmul.f32 %v525, %v505
        %v528 = vadd.f32 %v496, %v526
        %v529 = vadd.f32 %v497, %v527
        %s530 = scalar_lea.vmem %s186, 16
        %v531 = vld [vmem:[%s530] sm:$0xff]
        %v532 = vld [vmem:[%s530 + $0x8] sm:$0xff]
        %v533 = vrot.slane %v531, 7
        %v534 = vrot.slane %v532, 7
        %v535 = vsel %vm219, %v533, %v534
        %v536 = vsel %vm219, %v534, %v533
        %537 = vrot.lane.b32.xlu0 %v536, 16
        %v538 = vpop.permute.xlu0 %537
        %v539 = vsel %vm222, %v538, %v536
        %540 = vrot.lane.b32.xlu0 %v535, 16
        %v541 = vpop.permute.xlu0 %540
        %v542 = vsel %vm222, %v541, %v535
        %543 = vrot.lane.b32.xlu0 %v539, 16
        %v544 = vpop.permute.xlu0 %543
        %545 = vrot.lane.b32.xlu0 %v542, 16
        %v546 = vpop.permute.xlu0 %545
        %v547 = vsel %vm222, %v544, %v536
        %v548 = vsel %vm222, %v546, %v535
        %551 = vrot.lane.b32.xlu0 %v547, 113
        %v552 = vpop.permute.xlu0 %551
        %553 = vrot.lane.b32.xlu0 %v548, 113
        %v554 = vpop.permute.xlu0 %553
        %v557 = vsel %vm204, %v552, 0.0
        %v558 = vsel %vm205, %v554, 0.0
        %s559 = sld [smem:[#allocation2 + $0x9]]
        %v560 = vstv %s559
        %v561 = vmul.f32 %v560, %v557
        %v562 = vmul.f32 %v560, %v558
        %v563 = vadd.f32 %v510, %v561
        %v564 = vadd.f32 %v511, %v562
        %s565 = sld [smem:[#allocation2 + $0x2d]]
        %v566 = vstv %s565
        %v567 = vmul.f32 %v566, %v557
        %v568 = vmul.f32 %v566, %v558
        %v569 = vadd.f32 %v516, %v567
        %v570 = vadd.f32 %v517, %v568
        %s571 = sld [smem:[#allocation2 + $0x51]]
        %v572 = vstv %s571
        %v573 = vmul.f32 %v572, %v557
        %v574 = vmul.f32 %v572, %v558
        %v575 = vadd.f32 %v522, %v573
        %v576 = vadd.f32 %v523, %v574
        %s577 = sld [smem:[#allocation2 + $0x75]]
        %v578 = vstv %s577
        %v579 = vmul.f32 %v578, %v557
        %v580 = vmul.f32 %v578, %v558
        %v581 = vadd.f32 %v528, %v579
        %v582 = vadd.f32 %v529, %v580
        %v583 = vsel %vm201, %v536, 0.0
        %v584 = vsel %vm202, %v535, 0.0
        %s585 = sld [smem:[#allocation2 + $0xa]]
        %v586 = vstv %s585
        %v587 = vmul.f32 %v586, %v583
        %v588 = vmul.f32 %v586, %v584
        %v589 = vadd.f32 %v563, %v587
        %v590 = vadd.f32 %v564, %v588
        %s591 = sld [smem:[#allocation2 + $0x2e]]
        %v592 = vstv %s591
        %v593 = vmul.f32 %v592, %v583
        %v594 = vmul.f32 %v592, %v584
        %v595 = vadd.f32 %v569, %v593
        %v596 = vadd.f32 %v570, %v594
        %s597 = sld [smem:[#allocation2 + $0x52]]
        %v598 = vstv %s597
        %v599 = vmul.f32 %v598, %v583
        %v600 = vmul.f32 %v598, %v584
        %v601 = vadd.f32 %v575, %v599
        %v602 = vadd.f32 %v576, %v600
        %s603 = sld [smem:[#allocation2 + $0x76]]
        %v604 = vstv %s603
        %v605 = vmul.f32 %v604, %v583
        %v606 = vmul.f32 %v604, %v584
        %v607 = vadd.f32 %v581, %v605
        %v608 = vadd.f32 %v582, %v606
        %609 = vrot.lane.b32.xlu0 %v547, 127
        %v610 = vpop.permute.xlu0 %609
        %611 = vrot.lane.b32.xlu0 %v548, 127
        %v612 = vpop.permute.xlu0 %611
        %v615 = vsel %vm207, %v610, 0.0
        %v616 = vsel %vm208, %v612, 0.0
        %s617 = sld [smem:[#allocation2 + $0xb]]
        %v618 = vstv %s617
        %v619 = vmul.f32 %v618, %v615
        %v620 = vmul.f32 %v618, %v616
        %v621 = vadd.f32 %v589, %v619
        %v622 = vadd.f32 %v590, %v620
        %s623 = sld [smem:[#allocation2 + $0x2f]]
        %v624 = vstv %s623
        %v625 = vmul.f32 %v624, %v615
        %v626 = vmul.f32 %v624, %v616
        %v627 = vadd.f32 %v595, %v625
        %v628 = vadd.f32 %v596, %v626
        %s629 = sld [smem:[#allocation2 + $0x53]]
        %v630 = vstv %s629
        %v631 = vmul.f32 %v630, %v615
        %v632 = vmul.f32 %v630, %v616
        %v633 = vadd.f32 %v601, %v631
        %v634 = vadd.f32 %v602, %v632
        %s635 = sld [smem:[#allocation2 + $0x77]]
        %v636 = vstv %s635
        %v637 = vmul.f32 %v636, %v615
        %v638 = vmul.f32 %v636, %v616
        %v639 = vadd.f32 %v607, %v637
        %v640 = vadd.f32 %v608, %v638
        %641 = vrot.lane.b32.xlu0 %v531, 16
        %v642 = vpop.permute.xlu0 %641
        %v643 = vsel %vm222, %v642, %v531
        %644 = vrot.lane.b32.xlu0 %v532, 16
        %v645 = vpop.permute.xlu0 %644
        %v646 = vsel %vm222, %v645, %v532
        %647 = vrot.lane.b32.xlu0 %v643, 16
        %v648 = vpop.permute.xlu0 %647
        %649 = vrot.lane.b32.xlu0 %v646, 16
        %v650 = vpop.permute.xlu0 %649
        %v651 = vsel %vm222, %v648, %v531
        %v652 = vsel %vm222, %v650, %v532
        %655 = vrot.lane.b32.xlu0 %v651, 113
        %v656 = vpop.permute.xlu0 %655
        %657 = vrot.lane.b32.xlu0 %v652, 113
        %v658 = vpop.permute.xlu0 %657
        %v661 = vsel %vm203, %v656, 0.0
        %v662 = vsel %vm203, %v658, 0.0
        %s663 = sld [smem:[#allocation2 + $0xc]]
        %v664 = vstv %s663
        %v665 = vmul.f32 %v664, %v661
        %v666 = vmul.f32 %v664, %v662
        %v667 = vadd.f32 %v621, %v665
        %v668 = vadd.f32 %v622, %v666
        %s669 = sld [smem:[#allocation2 + $0x30]]
        %v670 = vstv %s669
        %v671 = vmul.f32 %v670, %v661
        %v672 = vmul.f32 %v670, %v662
        %v673 = vadd.f32 %v627, %v671
        %v674 = vadd.f32 %v628, %v672
        %s675 = sld [smem:[#allocation2 + $0x54]]
        %v676 = vstv %s675
        %v677 = vmul.f32 %v676, %v661
        %v678 = vmul.f32 %v676, %v662
        %v679 = vadd.f32 %v633, %v677
        %v680 = vadd.f32 %v634, %v678
        %s681 = sld [smem:[#allocation2 + $0x78]]
        %v682 = vstv %s681
        %v683 = vmul.f32 %v682, %v661
        %v684 = vmul.f32 %v682, %v662
        %v685 = vadd.f32 %v639, %v683
        %v686 = vadd.f32 %v640, %v684
        %s687 = sld [smem:[#allocation2 + $0xd]]
        %v688 = vstv %s687
        %v689 = vmul.f32 %v688, %v531
        %v690 = vmul.f32 %v688, %v532
        %v691 = vadd.f32 %v667, %v689
        %v692 = vadd.f32 %v668, %v690
        %s693 = sld [smem:[#allocation2 + $0x31]]
        %v694 = vstv %s693
        %v695 = vmul.f32 %v694, %v531
        %v696 = vmul.f32 %v694, %v532
        %v697 = vadd.f32 %v673, %v695
        %v698 = vadd.f32 %v674, %v696
        %s699 = sld [smem:[#allocation2 + $0x55]]
        %v700 = vstv %s699
        %v701 = vmul.f32 %v700, %v531
        %v702 = vmul.f32 %v700, %v532
        %v703 = vadd.f32 %v679, %v701
        %v704 = vadd.f32 %v680, %v702
        %s705 = sld [smem:[#allocation2 + $0x79]]
        %v706 = vstv %s705
        %v707 = vmul.f32 %v706, %v531
        %v708 = vmul.f32 %v706, %v532
        %v709 = vadd.f32 %v685, %v707
        %v710 = vadd.f32 %v686, %v708
        %711 = vrot.lane.b32.xlu0 %v651, 127
        %v712 = vpop.permute.xlu0 %711
        %713 = vrot.lane.b32.xlu0 %v652, 127
        %v714 = vpop.permute.xlu0 %713
        %v717 = vsel %vm206, %v712, 0.0
        %v718 = vsel %vm206, %v714, 0.0
        %s719 = sld [smem:[#allocation2 + $0xe]]
        %v720 = vstv %s719
        %v721 = vmul.f32 %v720, %v717
        %v722 = vmul.f32 %v720, %v718
        %v723 = vadd.f32 %v691, %v721
        %v724 = vadd.f32 %v692, %v722
        %s725 = sld [smem:[#allocation2 + $0x32]]
        %v726 = vstv %s725
        %v727 = vmul.f32 %v726, %v717
        %v728 = vmul.f32 %v726, %v718
        %v729 = vadd.f32 %v697, %v727
        %v730 = vadd.f32 %v698, %v728
        %s731 = sld [smem:[#allocation2 + $0x56]]
        %v732 = vstv %s731
        %v733 = vmul.f32 %v732, %v717
        %v734 = vmul.f32 %v732, %v718
        %v735 = vadd.f32 %v703, %v733
        %v736 = vadd.f32 %v704, %v734
        %s737 = sld [smem:[#allocation2 + $0x7a]]
        %v738 = vstv %s737
        %v739 = vmul.f32 %v738, %v717
        %v740 = vmul.f32 %v738, %v718
        %v741 = vadd.f32 %v709, %v739
        %v742 = vadd.f32 %v710, %v740
        %v743 = vrot.slane %v531, 1
        %v744 = vrot.slane %v532, 1
        %v745 = vsel %vm423, %v743, %v744
        %v746 = vsel %vm423, %v744, %v743
        %747 = vrot.lane.b32.xlu0 %v745, 16
        %v748 = vpop.permute.xlu0 %747
        %v749 = vsel %vm222, %v748, %v745
        %750 = vrot.lane.b32.xlu0 %v746, 16
        %v751 = vpop.permute.xlu0 %750
        %v752 = vsel %vm222, %v751, %v746
        %753 = vrot.lane.b32.xlu0 %v749, 16
        %v754 = vpop.permute.xlu0 %753
        %755 = vrot.lane.b32.xlu0 %v752, 16
        %v756 = vpop.permute.xlu0 %755
        %v757 = vsel %vm222, %v754, %v745
        %v758 = vsel %vm222, %v756, %v746
        %761 = vrot.lane.b32.xlu0 %v757, 113
        %v762 = vpop.permute.xlu0 %761
        %763 = vrot.lane.b32.xlu0 %v758, 113
        %v764 = vpop.permute.xlu0 %763
        %v767 = vsel %vm211, %v762, 0.0
        %v768 = vsel %vm212, %v764, 0.0
        %s769 = sld [smem:[#allocation2 + $0xf]]
        %v770 = vstv %s769
        %v771 = vmul.f32 %v770, %v767
        %v772 = vmul.f32 %v770, %v768
        %v773 = vadd.f32 %v723, %v771
        %v774 = vadd.f32 %v724, %v772
        %s775 = sld [smem:[#allocation2 + $0x33]]
        %v776 = vstv %s775
        %v777 = vmul.f32 %v776, %v767
        %v778 = vmul.f32 %v776, %v768
        %v779 = vadd.f32 %v729, %v777
        %v780 = vadd.f32 %v730, %v778
        %s781 = sld [smem:[#allocation2 + $0x57]]
        %v782 = vstv %s781
        %v783 = vmul.f32 %v782, %v767
        %v784 = vmul.f32 %v782, %v768
        %v785 = vadd.f32 %v735, %v783
        %v786 = vadd.f32 %v736, %v784
        %s787 = sld [smem:[#allocation2 + $0x7b]]
        %v788 = vstv %s787
        %v789 = vmul.f32 %v788, %v767
        %v790 = vmul.f32 %v788, %v768
        %v791 = vadd.f32 %v741, %v789
        %v792 = vadd.f32 %v742, %v790
        %v793 = vsel %vm209, %v745, 0.0
        %v794 = vsel %vm210, %v746, 0.0
        %s795 = sld [smem:[#allocation2 + $0x10]]
        %v796 = vstv %s795
        %v797 = vmul.f32 %v796, %v793
        %v798 = vmul.f32 %v796, %v794
        %v799 = vadd.f32 %v773, %v797
        %v800 = vadd.f32 %v774, %v798
        %s801 = sld [smem:[#allocation2 + $0x34]]
        %v802 = vstv %s801
        %v803 = vmul.f32 %v802, %v793
        %v804 = vmul.f32 %v802, %v794
        %v805 = vadd.f32 %v779, %v803
        %v806 = vadd.f32 %v780, %v804
        %s807 = sld [smem:[#allocation2 + $0x58]]
        %v808 = vstv %s807
        %v809 = vmul.f32 %v808, %v793
        %v810 = vmul.f32 %v808, %v794
        %v811 = vadd.f32 %v785, %v809
        %v812 = vadd.f32 %v786, %v810
        %s813 = sld [smem:[#allocation2 + $0x7c]]
        %v814 = vstv %s813
        %v815 = vmul.f32 %v814, %v793
        %v816 = vmul.f32 %v814, %v794
        %v817 = vadd.f32 %v791, %v815
        %v818 = vadd.f32 %v792, %v816
        %819 = vrot.lane.b32.xlu0 %v757, 127
        %v820 = vpop.permute.xlu0 %819
        %821 = vrot.lane.b32.xlu0 %v758, 127
        %v822 = vpop.permute.xlu0 %821
        %v825 = vsel %vm213, %v820, 0.0
        %v826 = vsel %vm214, %v822, 0.0
        %s827 = sld [smem:[#allocation2 + $0x11]]
        %v828 = vstv %s827
        %v829 = vmul.f32 %v828, %v825
        %v830 = vmul.f32 %v828, %v826
        %v831 = vadd.f32 %v799, %v829
        %v832 = vadd.f32 %v800, %v830
        %s833 = sld [smem:[#allocation2 + $0x35]]
        %v834 = vstv %s833
        %v835 = vmul.f32 %v834, %v825
        %v836 = vmul.f32 %v834, %v826
        %v837 = vadd.f32 %v805, %v835
        %v838 = vadd.f32 %v806, %v836
        %s839 = sld [smem:[#allocation2 + $0x59]]
        %v840 = vstv %s839
        %v841 = vmul.f32 %v840, %v825
        %v842 = vmul.f32 %v840, %v826
        %v843 = vadd.f32 %v811, %v841
        %v844 = vadd.f32 %v812, %v842
        %s845 = sld [smem:[#allocation2 + $0x7d]]
        %v846 = vstv %s845
        %v847 = vmul.f32 %v846, %v825
        %v848 = vmul.f32 %v846, %v826
        %v849 = vadd.f32 %v817, %v847
        %v850 = vadd.f32 %v818, %v848
        %s851 = scalar_lea.vmem %s186, 32
        %v852 = vld [vmem:[%s851] sm:$0xff]
        %v853 = vld [vmem:[%s851 + $0x8] sm:$0xff]
        %v854 = vrot.slane %v852, 7
        %v855 = vrot.slane %v853, 7
        %v856 = vsel %vm219, %v854, %v855
        %v857 = vsel %vm219, %v855, %v854
        %858 = vrot.lane.b32.xlu0 %v857, 16
        %v859 = vpop.permute.xlu0 %858
        %v860 = vsel %vm222, %v859, %v857
        %861 = vrot.lane.b32.xlu0 %v856, 16
        %v862 = vpop.permute.xlu0 %861
        %v863 = vsel %vm222, %v862, %v856
        %864 = vrot.lane.b32.xlu0 %v860, 16
        %v865 = vpop.permute.xlu0 %864
        %866 = vrot.lane.b32.xlu0 %v863, 16
        %v867 = vpop.permute.xlu0 %866
        %v868 = vsel %vm222, %v865, %v857
        %v869 = vsel %vm222, %v867, %v856
        %872 = vrot.lane.b32.xlu0 %v868, 113
        %v873 = vpop.permute.xlu0 %872
        %874 = vrot.lane.b32.xlu0 %v869, 113
        %v875 = vpop.permute.xlu0 %874
        %v878 = vsel %vm204, %v873, 0.0
        %v879 = vsel %vm205, %v875, 0.0
        %s880 = sld [smem:[#allocation2 + $0x12]]
        %v881 = vstv %s880
        %v882 = vmul.f32 %v881, %v878
        %v883 = vmul.f32 %v881, %v879
        %v884 = vadd.f32 %v831, %v882
        %v885 = vadd.f32 %v832, %v883
        %s886 = sld [smem:[#allocation2 + $0x36]]
        %v887 = vstv %s886
        %v888 = vmul.f32 %v887, %v878
        %v889 = vmul.f32 %v887, %v879
        %v890 = vadd.f32 %v837, %v888
        %v891 = vadd.f32 %v838, %v889
        %s892 = sld [smem:[#allocation2 + $0x5a]]
        %v893 = vstv %s892
        %v894 = vmul.f32 %v893, %v878
        %v895 = vmul.f32 %v893, %v879
        %v896 = vadd.f32 %v843, %v894
        %v897 = vadd.f32 %v844, %v895
        %s898 = sld [smem:[#allocation2 + $0x7e]]
        %v899 = vstv %s898
        %v900 = vmul.f32 %v899, %v878
        %v901 = vmul.f32 %v899, %v879
        %v902 = vadd.f32 %v849, %v900
        %v903 = vadd.f32 %v850, %v901
        %v904 = vsel %vm201, %v857, 0.0
        %v905 = vsel %vm202, %v856, 0.0
        %s906 = sld [smem:[#allocation2 + $0x13]]
        %v907 = vstv %s906
        %v908 = vmul.f32 %v907, %v904
        %v909 = vmul.f32 %v907, %v905
        %v910 = vadd.f32 %v884, %v908
        %v911 = vadd.f32 %v885, %v909
        %s912 = sld [smem:[#allocation2 + $0x37]]
        %v913 = vstv %s912
        %v914 = vmul.f32 %v913, %v904
        %v915 = vmul.f32 %v913, %v905
        %v916 = vadd.f32 %v890, %v914
        %v917 = vadd.f32 %v891, %v915
        %s918 = sld [smem:[#allocation2 + $0x5b]]
        %v919 = vstv %s918
        %v920 = vmul.f32 %v919, %v904
        %v921 = vmul.f32 %v919, %v905
        %v922 = vadd.f32 %v896, %v920
        %v923 = vadd.f32 %v897, %v921
        %s924 = sld [smem:[#allocation2 + $0x7f]]
        %v925 = vstv %s924
        %v926 = vmul.f32 %v925, %v904
        %v927 = vmul.f32 %v925, %v905
        %v928 = vadd.f32 %v902, %v926
        %v929 = vadd.f32 %v903, %v927
        %930 = vrot.lane.b32.xlu0 %v868, 127
        %v931 = vpop.permute.xlu0 %930
        %932 = vrot.lane.b32.xlu0 %v869, 127
        %v933 = vpop.permute.xlu0 %932
        %v936 = vsel %vm207, %v931, 0.0
        %v937 = vsel %vm208, %v933, 0.0
        %s938 = sld [smem:[#allocation2 + $0x14]]
        %v939 = vstv %s938
        %v940 = vmul.f32 %v939, %v936
        %v941 = vmul.f32 %v939, %v937
        %v942 = vadd.f32 %v910, %v940
        %v943 = vadd.f32 %v911, %v941
        %s944 = sld [smem:[#allocation2 + $0x38]]
        %v945 = vstv %s944
        %v946 = vmul.f32 %v945, %v936
        %v947 = vmul.f32 %v945, %v937
        %v948 = vadd.f32 %v916, %v946
        %v949 = vadd.f32 %v917, %v947
        %s950 = sld [smem:[#allocation2 + $0x5c]]
        %v951 = vstv %s950
        %v952 = vmul.f32 %v951, %v936
        %v953 = vmul.f32 %v951, %v937
        %v954 = vadd.f32 %v922, %v952
        %v955 = vadd.f32 %v923, %v953
        %s956 = sld [smem:[#allocation2 + $0x80]]
        %v957 = vstv %s956
        %v958 = vmul.f32 %v957, %v936
        %v959 = vmul.f32 %v957, %v937
        %v960 = vadd.f32 %v928, %v958
        %v961 = vadd.f32 %v929, %v959
        %962 = vrot.lane.b32.xlu0 %v852, 16
        %v963 = vpop.permute.xlu0 %962
        %v964 = vsel %vm222, %v963, %v852
        %965 = vrot.lane.b32.xlu0 %v853, 16
        %v966 = vpop.permute.xlu0 %965
        %v967 = vsel %vm222, %v966, %v853
        %968 = vrot.lane.b32.xlu0 %v964, 16
        %v969 = vpop.permute.xlu0 %968
        %970 = vrot.lane.b32.xlu0 %v967, 16
        %v971 = vpop.permute.xlu0 %970
        %v972 = vsel %vm222, %v969, %v852
        %v973 = vsel %vm222, %v971, %v853
        %976 = vrot.lane.b32.xlu0 %v972, 113
        %v977 = vpop.permute.xlu0 %976
        %978 = vrot.lane.b32.xlu0 %v973, 113
        %v979 = vpop.permute.xlu0 %978
        %v982 = vsel %vm203, %v977, 0.0
        %v983 = vsel %vm203, %v979, 0.0
        %s984 = sld [smem:[#allocation2 + $0x15]]
        %v985 = vstv %s984
        %v986 = vmul.f32 %v985, %v982
        %v987 = vmul.f32 %v985, %v983
        %v988 = vadd.f32 %v942, %v986
        %v989 = vadd.f32 %v943, %v987
        %s990 = sld [smem:[#allocation2 + $0x39]]
        %v991 = vstv %s990
        %v992 = vmul.f32 %v991, %v982
        %v993 = vmul.f32 %v991, %v983
        %v994 = vadd.f32 %v948, %v992
        %v995 = vadd.f32 %v949, %v993
        %s996 = sld [smem:[#allocation2 + $0x5d]]
        %v997 = vstv %s996
        %v998 = vmul.f32 %v997, %v982
        %v999 = vmul.f32 %v997, %v983
        %v1000 = vadd.f32 %v954, %v998
        %v1001 = vadd.f32 %v955, %v999
        %s1002 = sld [smem:[#allocation2 + $0x81]]
        %v1003 = vstv %s1002
        %v1004 = vmul.f32 %v1003, %v982
        %v1005 = vmul.f32 %v1003, %v983
        %v1006 = vadd.f32 %v960, %v1004
        %v1007 = vadd.f32 %v961, %v1005
        %s1008 = sld [smem:[#allocation2 + $0x16]]
        %v1009 = vstv %s1008
        %v1010 = vmul.f32 %v1009, %v852
        %v1011 = vmul.f32 %v1009, %v853
        %v1012 = vadd.f32 %v988, %v1010
        %v1013 = vadd.f32 %v989, %v1011
        %s1014 = sld [smem:[#allocation2 + $0x3a]]
        %v1015 = vstv %s1014
        %v1016 = vmul.f32 %v1015, %v852
        %v1017 = vmul.f32 %v1015, %v853
        %v1018 = vadd.f32 %v994, %v1016
        %v1019 = vadd.f32 %v995, %v1017
        %s1020 = sld [smem:[#allocation2 + $0x5e]]
        %v1021 = vstv %s1020
        %v1022 = vmul.f32 %v1021, %v852
        %v1023 = vmul.f32 %v1021, %v853
        %v1024 = vadd.f32 %v1000, %v1022
        %v1025 = vadd.f32 %v1001, %v1023
        %s1026 = sld [smem:[#allocation2 + $0x82]]
        %v1027 = vstv %s1026
        %v1028 = vmul.f32 %v1027, %v852
        %v1029 = vmul.f32 %v1027, %v853
        %v1030 = vadd.f32 %v1006, %v1028
        %v1031 = vadd.f32 %v1007, %v1029
        %1032 = vrot.lane.b32.xlu0 %v972, 127
        %v1033 = vpop.permute.xlu0 %1032
        %1034 = vrot.lane.b32.xlu0 %v973, 127
        %v1035 = vpop.permute.xlu0 %1034
        %v1038 = vsel %vm206, %v1033, 0.0
        %v1039 = vsel %vm206, %v1035, 0.0
        %s1040 = sld [smem:[#allocation2 + $0x17]]
        %v1041 = vstv %s1040
        %v1042 = vmul.f32 %v1041, %v1038
        %v1043 = vmul.f32 %v1041, %v1039
        %v1044 = vadd.f32 %v1012, %v1042
        %v1045 = vadd.f32 %v1013, %v1043
        %s1046 = sld [smem:[#allocation2 + $0x3b]]
        %v1047 = vstv %s1046
        %v1048 = vmul.f32 %v1047, %v1038
        %v1049 = vmul.f32 %v1047, %v1039
        %v1050 = vadd.f32 %v1018, %v1048
        %v1051 = vadd.f32 %v1019, %v1049
        %s1052 = sld [smem:[#allocation2 + $0x5f]]
        %v1053 = vstv %s1052
        %v1054 = vmul.f32 %v1053, %v1038
        %v1055 = vmul.f32 %v1053, %v1039
        %v1056 = vadd.f32 %v1024, %v1054
        %v1057 = vadd.f32 %v1025, %v1055
        %s1058 = sld [smem:[#allocation2 + $0x83]]
        %v1059 = vstv %s1058
        %v1060 = vmul.f32 %v1059, %v1038
        %v1061 = vmul.f32 %v1059, %v1039
        %v1062 = vadd.f32 %v1030, %v1060
        %v1063 = vadd.f32 %v1031, %v1061
        %v1064 = vrot.slane %v852, 1
        %v1065 = vrot.slane %v853, 1
        %v1066 = vsel %vm423, %v1064, %v1065
        %v1067 = vsel %vm423, %v1065, %v1064
        %1068 = vrot.lane.b32.xlu0 %v1066, 16
        %v1069 = vpop.permute.xlu0 %1068
        %v1070 = vsel %vm222, %v1069, %v1066
        %1071 = vrot.lane.b32.xlu0 %v1067, 16
        %v1072 = vpop.permute.xlu0 %1071
        %v1073 = vsel %vm222, %v1072, %v1067
        %1074 = vrot.lane.b32.xlu0 %v1070, 16
        %v1075 = vpop.permute.xlu0 %1074
        %1076 = vrot.lane.b32.xlu0 %v1073, 16
        %v1077 = vpop.permute.xlu0 %1076
        %v1078 = vsel %vm222, %v1075, %v1066
        %v1079 = vsel %vm222, %v1077, %v1067
        %1082 = vrot.lane.b32.xlu0 %v1078, 113
        %v1083 = vpop.permute.xlu0 %1082
        %1084 = vrot.lane.b32.xlu0 %v1079, 113
        %v1085 = vpop.permute.xlu0 %1084
        %v1088 = vsel %vm211, %v1083, 0.0
        %v1089 = vsel %vm212, %v1085, 0.0
        %s1090 = sld [smem:[#allocation2 + $0x18]]
        %v1091 = vstv %s1090
        %v1092 = vmul.f32 %v1091, %v1088
        %v1093 = vmul.f32 %v1091, %v1089
        %v1094 = vadd.f32 %v1044, %v1092
        %v1095 = vadd.f32 %v1045, %v1093
        %s1096 = sld [smem:[#allocation2 + $0x3c]]
        %v1097 = vstv %s1096
        %v1098 = vmul.f32 %v1097, %v1088
        %v1099 = vmul.f32 %v1097, %v1089
        %v1100 = vadd.f32 %v1050, %v1098
        %v1101 = vadd.f32 %v1051, %v1099
        %s1102 = sld [smem:[#allocation2 + $0x60]]
        %v1103 = vstv %s1102
        %v1104 = vmul.f32 %v1103, %v1088
        %v1105 = vmul.f32 %v1103, %v1089
        %v1106 = vadd.f32 %v1056, %v1104
        %v1107 = vadd.f32 %v1057, %v1105
        %s1108 = sld [smem:[#allocation2 + $0x84]]
        %v1109 = vstv %s1108
        %v1110 = vmul.f32 %v1109, %v1088
        %v1111 = vmul.f32 %v1109, %v1089
        %v1112 = vadd.f32 %v1062, %v1110
        %v1113 = vadd.f32 %v1063, %v1111
        %v1114 = vsel %vm209, %v1066, 0.0
        %v1115 = vsel %vm210, %v1067, 0.0
        %s1116 = sld [smem:[#allocation2 + $0x19]]
        %v1117 = vstv %s1116
        %v1118 = vmul.f32 %v1117, %v1114
        %v1119 = vmul.f32 %v1117, %v1115
        %v1120 = vadd.f32 %v1094, %v1118
        %v1121 = vadd.f32 %v1095, %v1119
        %s1122 = sld [smem:[#allocation2 + $0x3d]]
        %v1123 = vstv %s1122
        %v1124 = vmul.f32 %v1123, %v1114
        %v1125 = vmul.f32 %v1123, %v1115
        %v1126 = vadd.f32 %v1100, %v1124
        %v1127 = vadd.f32 %v1101, %v1125
        %s1128 = sld [smem:[#allocation2 + $0x61]]
        %v1129 = vstv %s1128
        %v1130 = vmul.f32 %v1129, %v1114
        %v1131 = vmul.f32 %v1129, %v1115
        %v1132 = vadd.f32 %v1106, %v1130
        %v1133 = vadd.f32 %v1107, %v1131
        %s1134 = sld [smem:[#allocation2 + $0x85]]
        %v1135 = vstv %s1134
        %v1136 = vmul.f32 %v1135, %v1114
        %v1137 = vmul.f32 %v1135, %v1115
        %v1138 = vadd.f32 %v1112, %v1136
        %v1139 = vadd.f32 %v1113, %v1137
        %1140 = vrot.lane.b32.xlu0 %v1078, 127
        %v1141 = vpop.permute.xlu0 %1140
        %1142 = vrot.lane.b32.xlu0 %v1079, 127
        %v1143 = vpop.permute.xlu0 %1142
        %v1146 = vsel %vm213, %v1141, 0.0
        %v1147 = vsel %vm214, %v1143, 0.0
        %s1148 = sld [smem:[#allocation2 + $0x1a]]
        %v1149 = vstv %s1148
        %v1150 = vmul.f32 %v1149, %v1146
        %v1151 = vmul.f32 %v1149, %v1147
        %v1152 = vadd.f32 %v1120, %v1150
        %v1153 = vadd.f32 %v1121, %v1151
        %s1154 = sld [smem:[#allocation2 + $0x3e]]
        %v1155 = vstv %s1154
        %v1156 = vmul.f32 %v1155, %v1146
        %v1157 = vmul.f32 %v1155, %v1147
        %v1158 = vadd.f32 %v1126, %v1156
        %v1159 = vadd.f32 %v1127, %v1157
        %s1160 = sld [smem:[#allocation2 + $0x62]]
        %v1161 = vstv %s1160
        %v1162 = vmul.f32 %v1161, %v1146
        %v1163 = vmul.f32 %v1161, %v1147
        %v1164 = vadd.f32 %v1132, %v1162
        %v1165 = vadd.f32 %v1133, %v1163
        %s1166 = sld [smem:[#allocation2 + $0x86]]
        %v1167 = vstv %s1166
        %v1168 = vmul.f32 %v1167, %v1146
        %v1169 = vmul.f32 %v1167, %v1147
        %v1170 = vadd.f32 %v1138, %v1168
        %v1171 = vadd.f32 %v1139, %v1169
        %s1172 = scalar_lea.vmem %s186, 48
        %v1173 = vld [vmem:[%s1172] sm:$0xff]
        %v1174 = vld [vmem:[%s1172 + $0x8] sm:$0xff]
        %v1175 = vrot.slane %v1173, 7
        %v1176 = vrot.slane %v1174, 7
        %v1177 = vsel %vm219, %v1175, %v1176
        %v1178 = vsel %vm219, %v1176, %v1175
        %1179 = vrot.lane.b32.xlu0 %v1178, 16
        %v1180 = vpop.permute.xlu0 %1179
        %v1181 = vsel %vm222, %v1180, %v1178
        %1182 = vrot.lane.b32.xlu0 %v1177, 16
        %v1183 = vpop.permute.xlu0 %1182
        %v1184 = vsel %vm222, %v1183, %v1177
        %1185 = vrot.lane.b32.xlu0 %v1181, 16
        %v1186 = vpop.permute.xlu0 %1185
        %1187 = vrot.lane.b32.xlu0 %v1184, 16
        %v1188 = vpop.permute.xlu0 %1187
        %v1189 = vsel %vm222, %v1186, %v1178
        %v1190 = vsel %vm222, %v1188, %v1177
        %1193 = vrot.lane.b32.xlu0 %v1189, 113
        %v1194 = vpop.permute.xlu0 %1193
        %1195 = vrot.lane.b32.xlu0 %v1190, 113
        %v1196 = vpop.permute.xlu0 %1195
        %v1199 = vsel %vm204, %v1194, 0.0
        %v1200 = vsel %vm205, %v1196, 0.0
        %s1201 = sld [smem:[#allocation2 + $0x1b]]
        %v1202 = vstv %s1201
        %v1203 = vmul.f32 %v1202, %v1199
        %v1204 = vmul.f32 %v1202, %v1200
        %v1205 = vadd.f32 %v1152, %v1203
        %v1206 = vadd.f32 %v1153, %v1204
        %s1207 = sld [smem:[#allocation2 + $0x3f]]
        %v1208 = vstv %s1207
        %v1209 = vmul.f32 %v1208, %v1199
        %v1210 = vmul.f32 %v1208, %v1200
        %v1211 = vadd.f32 %v1158, %v1209
        %v1212 = vadd.f32 %v1159, %v1210
        %s1213 = sld [smem:[#allocation2 + $0x63]]
        %v1214 = vstv %s1213
        %v1215 = vmul.f32 %v1214, %v1199
        %v1216 = vmul.f32 %v1214, %v1200
        %v1217 = vadd.f32 %v1164, %v1215
        %v1218 = vadd.f32 %v1165, %v1216
        %s1219 = sld [smem:[#allocation2 + $0x87]]
        %v1220 = vstv %s1219
        %v1221 = vmul.f32 %v1220, %v1199
        %v1222 = vmul.f32 %v1220, %v1200
        %v1223 = vadd.f32 %v1170, %v1221
        %v1224 = vadd.f32 %v1171, %v1222
        %v1225 = vsel %vm201, %v1178, 0.0
        %v1226 = vsel %vm202, %v1177, 0.0
        %s1227 = sld [smem:[#allocation2 + $0x1c]]
        %v1228 = vstv %s1227
        %v1229 = vmul.f32 %v1228, %v1225
        %v1230 = vmul.f32 %v1228, %v1226
        %v1231 = vadd.f32 %v1205, %v1229
        %v1232 = vadd.f32 %v1206, %v1230
        %s1233 = sld [smem:[#allocation2 + $0x40]]
        %v1234 = vstv %s1233
        %v1235 = vmul.f32 %v1234, %v1225
        %v1236 = vmul.f32 %v1234, %v1226
        %v1237 = vadd.f32 %v1211, %v1235
        %v1238 = vadd.f32 %v1212, %v1236
        %s1239 = sld [smem:[#allocation2 + $0x64]]
        %v1240 = vstv %s1239
        %v1241 = vmul.f32 %v1240, %v1225
        %v1242 = vmul.f32 %v1240, %v1226
        %v1243 = vadd.f32 %v1217, %v1241
        %v1244 = vadd.f32 %v1218, %v1242
        %s1245 = sld [smem:[#allocation2 + $0x88]]
        %v1246 = vstv %s1245
        %v1247 = vmul.f32 %v1246, %v1225
        %v1248 = vmul.f32 %v1246, %v1226
        %v1249 = vadd.f32 %v1223, %v1247
        %v1250 = vadd.f32 %v1224, %v1248
        %1251 = vrot.lane.b32.xlu0 %v1189, 127
        %v1252 = vpop.permute.xlu0 %1251
        %1253 = vrot.lane.b32.xlu0 %v1190, 127
        %v1254 = vpop.permute.xlu0 %1253
        %v1257 = vsel %vm207, %v1252, 0.0
        %v1258 = vsel %vm208, %v1254, 0.0
        %s1259 = sld [smem:[#allocation2 + $0x1d]]
        %v1260 = vstv %s1259
        %v1261 = vmul.f32 %v1260, %v1257
        %v1262 = vmul.f32 %v1260, %v1258
        %v1263 = vadd.f32 %v1231, %v1261
        %v1264 = vadd.f32 %v1232, %v1262
        %s1265 = sld [smem:[#allocation2 + $0x41]]
        %v1266 = vstv %s1265
        %v1267 = vmul.f32 %v1266, %v1257
        %v1268 = vmul.f32 %v1266, %v1258
        %v1269 = vadd.f32 %v1237, %v1267
        %v1270 = vadd.f32 %v1238, %v1268
        %s1271 = sld [smem:[#allocation2 + $0x65]]
        %v1272 = vstv %s1271
        %v1273 = vmul.f32 %v1272, %v1257
        %v1274 = vmul.f32 %v1272, %v1258
        %v1275 = vadd.f32 %v1243, %v1273
        %v1276 = vadd.f32 %v1244, %v1274
        %s1277 = sld [smem:[#allocation2 + $0x89]]
        %v1278 = vstv %s1277
        %v1279 = vmul.f32 %v1278, %v1257
        %v1280 = vmul.f32 %v1278, %v1258
        %v1281 = vadd.f32 %v1249, %v1279
        %v1282 = vadd.f32 %v1250, %v1280
        %1283 = vrot.lane.b32.xlu0 %v1173, 16
        %v1284 = vpop.permute.xlu0 %1283
        %v1285 = vsel %vm222, %v1284, %v1173
        %1286 = vrot.lane.b32.xlu0 %v1174, 16
        %v1287 = vpop.permute.xlu0 %1286
        %v1288 = vsel %vm222, %v1287, %v1174
        %1289 = vrot.lane.b32.xlu0 %v1285, 16
        %v1290 = vpop.permute.xlu0 %1289
        %1291 = vrot.lane.b32.xlu0 %v1288, 16
        %v1292 = vpop.permute.xlu0 %1291
        %v1293 = vsel %vm222, %v1290, %v1173
        %v1294 = vsel %vm222, %v1292, %v1174
        %1297 = vrot.lane.b32.xlu0 %v1293, 113
        %v1298 = vpop.permute.xlu0 %1297
        %1299 = vrot.lane.b32.xlu0 %v1294, 113
        %v1300 = vpop.permute.xlu0 %1299
        %v1303 = vsel %vm203, %v1298, 0.0
        %v1304 = vsel %vm203, %v1300, 0.0
        %s1305 = sld [smem:[#allocation2 + $0x1e]]
        %v1306 = vstv %s1305
        %v1307 = vmul.f32 %v1306, %v1303
        %v1308 = vmul.f32 %v1306, %v1304
        %v1309 = vadd.f32 %v1263, %v1307
        %v1310 = vadd.f32 %v1264, %v1308
        %s1311 = sld [smem:[#allocation2 + $0x42]]
        %v1312 = vstv %s1311
        %v1313 = vmul.f32 %v1312, %v1303
        %v1314 = vmul.f32 %v1312, %v1304
        %v1315 = vadd.f32 %v1269, %v1313
        %v1316 = vadd.f32 %v1270, %v1314
        %s1317 = sld [smem:[#allocation2 + $0x66]]
        %v1318 = vstv %s1317
        %v1319 = vmul.f32 %v1318, %v1303
        %v1320 = vmul.f32 %v1318, %v1304
        %v1321 = vadd.f32 %v1275, %v1319
        %v1322 = vadd.f32 %v1276, %v1320
        %s1323 = sld [smem:[#allocation2 + $0x8a]]
        %v1324 = vstv %s1323
        %v1325 = vmul.f32 %v1324, %v1303
        %v1326 = vmul.f32 %v1324, %v1304
        %v1327 = vadd.f32 %v1281, %v1325
        %v1328 = vadd.f32 %v1282, %v1326
        %s1329 = sld [smem:[#allocation2 + $0x1f]]
        %v1330 = vstv %s1329
        %v1331 = vmul.f32 %v1330, %v1173
        %v1332 = vmul.f32 %v1330, %v1174
        %v1333 = vadd.f32 %v1309, %v1331
        %v1334 = vadd.f32 %v1310, %v1332
        %s1335 = sld [smem:[#allocation2 + $0x43]]
        %v1336 = vstv %s1335
        %v1337 = vmul.f32 %v1336, %v1173
        %v1338 = vmul.f32 %v1336, %v1174
        %v1339 = vadd.f32 %v1315, %v1337
        %v1340 = vadd.f32 %v1316, %v1338
        %s1341 = sld [smem:[#allocation2 + $0x67]]
        %v1342 = vstv %s1341
        %v1343 = vmul.f32 %v1342, %v1173
        %v1344 = vmul.f32 %v1342, %v1174
        %v1345 = vadd.f32 %v1321, %v1343
        %v1346 = vadd.f32 %v1322, %v1344
        %s1347 = sld [smem:[#allocation2 + $0x8b]]
        %v1348 = vstv %s1347
        %v1349 = vmul.f32 %v1348, %v1173
        %v1350 = vmul.f32 %v1348, %v1174
        %v1351 = vadd.f32 %v1327, %v1349
        %v1352 = vadd.f32 %v1328, %v1350
        %1353 = vrot.lane.b32.xlu0 %v1293, 127
        %v1354 = vpop.permute.xlu0 %1353
        %1355 = vrot.lane.b32.xlu0 %v1294, 127
        %v1356 = vpop.permute.xlu0 %1355
        %v1359 = vsel %vm206, %v1354, 0.0
        %v1360 = vsel %vm206, %v1356, 0.0
        %s1361 = sld [smem:[#allocation2 + $0x20]]
        %v1362 = vstv %s1361
        %v1363 = vmul.f32 %v1362, %v1359
        %v1364 = vmul.f32 %v1362, %v1360
        %v1365 = vadd.f32 %v1333, %v1363
        %v1366 = vadd.f32 %v1334, %v1364
        %s1367 = sld [smem:[#allocation2 + $0x44]]
        %v1368 = vstv %s1367
        %v1369 = vmul.f32 %v1368, %v1359
        %v1370 = vmul.f32 %v1368, %v1360
        %v1371 = vadd.f32 %v1339, %v1369
        %v1372 = vadd.f32 %v1340, %v1370
        %s1373 = sld [smem:[#allocation2 + $0x68]]
        %v1374 = vstv %s1373
        %v1375 = vmul.f32 %v1374, %v1359
        %v1376 = vmul.f32 %v1374, %v1360
        %v1377 = vadd.f32 %v1345, %v1375
        %v1378 = vadd.f32 %v1346, %v1376
        %s1379 = sld [smem:[#allocation2 + $0x8c]]
        %v1380 = vstv %s1379
        %v1381 = vmul.f32 %v1380, %v1359
        %v1382 = vmul.f32 %v1380, %v1360
        %v1383 = vadd.f32 %v1351, %v1381
        %v1384 = vadd.f32 %v1352, %v1382
        %v1385 = vrot.slane %v1173, 1
        %v1386 = vrot.slane %v1174, 1
        %v1387 = vsel %vm423, %v1385, %v1386
        %v1388 = vsel %vm423, %v1386, %v1385
        %1389 = vrot.lane.b32.xlu0 %v1387, 16
        %v1390 = vpop.permute.xlu0 %1389
        %v1391 = vsel %vm222, %v1390, %v1387
        %1392 = vrot.lane.b32.xlu0 %v1388, 16
        %v1393 = vpop.permute.xlu0 %1392
        %v1394 = vsel %vm222, %v1393, %v1388
        %1395 = vrot.lane.b32.xlu0 %v1391, 16
        %v1396 = vpop.permute.xlu0 %1395
        %1397 = vrot.lane.b32.xlu0 %v1394, 16
        %v1398 = vpop.permute.xlu0 %1397
        %v1399 = vsel %vm222, %v1396, %v1387
        %v1400 = vsel %vm222, %v1398, %v1388
        %1403 = vrot.lane.b32.xlu0 %v1399, 113
        %v1404 = vpop.permute.xlu0 %1403
        %1405 = vrot.lane.b32.xlu0 %v1400, 113
        %v1406 = vpop.permute.xlu0 %1405
        %v1409 = vsel %vm211, %v1404, 0.0
        %v1410 = vsel %vm212, %v1406, 0.0
        %s1411 = sld [smem:[#allocation2 + $0x21]]
        %v1412 = vstv %s1411
        %v1413 = vmul.f32 %v1412, %v1409
        %v1414 = vmul.f32 %v1412, %v1410
        %v1415 = vadd.f32 %v1365, %v1413
        %v1416 = vadd.f32 %v1366, %v1414
        %s1417 = sld [smem:[#allocation2 + $0x45]]
        %v1418 = vstv %s1417
        %v1419 = vmul.f32 %v1418, %v1409
        %v1420 = vmul.f32 %v1418, %v1410
        %v1421 = vadd.f32 %v1371, %v1419
        %v1422 = vadd.f32 %v1372, %v1420
        %s1423 = sld [smem:[#allocation2 + $0x69]]
        %v1424 = vstv %s1423
        %v1425 = vmul.f32 %v1424, %v1409
        %v1426 = vmul.f32 %v1424, %v1410
        %v1427 = vadd.f32 %v1377, %v1425
        %v1428 = vadd.f32 %v1378, %v1426
        %s1429 = sld [smem:[#allocation2 + $0x8d]]
        %v1430 = vstv %s1429
        %v1431 = vmul.f32 %v1430, %v1409
        %v1432 = vmul.f32 %v1430, %v1410
        %v1433 = vadd.f32 %v1383, %v1431
        %v1434 = vadd.f32 %v1384, %v1432
        %v1435 = vsel %vm209, %v1387, 0.0
        %v1436 = vsel %vm210, %v1388, 0.0
        %s1437 = sld [smem:[#allocation2 + $0x22]]
        %v1438 = vstv %s1437
        %v1439 = vmul.f32 %v1438, %v1435
        %v1440 = vmul.f32 %v1438, %v1436
        %v1441 = vadd.f32 %v1415, %v1439
        %v1442 = vadd.f32 %v1416, %v1440
        %s1443 = sld [smem:[#allocation2 + $0x46]]
        %v1444 = vstv %s1443
        %v1445 = vmul.f32 %v1444, %v1435
        %v1446 = vmul.f32 %v1444, %v1436
        %v1447 = vadd.f32 %v1421, %v1445
        %v1448 = vadd.f32 %v1422, %v1446
        %s1449 = sld [smem:[#allocation2 + $0x6a]]
        %v1450 = vstv %s1449
        %v1451 = vmul.f32 %v1450, %v1435
        %v1452 = vmul.f32 %v1450, %v1436
        %v1453 = vadd.f32 %v1427, %v1451
        %v1454 = vadd.f32 %v1428, %v1452
        %s1455 = sld [smem:[#allocation2 + $0x8e]]
        %v1456 = vstv %s1455
        %v1457 = vmul.f32 %v1456, %v1435
        %v1458 = vmul.f32 %v1456, %v1436
        %v1459 = vadd.f32 %v1433, %v1457
        %v1460 = vadd.f32 %v1434, %v1458
        %1461 = vrot.lane.b32.xlu0 %v1399, 127
        %v1462 = vpop.permute.xlu0 %1461
        %1463 = vrot.lane.b32.xlu0 %v1400, 127
        %v1464 = vpop.permute.xlu0 %1463
        %v1467 = vsel %vm213, %v1462, 0.0
        %v1468 = vsel %vm214, %v1464, 0.0
        %s1469 = sld [smem:[#allocation2 + $0x23]]
        %v1470 = vstv %s1469
        %v1471 = vmul.f32 %v1470, %v1467
        %v1472 = vmul.f32 %v1470, %v1468
        %v1473 = vadd.f32 %v1441, %v1471
        %v1474 = vadd.f32 %v1442, %v1472
        %s1475 = sld [smem:[#allocation2 + $0x47]]
        %v1476 = vstv %s1475
        %v1477 = vmul.f32 %v1476, %v1467
        %v1478 = vmul.f32 %v1476, %v1468
        %v1479 = vadd.f32 %v1447, %v1477
        %v1480 = vadd.f32 %v1448, %v1478
        %s1481 = sld [smem:[#allocation2 + $0x6b]]
        %v1482 = vstv %s1481
        %v1483 = vmul.f32 %v1482, %v1467
        %v1484 = vmul.f32 %v1482, %v1468
        %v1485 = vadd.f32 %v1453, %v1483
        %v1486 = vadd.f32 %v1454, %v1484
        %s1487 = sld [smem:[#allocation2 + $0x8f]]
        %v1488 = vstv %s1487
        %v1489 = vmul.f32 %v1488, %v1467
        %v1490 = vmul.f32 %v1488, %v1468
        %v1491 = vadd.f32 %v1459, %v1489
        %v1492 = vadd.f32 %v1460, %v1490
        %vm1493 = vcmask 130048
        %1494 = vst.msk [vmem:[%s191] sm:$0xff] %vm1493, %v1473
        %1495 = vst.msk [vmem:[%s191 + $0x8] sm:$0xff] %vm1493, %v1474
        %v1496 = vsel %vm1493, %v1473, 0.0
        %1497 = vadd.xlane.f32.xlu0 %v1496
        %v1498 = vpop.xlane.xlu0 %1497
        %v1499 = vsel %vm1493, %v1474, 0.0
        %1500 = vadd.xlane.f32.xlu0 %v1499
        %v1501 = vpop.xlane.xlu0 %1500
        %v1502 = vadd.f32 %v1498, %v1501
        %v1503 = vrot.slane %v1502, 4
        %v1504 = vadd.f32 %v1502, %v1503
        %v1505 = vrot.slane %v1504, 2
        %v1506 = vadd.f32 %v1504, %v1505
        %v1507 = vrot.slane %v1506, 1
        %v1508 = vadd.f32 %v1506, %v1507
        %v1509 = vmul.f32 %v1473, %v1473
        %v1510 = vmul.f32 %v1474, %v1474
        %v1511 = vsel %vm1493, %v1509, 0.0
        %1512 = vadd.xlane.f32.xlu0 %v1511
        %v1513 = vpop.xlane.xlu0 %1512
        %v1514 = vsel %vm1493, %v1510, 0.0
        %1515 = vadd.xlane.f32.xlu0 %v1514
        %v1516 = vpop.xlane.xlu0 %1515
        %v1517 = vadd.f32 %v1513, %v1516
        %v1518 = vrot.slane %v1517, 4
        %v1519 = vadd.f32 %v1517, %v1518
        %v1520 = vrot.slane %v1519, 2
        %v1521 = vadd.f32 %v1519, %v1520
        %v1522 = vrot.slane %v1521, 1
        %v1523 = vadd.f32 %v1521, %v1522
        %s1524 = scalar_lea.vmem %s191, 16
        %1525 = vst.msk [vmem:[%s1524] sm:$0xff] %vm1493, %v1479
        %1526 = vst.msk [vmem:[%s1524 + $0x8] sm:$0xff] %vm1493, %v1480
        %v1527 = vsel %vm1493, %v1479, 0.0
        %1528 = vadd.xlane.f32.xlu0 %v1527
        %v1529 = vpop.xlane.xlu0 %1528
        %v1530 = vsel %vm1493, %v1480, 0.0
        %1531 = vadd.xlane.f32.xlu0 %v1530
        %v1532 = vpop.xlane.xlu0 %1531
        %v1533 = vadd.f32 %v1529, %v1532
        %v1534 = vrot.slane %v1533, 4
        %v1535 = vadd.f32 %v1533, %v1534
        %v1536 = vrot.slane %v1535, 2
        %v1537 = vadd.f32 %v1535, %v1536
        %v1538 = vrot.slane %v1537, 1
        %v1539 = vadd.f32 %v1537, %v1538
        %v1540 = vmul.f32 %v1479, %v1479
        %v1541 = vmul.f32 %v1480, %v1480
        %v1542 = vsel %vm1493, %v1540, 0.0
        %1543 = vadd.xlane.f32.xlu0 %v1542
        %v1544 = vpop.xlane.xlu0 %1543
        %v1545 = vsel %vm1493, %v1541, 0.0
        %1546 = vadd.xlane.f32.xlu0 %v1545
        %v1547 = vpop.xlane.xlu0 %1546
        %v1548 = vadd.f32 %v1544, %v1547
        %v1549 = vrot.slane %v1548, 4
        %v1550 = vadd.f32 %v1548, %v1549
        %v1551 = vrot.slane %v1550, 2
        %v1552 = vadd.f32 %v1550, %v1551
        %v1553 = vrot.slane %v1552, 1
        %v1554 = vadd.f32 %v1552, %v1553
        %s1555 = scalar_lea.vmem %s191, 32
        %1556 = vst.msk [vmem:[%s1555] sm:$0xff] %vm1493, %v1485
        %1557 = vst.msk [vmem:[%s1555 + $0x8] sm:$0xff] %vm1493, %v1486
        %v1558 = vsel %vm1493, %v1485, 0.0
        %1559 = vadd.xlane.f32.xlu0 %v1558
        %v1560 = vpop.xlane.xlu0 %1559
        %v1561 = vsel %vm1493, %v1486, 0.0
        %1562 = vadd.xlane.f32.xlu0 %v1561
        %v1563 = vpop.xlane.xlu0 %1562
        %v1564 = vadd.f32 %v1560, %v1563
        %v1565 = vrot.slane %v1564, 4
        %v1566 = vadd.f32 %v1564, %v1565
        %v1567 = vrot.slane %v1566, 2
        %v1568 = vadd.f32 %v1566, %v1567
        %v1569 = vrot.slane %v1568, 1
        %v1570 = vadd.f32 %v1568, %v1569
        %v1571 = vmul.f32 %v1485, %v1485
        %v1572 = vmul.f32 %v1486, %v1486
        %v1573 = vsel %vm1493, %v1571, 0.0
        %1574 = vadd.xlane.f32.xlu0 %v1573
        %v1575 = vpop.xlane.xlu0 %1574
        %v1576 = vsel %vm1493, %v1572, 0.0
        %1577 = vadd.xlane.f32.xlu0 %v1576
        %v1578 = vpop.xlane.xlu0 %1577
        %v1579 = vadd.f32 %v1575, %v1578
        %v1580 = vrot.slane %v1579, 4
        %v1581 = vadd.f32 %v1579, %v1580
        %v1582 = vrot.slane %v1581, 2
        %v1583 = vadd.f32 %v1581, %v1582
        %v1584 = vrot.slane %v1583, 1
        %v1585 = vadd.f32 %v1583, %v1584
        %s1586 = scalar_lea.vmem %s191, 48
        %1587 = vst.msk [vmem:[%s1586] sm:$0xff] %vm1493, %v1491
        %1588 = vst.msk [vmem:[%s1586 + $0x8] sm:$0xff] %vm1493, %v1492
        %v1589 = vsel %vm1493, %v1491, 0.0
        %1590 = vadd.xlane.f32.xlu0 %v1589
        %v1591 = vpop.xlane.xlu0 %1590
        %v1592 = vsel %vm1493, %v1492, 0.0
        %1593 = vadd.xlane.f32.xlu0 %v1592
        %v1594 = vpop.xlane.xlu0 %1593
        %v1595 = vadd.f32 %v1591, %v1594
        %v1596 = vrot.slane %v1595, 4
        %v1597 = vadd.f32 %v1595, %v1596
        %v1598 = vrot.slane %v1597, 2
        %v1599 = vadd.f32 %v1597, %v1598
        %v1600 = vrot.slane %v1599, 1
        %v1601 = vadd.f32 %v1599, %v1600
        %v1602 = vmul.f32 %v1491, %v1491
        %v1603 = vmul.f32 %v1492, %v1492
        %v1604 = vsel %vm1493, %v1602, 0.0
        %1605 = vadd.xlane.f32.xlu0 %v1604
        %v1606 = vpop.xlane.xlu0 %1605
        %v1607 = vsel %vm1493, %v1603, 0.0
        %1608 = vadd.xlane.f32.xlu0 %v1607
        %v1609 = vpop.xlane.xlu0 %1608
        %v1610 = vadd.f32 %v1606, %v1609
        %v1611 = vrot.slane %v1610, 4
        %v1612 = vadd.f32 %v1610, %v1611
        %v1613 = vrot.slane %v1612, 2
        %v1614 = vadd.f32 %v1612, %v1613
        %v1615 = vrot.slane %v1614, 1
        %v1616 = vadd.f32 %v1614, %v1615
        %vm1617 = vcmask 7168
        %v1618 = vsel %vm1617, %v1508, %v1523
        %v1619 = vsel %vm1617, %v1539, %v1554
        %v1620 = vsel %vm1617, %v1570, %v1585
        %v1621 = vsel %vm1617, %v1601, %v1616
        %v1623 = vrot.slane %v1619, 7
        %v1626 = vrot.slane %v1620, 6
        %v1629 = vrot.slane %v1621, 5
        %vm1631 = vcmask 1040384
        %v1632 = vsel %vm1631, %v1618, %v1623
        %vm1633 = vcmask 1041408
        %v1634 = vsel %vm1633, %v1632, %v1626
        %vm1635 = vcmask 1042432
        %v1636 = vsel %vm1635, %v1634, %v1629
        %vm1637 = vcmask 11264
        %1638 = vst.msk [vmem:[%s195] sm:$0xf] %vm1637, %v1636
        %p1639 = scmp.lt.s32.totalorder %s16, 1
        %s1640 = scalar_select %p1639, %s16, 1
        %s1641 = smul.addr %s1640, 8
        %s1642 = smul.addr %s1641, 8
        %s1643 = scalar_lea.vmem %s2, %s1642
        %p1644 = scmp.lt.s32.totalorder %s16, 1
        %s1645 = scalar_select %p1644, %s16, 1
        %s1646 = smul.addr %s1645, 4
        %s1647 = scalar_lea.vmem %s3, %s1646
        // Predicated region
        $region33: #{resblock_forward.3} parent=27 // pred_check
          %p1648 = pneg %p81
        $region34: #{resblock_forward.3} parent=27 // pred_check_branch
          %1650 = sbr.rel (%p1648) target = $region36
        $region35: #{resblock_forward.3} parent=27 // pred_region
          _
        $region36: #{resblock_forward.3} parent=27 // pred_fallthru
          _
        // Predicated region
        $region37: #{resblock_forward.3} parent=27 // pred_check
          %p1651 = pneg %p107
        $region38: #{resblock_forward.3} parent=27 // pred_check_branch
          %1653 = sbr.rel (%p1651) target = $region40
        $region39: #{resblock_forward.3} parent=27 // pred_region
          _
        $region40: #{resblock_forward.3} parent=27 // pred_fallthru
          _
      $region28: #{resblock_forward.3} parent=5 // pred_fallthru
        _
      %p1654 = scmp.le.s32.totalorder 2, %s11
      // Predicated region
      $region41: #{resblock_forward.3} parent=5 // pred_check
        %p1655 = pneg %p1654
      $region42: #{resblock_forward.3} parent=5 // pred_check_branch
        %1657 = sbr.rel (%p1655) target = $region44
      $region43: #{resblock_forward.3} parent=5 // pred_region
        %s1658 = ssub.s32 %s11, 2
        // Predicated region
        $region45: #{resblock_forward.3} parent=43 // pred_check
          %p1659 = pneg %p87
        $region46: #{resblock_forward.3} parent=43 // pred_check_branch
          %1661 = sbr.rel (%p1659) target = $region48
        $region47: #{resblock_forward.3} parent=43 // pred_region
          %p1662 = scmp.lt.s32.totalorder %s17, 1
          %s1663 = scalar_select %p1662, %s17, 1
          %s1664 = smul.addr %s1663, 8
          %s1665 = smul.addr %s1664, 8
          %s1666 = scalar_lea.vmem %s2, %s1665
        $region48: #{resblock_forward.3} parent=43 // pred_fallthru
          _
        // Predicated region
        $region49: #{resblock_forward.3} parent=43 // pred_check
          %p1667 = pneg %p113
        $region50: #{resblock_forward.3} parent=43 // pred_check_branch
          %1669 = sbr.rel (%p1667) target = $region52
        $region51: #{resblock_forward.3} parent=43 // pred_region
          %p1670 = scmp.lt.s32.totalorder %s17, 1
          %s1671 = scalar_select %p1670, %s17, 1
          %s1672 = smul.addr %s1671, 4
          %s1673 = scalar_lea.vmem %s3, %s1672
        $region52: #{resblock_forward.3} parent=43 // pred_fallthru
          _
      $region44: #{resblock_forward.3} parent=5 // pred_fallthru
        _
    $region6: #{resblock_forward.3} parent=1 // loop_footer
      %s15 = sadd.s32 1, %s11
    $region7: #{resblock_forward.3} parent=1 // loop_footer_branch
      %10 = sbr.rel target = $region3
    $region8: #{resblock_forward.3} parent=1 // loop_exit
      _
    %1674 = vsyncpa [#allocation3], 1
    %s1675 = scalar_lea.sflag [#allocation3], 1
    %1676 = vsyncpa %s1675, 1

// kernel: resblock_forward.4
$region0: #{resblock_forward.4}
  #allocation0 [shape = 'u32[]', space=smem, size = 0x4, offset = 0x4, fixed_abs, tag = 'smem constant byte address 0x4 - core index']
  #allocation1 [shape = 'u32[72,128]{1,0:T(1,128)}', space=vmem, size = 0x9000, scoped, tag = 'internal scratch']
  %s0 = inlined_call_operand.vmem [shape: f32[2,4,16,16], index: 0, kind: input, shape index: {}]
  %s1 = inlined_call_operand.vmem [shape: f32[8], index: 1, kind: input, shape index: {}]
  %s2 = inlined_call_operand.vmem [shape: f32[144], index: 2, kind: input, shape index: {}]
  %s3 = inlined_call_operand.vmem [shape: f32[2,4,16,16], index: 3, kind: output, shape index: {0}]
  %s4 = inlined_call_operand.vmem [shape: f32[2,4,2], index: 4, kind: output, shape index: {1}]
  %5 = xla_tuple %s3, %s4
  %s6 = sld [smem:[#allocation0]]
  $region61: #{resblock_forward.4} parent=0
    _
  %s8 = ssub.s32 1, %s6
  %s9 = scalar_select 0, %s8, %s6
  $region1: #{resblock_forward.4} parent=0
    #allocation2 [shape = 'u8[512]{0}', space=smem, size = 0x200, scoped, tag = 'input window, operand 1, single buffered']
    #allocation3 [shape = 's32[2]{0}', space=sflag, size = 0x8, scoped, tag = 'scoped memory for resblock_forward.4']
    #allocation4 [shape = 'u8[1024]{0}', space=smem, size = 0x400, scoped, tag = 'input window, operand 2, single buffered']
    #allocation5 [shape = 's32[1]{0}', space=sflag, size = 0x4, scoped, tag = 'scoped memory for resblock_forward.4']
    %10 = vsyncpa [#allocation3], 0
    %11 = vsyncpa [#allocation5], 0
    loop: start=0, step=1, limit=4
    $region2: #{resblock_forward.4} parent=1 // loop_pre_header
      _
    $region3: #{resblock_forward.4} parent=1 // loop_header
      %s13 = sphi 0, %s17
      %p14 = scmp.ge.s32.totalorder %s13, 4
      %s23 = sphi 0, %s25
      %s26 = sphi 0, %s23
      %s27 = sphi 0, %s26
      %s43 = sphi 0, %s27
      %s47 = sphi 0, %s47
      %s49 = sphi 0, %s47
      %s50 = sphi 0, %s49
      %s64 = sphi 0, %s50
      %s68 = sphi 0, %s68
      %s70 = sphi 0, %s68
      %s71 = sphi 0, %s70
      %s85 = sphi 0, %s71
      %s91 = sphi 0, %s93
      %s94 = sphi 0, %s91
      %s95 = sphi 0, %s94
      %s111 = sphi 0, %s95
      %s117 = sphi 0, %s119
      %s120 = sphi 0, %s117
      %s121 = sphi 0, %s120
      %s137 = sphi 0, %s121
    $region4: #{resblock_forward.4} parent=1 // loop_header_branch
      %16 = sbr.rel (%p14) target = $region8
    $region5: #{resblock_forward.4} parent=1 // loop_body
      %s18 = ssub.s32 %s13, 1
      %s19 = ssub.s32 %s13, 2
      %s20 = sadd.s32 %s13, 1
      %s21 = ssub.s32 %s13, %s20
      %p22 = scmp.eq.s32.totalorder %s21, 0
      %s24 = sadd.s32 %s23, 1
      %s25 = scalar_select %p22, %s23, %s24
      %p28 = pneg %p22
      %p29 = scmp.eq.s32.totalorder %s13, 1
      %p30 = por %p28, %p29
      %p31 = scmp.ne.s32.totalorder %s23, %s26
      %p32 = scmp.eq.s32.totalorder %s13, 0
      %p33 = por %p31, %p32
      %p34 = scmp.ne.s32.totalorder %s23, %s26
      %p35 = scmp.eq.s32.totalorder %s18, 1
      %p36 = por %p34, %p35
      %p37 = scmp.ne.s32.totalorder %s26, %s27
      %p38 = scmp.eq.s32.totalorder %s18, 0
      %p39 = por %p37, %p38
      %p40 = scmp.ne.s32.totalorder %s26, %s27
      %p41 = scmp.eq.s32.totalorder %s19, 1
      %p42 = por %p40, %p41
      %p44 = scmp.ne.s32.totalorder %s27, %s43
      %p45 = scmp.eq.s32.totalorder %s19, 0
      %p46 = por %p44, %p45
      %s48 = sadd.s32 %s47, 1
      %p51 = scmp.eq.s32.totalorder %s13, 1
      %p52 = scmp.ne.s32.totalorder %s47, %s49
      %p53 = scmp.eq.s32.totalorder %s13, 0
      %p54 = por %p52, %p53
      %p55 = scmp.ne.s32.totalorder %s47, %s49
      %p56 = scmp.eq.s32.totalorder %s18, 1
      %p57 = por %p55, %p56
      %p58 = scmp.ne.s32.totalorder %s49, %s50
      %p59 = scmp.eq.s32.totalorder %s18, 0
      %p60 = por %p58, %p59
      %p61 = scmp.ne.s32.totalorder %s49, %s50
      %p62 = scmp.eq.s32.totalorder %s19, 1
      %p63 = por %p61, %p62
      %p65 = scmp.ne.s32.totalorder %s50, %s64
      %p66 = scmp.eq.s32.totalorder %s19, 0
      %p67 = por %p65, %p66
      %s69 = sadd.s32 %s68, 1
      %p72 = scmp.eq.s32.totalorder %s13, 1
      %p73 = scmp.ne.s32.totalorder %s68, %s70
      %p74 = scmp.eq.s32.totalorder %s13, 0
      %p75 = por %p73, %p74
      %p76 = scmp.ne.s32.totalorder %s68, %s70
      %p77 = scmp.eq.s32.totalorder %s18, 1
      %p78 = por %p76, %p77
      %p79 = scmp.ne.s32.totalorder %s70, %s71
      %p80 = scmp.eq.s32.totalorder %s18, 0
      %p81 = por %p79, %p80
      %p82 = scmp.ne.s32.totalorder %s70, %s71
      %p83 = scmp.eq.s32.totalorder %s19, 1
      %p84 = por %p82, %p83
      %p86 = scmp.ne.s32.totalorder %s71, %s85
      %p87 = scmp.eq.s32.totalorder %s19, 0
      %p88 = por %p86, %p87
      %s89 = ssub.s32 %s13, %s20
      %p90 = scmp.eq.s32.totalorder %s89, 0
      %s92 = sadd.s32 %s91, 1
      %s93 = scalar_select %p90, %s91, %s92
      %p96 = pneg %p90
      %p97 = scmp.eq.s32.totalorder %s13, 1
      %p98 = por %p96, %p97
      %p99 = scmp.ne.s32.totalorder %s91, %s94
      %p100 = scmp.eq.s32.totalorder %s13, 0
      %p101 = por %p99, %p100
      %p102 = scmp.ne.s32.totalorder %s91, %s94
      %p103 = scmp.eq.s32.totalorder %s18, 1
      %p104 = por %p102, %p103
      %p105 = scmp.ne.s32.totalorder %s94, %s95
      %p106 = scmp.eq.s32.totalorder %s18, 0
      %p107 = por %p105, %p106
      %p108 = scmp.ne.s32.totalorder %s94, %s95
      %p109 = scmp.eq.s32.totalorder %s19, 1
      %p110 = por %p108, %p109
      %p112 = scmp.ne.s32.totalorder %s95, %s111
      %p113 = scmp.eq.s32.totalorder %s19, 0
      %p114 = por %p112, %p113
      %s115 = ssub.s32 %s13, %s20
      %p116 = scmp.eq.s32.totalorder %s115, 0
      %s118 = sadd.s32 %s117, 1
      %s119 = scalar_select %p116, %s117, %s118
      %p122 = pneg %p116
      %p123 = scmp.eq.s32.totalorder %s13, 1
      %p124 = por %p122, %p123
      %p125 = scmp.ne.s32.totalorder %s117, %s120
      %p126 = scmp.eq.s32.totalorder %s13, 0
      %p127 = por %p125, %p126
      %p128 = scmp.ne.s32.totalorder %s117, %s120
      %p129 = scmp.eq.s32.totalorder %s18, 1
      %p130 = por %p128, %p129
      %p131 = scmp.ne.s32.totalorder %s120, %s121
      %p132 = scmp.eq.s32.totalorder %s18, 0
      %p133 = por %p131, %p132
      %p134 = scmp.ne.s32.totalorder %s120, %s121
      %p135 = scmp.eq.s32.totalorder %s19, 1
      %p136 = por %p134, %p135
      %p138 = scmp.ne.s32.totalorder %s121, %s137
      %p139 = scmp.eq.s32.totalorder %s19, 0
      %p140 = por %p138, %p139
      %p141 = scmp.le.s32.totalorder 1, %s13
      %p142 = scmp.lt.s32.totalorder %s13, 3
      %p143 = pnand %p141, %p142
      %p144 = pneg %p143
      // Predicated region
      $region9: #{resblock_forward.4} parent=5 // pred_check
        _
      $region10: #{resblock_forward.4} parent=5 // pred_check_branch
        %146 = sbr.rel (%p143) target = $region12
      $region11: #{resblock_forward.4} parent=5 // pred_region
        %s147 = ssub.s32 %s13, 1
        // Predicated region
        $region13: #{resblock_forward.4} parent=11 // pred_check
          %p148 = pneg %p60
        $region14: #{resblock_forward.4} parent=11 // pred_check_branch
          %150 = sbr.rel (%p148) target = $region16
        $region15: #{resblock_forward.4} parent=11 // pred_region
          %152 = vsyncadd [#allocation3], 0
          %s154 = sshll.u32 %s1, 4
          %s155 = int_to_ptr.vmem [resolvable:$true] %s154
          %157 = dma.vmem_to_smem %s155, 16, [#allocation2], [#allocation3]
        $region16: #{resblock_forward.4} parent=11 // pred_fallthru
          _
        // Predicated region
        $region17: #{resblock_forward.4} parent=11 // pred_check
          %p158 = pneg %p81
        $region18: #{resblock_forward.4} parent=11 // pred_check_branch
          %160 = sbr.rel (%p158) target = $region20
        $region19: #{resblock_forward.4} parent=11 // pred_region
          %162 = vsyncadd [#allocation5], 0
          %s164 = sshll.u32 %s2, 4
          %s165 = int_to_ptr.vmem [resolvable:$true] %s164
          %167 = dma.vmem_to_smem %s165, 32, [#allocation4], [#allocation5]
        $region20: #{resblock_forward.4} parent=11 // pred_fallthru
          _
      $region12: #{resblock_forward.4} parent=5 // pred_fallthru
        _
      %p168 = scmp.lt.s32.totalorder %s13, 2
      // Predicated region
      $region21: #{resblock_forward.4} parent=5 // pred_check
        %p169 = pneg %p168
      $region22: #{resblock_forward.4} parent=5 // pred_check_branch
        %171 = sbr.rel (%p169) target = $region24
      $region23: #{resblock_forward.4} parent=5 // pred_region
        // Predicated region
        $region25: #{resblock_forward.4} parent=23 // pred_check
          %p172 = pneg %p33
        $region26: #{resblock_forward.4} parent=23 // pred_check_branch
          %174 = sbr.rel (%p172) target = $region28
        $region27: #{resblock_forward.4} parent=23 // pred_region
          %p175 = scmp.lt.s32.totalorder %s13, 1
          %s176 = scalar_select %p175, %s13, 1
          %s177 = smul.addr %s176, 8
          %s178 = smul.addr %s177, 8
          %s179 = scalar_lea.vmem %s0, %s178
        $region28: #{resblock_forward.4} parent=23 // pred_fallthru
          _
      $region24: #{resblock_forward.4} parent=5 // pred_fallthru
        _
      %p180 = scmp.le.s32.totalorder 1, %s13
      %p181 = scmp.lt.s32.totalorder %s13, 3
      %p182 = pnand %p180, %p181
      %p183 = pneg %p182
      // Predicated region
      $region29: #{resblock_forward.4} parent=5 // pred_check
        _
      $region30: #{resblock_forward.4} parent=5 // pred_check_branch
        %185 = sbr.rel (%p182) target = $region32
      $region31: #{resblock_forward.4} parent=5 // pred_region
        %s186 = ssub.s32 %s13, 1
        // Predicated region
        $region33: #{resblock_forward.4} parent=31 // pred_check
          %p187 = pneg %p60
        $region34: #{resblock_forward.4} parent=31 // pred_check_branch
          %189 = sbr.rel (%p187) target = $region36
        $region35: #{resblock_forward.4} parent=31 // pred_region
          %191 = dma.done [#allocation3], 16
        $region36: #{resblock_forward.4} parent=31 // pred_fallthru
          _
        // Predicated region
        $region37: #{resblock_forward.4} parent=31 // pred_check
          %p192 = pneg %p81
        $region38: #{resblock_forward.4} parent=31 // pred_check_branch
          %194 = sbr.rel (%p192) target = $region40
        $region39: #{resblock_forward.4} parent=31 // pred_region
          %196 = dma.done [#allocation5], 32
        $region40: #{resblock_forward.4} parent=31 // pred_fallthru
          _
        %197 = sfence
        %p198 = scmp.lt.s32.totalorder %s18, 1
        %s199 = scalar_select %p198, %s18, 1
        %s200 = smul.addr %s199, 8
        %s201 = smul.addr %s200, 8
        %s202 = scalar_lea.vmem %s0, %s201
        %p203 = pneg %p39
        %p204 = pneg %p36
        %p205 = pneg %p60
        %p206 = pneg %p57
        %p207 = pneg %p81
        %p208 = pneg %p78
        %p209 = pneg %p107
        %p210 = pneg %p104
        %p211 = scmp.lt.s32.totalorder %s18, 1
        %s212 = scalar_select %p211, %s18, 1
        %s213 = smul.addr %s212, 8
        %s214 = smul.addr %s213, 8
        %s215 = scalar_lea.vmem %s3, %s214
        %p216 = pneg %p133
        %p217 = pneg %p130
        %p218 = scmp.lt.s32.totalorder %s18, 1
        %s219 = scalar_select %p218, %s18, 1
        %s220 = smul.addr %s219, 4
        %s221 = scalar_lea.vmem %s4, %s220
        %p222 = scmp.lt.s32.totalorder %s18, 1
        %s223 = scalar_select %p222, %s18, 1
        %s224 = smul.addr %s223, 8
        %s225 = smul.addr %s224, 8
        %s226 = scalar_lea.vmem %s0, %s225
        %p227 = scmp.lt.s32.totalorder %s18, 1
        %s228 = scalar_select %p227, %s18, 1
        %s229 = smul.addr %s228, 8
        %s230 = smul.addr %s229, 8
        %s231 = scalar_lea.vmem %s3, %s230
        %p232 = scmp.lt.s32.totalorder %s18, 1
        %s233 = scalar_select %p232, %s18, 1
        %s234 = smul.addr %s233, 4
        %s235 = scalar_lea.vmem %s4, %s234
        %v236 = vlaneseq
        %v237 = vshrl.u32 %v236, 7
        %v238 = vadd.s32 %v237, 8
        %v239 = vlaneseq
        %v240 = vand.u32 %v239, 127
        %vm241 = vcmp.ge.s32.totalorder %v237, 1
        %vm242 = vcmp.ge.s32.totalorder %v238, 1
        %vm243 = vcmp.ge.s32.totalorder %v240, 1
        %vm244 = vmand %vm241, %vm243
        %vm245 = vmand %vm242, %vm243
        %vm246 = vcmp.lt.s32.totalorder %v240, 15
        %vm247 = vmand %vm241, %vm246
        %vm248 = vmand %vm242, %vm246
        %vm249 = vcmp.lt.s32.totalorder %v237, 15
        %vm250 = vcmp.lt.s32.totalorder %v238, 15
        %vm251 = vmand %vm249, %vm243
        %vm252 = vmand %vm250, %vm243
        %vm253 = vmand %vm249, %vm246
        %vm254 = vmand %vm250, %vm246
        %v255 = vld [vmem:[%s226] sm:$0xff]
        %v256 = vld [vmem:[%s226 + $0x8] sm:$0xff]
        %s257 = sld [smem:[#allocation2]]
        %v258 = vstv %s257
        %v259 = vmul.f32 %v255, %v258
        %v260 = vmul.f32 %v256, %v258
        %s261 = sld [smem:[#allocation2 + $0x4]]
        %v262 = vstv %s261
        %v263 = vadd.f32 %v259, %v262
        %v264 = vadd.f32 %v260, %v262
        %v265 = vmax.f32 %v263, 0.0
        %v266 = vmax.f32 %v264, 0.0
        %v267 = vrot.slane %v265, 7
        %v268 = vrot.slane %v266, 7
        %vm269 = vcmp.lt.s32.totalorder %v237, 1
        %v270 = vsel %vm269, %v267, %v268
        %v271 = vsel %vm269, %v268, %v267
        %vm272 = vcmask 1047680
        %273 = vrot.lane.b32.xlu0 %v271, 16
        %v274 = vpop.permute.xlu0 %273
        %v275 = vsel %vm272, %v274, %v271
        %276 = vrot.lane.b32.xlu0 %v270, 16
        %v277 = vpop.permute.xlu0 %276
        %v278 = vsel %vm272, %v277, %v270
        %279 = vrot.lane.b32.xlu0 %v275, 16
        %v280 = vpop.permute.xlu0 %279
        %281 = vrot.lane.b32.xlu0 %v278, 16
        %v282 = vpop.permute.xlu0 %281
        %v283 = vsel %vm272, %v280, %v271
        %v284 = vsel %vm272, %v282, %v270
        %287 = vrot.lane.b32.xlu0 %v283, 113
        %v288 = vpop.permute.xlu0 %287
        %289 = vrot.lane.b32.xlu0 %v284, 113
        %v290 = vpop.permute.xlu0 %289
        %v293 = vsel %vm244, %v288, 0.0
        %v294 = vsel %vm245, %v290, 0.0
        %s295 = sld [smem:[#allocation4]]
        %v296 = vstv %s295
        %v297 = vmul.f32 %v296, %v293
        %v298 = vmul.f32 %v296, %v294
        %s299 = sld [smem:[#allocation4 + $0x24]]
        %v300 = vstv %s299
        %v301 = vmul.f32 %v300, %v293
        %v302 = vmul.f32 %v300, %v294
        %s303 = sld [smem:[#allocation4 + $0x48]]
        %v304 = vstv %s303
        %v305 = vmul.f32 %v304, %v293
        %v306 = vmul.f32 %v304, %v294
        %s307 = sld [smem:[#allocation4 + $0x6c]]
        %v308 = vstv %s307
        %v309 = vmul.f32 %v308, %v293
        %v310 = vmul.f32 %v308, %v294
        %v311 = vsel %vm241, %v271, 0.0
        %v312 = vsel %vm242, %v270, 0.0
        %s313 = sld [smem:[#allocation4 + $0x1]]
        %v314 = vstv %s313
        %v315 = vmul.f32 %v314, %v311
        %v316 = vmul.f32 %v314, %v312
        %v317 = vadd.f32 %v297, %v315
        %v318 = vadd.f32 %v298, %v316
        %s319 = sld [smem:[#allocation4 + $0x25]]
        %v320 = vstv %s319
        %v321 = vmul.f32 %v320, %v311
        %v322 = vmul.f32 %v320, %v312
        %v323 = vadd.f32 %v301, %v321
        %v324 = vadd.f32 %v302, %v322
        %s325 = sld [smem:[#allocation4 + $0x49]]
        %v326 = vstv %s325
        %v327 = vmul.f32 %v326, %v311
        %v328 = vmul.f32 %v326, %v312
        %v329 = vadd.f32 %v305, %v327
        %v330 = vadd.f32 %v306, %v328
        %s331 = sld [smem:[#allocation4 + $0x6d]]
        %v332 = vstv %s331
        %v333 = vmul.f32 %v332, %v311
        %v334 = vmul.f32 %v332, %v312
        %v335 = vadd.f32 %v309, %v333
        %v336 = vadd.f32 %v310, %v334
        %337 = vrot.lane.b32.xlu0 %v283, 127
        %v338 = vpop.permute.xlu0 %337
        %339 = vrot.lane.b32.xlu0 %v284, 127
        %v340 = vpop.permute.xlu0 %339
        %v343 = vsel %vm247, %v338, 0.0
        %v344 = vsel %vm248, %v340, 0.0
        %s345 = sld [smem:[#allocation4 + $0x2]]
        %v346 = vstv %s345
        %v347 = vmul.f32 %v346, %v343
        %v348 = vmul.f32 %v346, %v344
        %v349 = vadd.f32 %v317, %v347
        %v350 = vadd.f32 %v318, %v348
        %s351 = sld [smem:[#allocation4 + $0x26]]
        %v352 = vstv %s351
        %v353 = vmul.f32 %v352, %v343
        %v354 = vmul.f32 %v352, %v344
        %v355 = vadd.f32 %v323, %v353
        %v356 = vadd.f32 %v324, %v354
        %s357 = sld [smem:[#allocation4 + $0x4a]]
        %v358 = vstv %s357
        %v359 = vmul.f32 %v358, %v343
        %v360 = vmul.f32 %v358, %v344
        %v361 = vadd.f32 %v329, %v359
        %v362 = vadd.f32 %v330, %v360
        %s363 = sld [smem:[#allocation4 + $0x6e]]
        %v364 = vstv %s363
        %v365 = vmul.f32 %v364, %v343
        %v366 = vmul.f32 %v364, %v344
        %v367 = vadd.f32 %v335, %v365
        %v368 = vadd.f32 %v336, %v366
        %369 = vrot.lane.b32.xlu0 %v265, 16
        %v370 = vpop.permute.xlu0 %369
        %v371 = vsel %vm272, %v370, %v265
        %372 = vrot.lane.b32.xlu0 %v266, 16
        %v373 = vpop.permute.xlu0 %372
        %v374 = vsel %vm272, %v373, %v266
        %375 = vrot.lane.b32.xlu0 %v371, 16
        %v376 = vpop.permute.xlu0 %375
        %377 = vrot.lane.b32.xlu0 %v374, 16
        %v378 = vpop.permute.xlu0 %377
        %v379 = vsel %vm272, %v376, %v265
        %v380 = vsel %vm272, %v378, %v266
        %383 = vrot.lane.b32.xlu0 %v379, 113
        %v384 = vpop.permute.xlu0 %383
        %385 = vrot.lane.b32.xlu0 %v380, 113
        %v386 = vpop.permute.xlu0 %385
        %v389 = vsel %vm243, %v384, 0.0
        %v390 = vsel %vm243, %v386, 0.0
        %s391 = sld [smem:[#allocation4 + $0x3]]
        %v392 = vstv %s391
        %v393 = vmul.f32 %v392, %v389
        %v394 = vmul.f32 %v392, %v390
        %v395 = vadd.f32 %v349, %v393
        %v396 = vadd.f32 %v350, %v394
        %s397 = sld [smem:[#allocation4 + $0x27]]
        %v398 = vstv %s397
        %v399 = vmul.f32 %v398, %v389
        %v400 = vmul.f32 %v398, %v390
        %v401 = vadd.f32 %v355, %v399
        %v402 = vadd.f32 %v356, %v400
        %s403 = sld [smem:[#allocation4 + $0x4b]]
        %v404 = vstv %s403
        %v405 = vmul.f32 %v404, %v389
        %v406 = vmul.f32 %v404, %v390
        %v407 = vadd.f32 %v361, %v405
        %v408 = vadd.f32 %v362, %v406
        %s409 = sld [smem:[#allocation4 + $0x6f]]
        %v410 = vstv %s409
        %v411 = vmul.f32 %v410, %v389
        %v412 = vmul.f32 %v410, %v390
        %v413 = vadd.f32 %v367, %v411
        %v414 = vadd.f32 %v368, %v412
        %s415 = sld [smem:[#allocation4 + $0x4]]
        %v416 = vstv %s415
        %v417 = vmul.f32 %v416, %v265
        %v418 = vmul.f32 %v416, %v266
        %v419 = vadd.f32 %v395, %v417
        %v420 = vadd.f32 %v396, %v418
        %s421 = sld [smem:[#allocation4 + $0x28]]
        %v422 = vstv %s421
        %v423 = vmul.f32 %v422, %v265
        %v424 = vmul.f32 %v422, %v266
        %v425 = vadd.f32 %v401, %v423
        %v426 = vadd.f32 %v402, %v424
        %s427 = sld [smem:[#allocation4 + $0x4c]]
        %v428 = vstv %s427
        %v429 = vmul.f32 %v428, %v265
        %v430 = vmul.f32 %v428, %v266
        %v431 = vadd.f32 %v407, %v429
        %v432 = vadd.f32 %v408, %v430
        %s433 = sld [smem:[#allocation4 + $0x70]]
        %v434 = vstv %s433
        %v435 = vmul.f32 %v434, %v265
        %v436 = vmul.f32 %v434, %v266
        %v437 = vadd.f32 %v413, %v435
        %v438 = vadd.f32 %v414, %v436
        %439 = vrot.lane.b32.xlu0 %v379, 127
        %v440 = vpop.permute.xlu0 %439
        %441 = vrot.lane.b32.xlu0 %v380, 127
        %v442 = vpop.permute.xlu0 %441
        %v445 = vsel %vm246, %v440, 0.0
        %v446 = vsel %vm246, %v442, 0.0
        %s447 = sld [smem:[#allocation4 + $0x5]]
        %v448 = vstv %s447
        %v449 = vmul.f32 %v448, %v445
        %v450 = vmul.f32 %v448, %v446
        %v451 = vadd.f32 %v419, %v449
        %v452 = vadd.f32 %v420, %v450
        %s453 = sld [smem:[#allocation4 + $0x29]]
        %v454 = vstv %s453
        %v455 = vmul.f32 %v454, %v445
        %v456 = vmul.f32 %v454, %v446
        %v457 = vadd.f32 %v425, %v455
        %v458 = vadd.f32 %v426, %v456
        %s459 = sld [smem:[#allocation4 + $0x4d]]
        %v460 = vstv %s459
        %v461 = vmul.f32 %v460, %v445
        %v462 = vmul.f32 %v460, %v446
        %v463 = vadd.f32 %v431, %v461
        %v464 = vadd.f32 %v432, %v462
        %s465 = sld [smem:[#allocation4 + $0x71]]
        %v466 = vstv %s465
        %v467 = vmul.f32 %v466, %v445
        %v468 = vmul.f32 %v466, %v446
        %v469 = vadd.f32 %v437, %v467
        %v470 = vadd.f32 %v438, %v468
        %v471 = vrot.slane %v265, 1
        %v472 = vrot.slane %v266, 1
        %vm473 = vcmp.lt.s32.totalorder %v237, 7
        %v474 = vsel %vm473, %v471, %v472
        %v475 = vsel %vm473, %v472, %v471
        %476 = vrot.lane.b32.xlu0 %v474, 16
        %v477 = vpop.permute.xlu0 %476
        %v478 = vsel %vm272, %v477, %v474
        %479 = vrot.lane.b32.xlu0 %v475, 16
        %v480 = vpop.permute.xlu0 %479
        %v481 = vsel %vm272, %v480, %v475
        %482 = vrot.lane.b32.xlu0 %v478, 16
        %v483 = vpop.permute.xlu0 %482
        %484 = vrot.lane.b32.xlu0 %v481, 16
        %v485 = vpop.permute.xlu0 %484
        %v486 = vsel %vm272, %v483, %v474
        %v487 = vsel %vm272, %v485, %v475
        %490 = vrot.lane.b32.xlu0 %v486, 113
        %v491 = vpop.permute.xlu0 %490
        %492 = vrot.lane.b32.xlu0 %v487, 113
        %v493 = vpop.permute.xlu0 %492
        %v496 = vsel %vm251, %v491, 0.0
        %v497 = vsel %vm252, %v493, 0.0
        %s498 = sld [smem:[#allocation4 + $0x6]]
        %v499 = vstv %s498
        %v500 = vmul.f32 %v499, %v496
        %v501 = vmul.f32 %v499, %v497
        %v502 = vadd.f32 %v451, %v500
        %v503 = vadd.f32 %v452, %v501
        %s504 = sld [smem:[#allocation4 + $0x2a]]
        %v505 = vstv %s504
        %v506 = vmul.f32 %v505, %v496
        %v507 = vmul.f32 %v505, %v497
        %v508 = vadd.f32 %v457, %v506
        %v509 = vadd.f32 %v458, %v507
        %s510 = sld [smem:[#allocation4 + $0x4e]]
        %v511 = vstv %s510
        %v512 = vmul.f32 %v511, %v496
        %v513 = vmul.f32 %v511, %v497
        %v514 = vadd.f32 %v463, %v512
        %v515 = vadd.f32 %v464, %v513
        %s516 = sld [smem:[#allocation4 + $0x72]]
        %v517 = vstv %s516
        %v518 = vmul.f32 %v517, %v496
        %v519 = vmul.f32 %v517, %v497
        %v520 = vadd.f32 %v469, %v518
        %v521 = vadd.f32 %v470, %v519
        %v522 = vsel %vm249, %v474, 0.0
        %v523 = vsel %vm250, %v475, 0.0
        %s524 = sld [smem:[#allocation4 + $0x7]]
        %v525 = vstv %s524
        %v526 = vmul.f32 %v525, %v522
        %v527 = vmul.f32 %v525, %v523
        %v528 = vadd.f32 %v502, %v526
        %v529 = vadd.f32 %v503, %v527
        %s530 = sld [smem:[#allocation4 + $0x2b]]
        %v531 = vstv %s530
        %v532 = vmul.f32 %v531, %v522
        %v533 = vmul.f32 %v531, %v523
        %v534 = vadd.f32 %v508, %v532
        %v535 = vadd.f32 %v509, %v533
        %s536 = sld [smem:[#allocation4 + $0x4f]]
        %v537 = vstv %s536
        %v538 = vmul.f32 %v537, %v522
        %v539 = vmul.f32 %v537, %v523
        %v540 = vadd.f32 %v514, %v538
        %v541 = vadd.f32 %v515, %v539
        %s542 = sld [smem:[#allocation4 + $0x73]]
        %v543 = vstv %s542
        %v544 = vmul.f32 %v543, %v522
        %v545 = vmul.f32 %v543, %v523
        %v546 = vadd.f32 %v520, %v544
        %v547 = vadd.f32 %v521, %v545
        %548 = vrot.lane.b32.xlu0 %v486, 127
        %v549 = vpop.permute.xlu0 %548
        %550 = vrot.lane.b32.xlu0 %v487, 127
        %v551 = vpop.permute.xlu0 %550
        %v554 = vsel %vm253, %v549, 0.0
        %v555 = vsel %vm254, %v551, 0.0
        %s556 = sld [smem:[#allocation4 + $0x8]]
        %v557 = vstv %s556
        %v558 = vmul.f32 %v557, %v554
        %v559 = vmul.f32 %v557, %v555
        %v560 = vadd.f32 %v528, %v558
        %v561 = vadd.f32 %v529, %v559
        %s562 = sld [smem:[#allocation4 + $0x2c]]
        %v563 = vstv %s562
        %v564 = vmul.f32 %v563, %v554
        %v565 = vmul.f32 %v563, %v555
        %v566 = vadd.f32 %v534, %v564
        %v567 = vadd.f32 %v535, %v565
        %s568 = sld [smem:[#allocation4 + $0x50]]
        %v569 = vstv %s568
        %v570 = vmul.f32 %v569, %v554
        %v571 = vmul.f32 %v569, %v555
        %v572 = vadd.f32 %v540, %v570
        %v573 = vadd.f32 %v541, %v571
        %s574 = sld [smem:[#allocation4 + $0x74]]
        %v575 = vstv %s574
        %v576 = vmul.f32 %v575, %v554
        %v577 = vmul.f32 %v575, %v555
        %v578 = vadd.f32 %v546, %v576
        %v579 = vadd.f32 %v547, %v577
        %s580 = scalar_lea.vmem %s226, 16
        %v581 = vld [vmem:[%s580] sm:$0xff]
        %v582 = vld [vmem:[%s580 + $0x8] sm:$0xff]
        %s583 = sld [smem:[#allocation2 + $0x1]]
        %v584 = vstv %s583
        %v585 = vmul.f32 %v581, %v584
        %v586 = vmul.f32 %v582, %v584
        %s587 = sld [smem:[#allocation2 + $0x5]]
        %v588 = vstv %s587
        %v589 = vadd.f32 %v585, %v588
        %v590 = vadd.f32 %v586, %v588
        %v591 = vmax.f32 %v589, 0.0
        %v592 = vmax.f32 %v590, 0.0
        %v593 = vrot.slane %v591, 7
        %v594 = vrot.slane %v592, 7
        %v595 = vsel %vm269, %v593, %v594
        %v596 = vsel %vm269, %v594, %v593
        %597 = vrot.lane.b32.xlu0 %v596, 16
        %v598 = vpop.permute.xlu0 %597
        %v599 = vsel %vm272, %v598, %v596
        %600 = vrot.lane.b32.xlu0 %v595, 16
        %v601 = vpop.permute.xlu0 %600
        %v602 = vsel %vm272, %v601, %v595
        %603 = vrot.lane.b32.xlu0 %v599, 16
        %v604 = vpop.permute.xlu0 %603
        %605 = vrot.lane.b32.xlu0 %v602, 16
        %v606 = vpop.permute.xlu0 %605
        %v607 = vsel %vm272, %v604, %v596
        %v608 = vsel %vm272, %v606, %v595
        %611 = vrot.lane.b32.xlu0 %v607, 113
        %v612 = vpop.permute.xlu0 %611
        %613 = vrot.lane.b32.xlu0 %v608, 113
        %v614 = vpop.permute.xlu0 %613
        %v617 = vsel %vm244, %v612, 0.0
        %v618 = vsel %vm245, %v614, 0.0
        %s619 = sld [smem:[#allocation4 + $0x9]]
        %v620 = vstv %s619
        %v621 = vmul.f32 %v620, %v617
        %v622 = vmul.f32 %v620, %v618
        %v623 = vadd.f32 %v560, %v621
        %v624 = vadd.f32 %v561, %v622
        %s625 = sld [smem:[#allocation4 + $0x2d]]
        %v626 = vstv %s625
        %v627 = vmul.f32 %v626, %v617
        %v628 = vmul.f32 %v626, %v618
        %v629 = vadd.f32 %v566, %v627
        %v630 = vadd.f32 %v567, %v628
        %s631 = sld [smem:[#allocation4 + $0x51]]
        %v632 = vstv %s631
        %v633 = vmul.f32 %v632, %v617
        %v634 = vmul.f32 %v632, %v618
        %v635 = vadd.f32 %v572, %v633
        %v636 = vadd.f32 %v573, %v634
        %s637 = sld [smem:[#allocation4 + $0x75]]
        %v638 = vstv %s637
        %v639 = vmul.f32 %v638, %v617
        %v640 = vmul.f32 %v638, %v618
        %v641 = vadd.f32 %v578, %v639
        %v642 = vadd.f32 %v579, %v640
        %v643 = vsel %vm241, %v596, 0.0
        %v644 = vsel %vm242, %v595, 0.0
        %s645 = sld [smem:[#allocation4 + $0xa]]
        %v646 = vstv %s645
        %v647 = vmul.f32 %v646, %v643
        %v648 = vmul.f32 %v646, %v644
        %v649 = vadd.f32 %v623, %v647
        %v650 = vadd.f32 %v624, %v648
        %s651 = sld [smem:[#allocation4 + $0x2e]]
        %v652 = vstv %s651
        %v653 = vmul.f32 %v652, %v643
        %v654 = vmul.f32 %v652, %v644
        %v655 = vadd.f32 %v629, %v653
        %v656 = vadd.f32 %v630, %v654
        %s657 = sld [smem:[#allocation4 + $0x52]]
        %v658 = vstv %s657
        %v659 = vmul.f32 %v658, %v643
        %v660 = vmul.f32 %v658, %v644
        %v661 = vadd.f32 %v635, %v659
        %v662 = vadd.f32 %v636, %v660
        %s663 = sld [smem:[#allocation4 + $0x76]]
        %v664 = vstv %s663
        %v665 = vmul.f32 %v664, %v643
        %v666 = vmul.f32 %v664, %v644
        %v667 = vadd.f32 %v641, %v665
        %v668 = vadd.f32 %v642, %v666
        %669 = vrot.lane.b32.xlu0 %v607, 127
        %v670 = vpop.permute.xlu0 %669
        %671 = vrot.lane.b32.xlu0 %v608, 127
        %v672 = vpop.permute.xlu0 %671
        %v675 = vsel %vm247, %v670, 0.0
        %v676 = vsel %vm248, %v672, 0.0
        %s677 = sld [smem:[#allocation4 + $0xb]]
        %v678 = vstv %s677
        %v679 = vmul.f32 %v678, %v675
        %v680 = vmul.f32 %v678, %v676
        %v681 = vadd.f32 %v649, %v679
        %v682 = vadd.f32 %v650, %v680
        %s683 = sld [smem:[#allocation4 + $0x2f]]
        %v684 = vstv %s683
        %v685 = vmul.f32 %v684, %v675
        %v686 = vmul.f32 %v684, %v676
        %v687 = vadd.f32 %v655, %v685
        %v688 = vadd.f32 %v656, %v686
        %s689 = sld [smem:[#allocation4 + $0x53]]
        %v690 = vstv %s689
        %v691 = vmul.f32 %v690, %v675
        %v692 = vmul.f32 %v690, %v676
        %v693 = vadd.f32 %v661, %v691
        %v694 = vadd.f32 %v662, %v692
        %s695 = sld [smem:[#allocation4 + $0x77]]
        %v696 = vstv %s695
        %v697 = vmul.f32 %v696, %v675
        %v698 = vmul.f32 %v696, %v676
        %v699 = vadd.f32 %v667, %v697
        %v700 = vadd.f32 %v668, %v698
        %701 = vrot.lane.b32.xlu0 %v591, 16
        %v702 = vpop.permute.xlu0 %701
        %v703 = vsel %vm272, %v702, %v591
        %704 = vrot.lane.b32.xlu0 %v592, 16
        %v705 = vpop.permute.xlu0 %704
        %v706 = vsel %vm272, %v705, %v592
        %707 = vrot.lane.b32.xlu0 %v703, 16
        %v708 = vpop.permute.xlu0 %707
        %709 = vrot.lane.b32.xlu0 %v706, 16
        %v710 = vpop.permute.xlu0 %709
        %v711 = vsel %vm272, %v708, %v591
        %v712 = vsel %vm272, %v710, %v592
        %715 = vrot.lane.b32.xlu0 %v711, 113
        %v716 = vpop.permute.xlu0 %715
        %717 = vrot.lane.b32.xlu0 %v712, 113
        %v718 = vpop.permute.xlu0 %717
        %v721 = vsel %vm243, %v716, 0.0
        %v722 = vsel %vm243, %v718, 0.0
        %s723 = sld [smem:[#allocation4 + $0xc]]
        %v724 = vstv %s723
        %v725 = vmul.f32 %v724, %v721
        %v726 = vmul.f32 %v724, %v722
        %v727 = vadd.f32 %v681, %v725
        %v728 = vadd.f32 %v682, %v726
        %s729 = sld [smem:[#allocation4 + $0x30]]
        %v730 = vstv %s729
        %v731 = vmul.f32 %v730, %v721
        %v732 = vmul.f32 %v730, %v722
        %v733 = vadd.f32 %v687, %v731
        %v734 = vadd.f32 %v688, %v732
        %s735 = sld [smem:[#allocation4 + $0x54]]
        %v736 = vstv %s735
        %v737 = vmul.f32 %v736, %v721
        %v738 = vmul.f32 %v736, %v722
        %v739 = vadd.f32 %v693, %v737
        %v740 = vadd.f32 %v694, %v738
        %s741 = sld [smem:[#allocation4 + $0x78]]
        %v742 = vstv %s741
        %v743 = vmul.f32 %v742, %v721
        %v744 = vmul.f32 %v742, %v722
        %v745 = vadd.f32 %v699, %v743
        %v746 = vadd.f32 %v700, %v744
        %s747 = sld [smem:[#allocation4 + $0xd]]
        %v748 = vstv %s747
        %v749 = vmul.f32 %v748, %v591
        %v750 = vmul.f32 %v748, %v592
        %v751 = vadd.f32 %v727, %v749
        %v752 = vadd.f32 %v728, %v750
        %s753 = sld [smem:[#allocation4 + $0x31]]
        %v754 = vstv %s753
        %v755 = vmul.f32 %v754, %v591
        %v756 = vmul.f32 %v754, %v592
        %v757 = vadd.f32 %v733, %v755
        %v758 = vadd.f32 %v734, %v756
        %s759 = sld [smem:[#allocation4 + $0x55]]
        %v760 = vstv %s759
        %v761 = vmul.f32 %v760, %v591
        %v762 = vmul.f32 %v760, %v592
        %v763 = vadd.f32 %v739, %v761
        %v764 = vadd.f32 %v740, %v762
        %s765 = sld [smem:[#allocation4 + $0x79]]
        %v766 = vstv %s765
        %v767 = vmul.f32 %v766, %v591
        %v768 = vmul.f32 %v766, %v592
        %v769 = vadd.f32 %v745, %v767
        %v770 = vadd.f32 %v746, %v768
        %771 = vrot.lane.b32.xlu0 %v711, 127
        %v772 = vpop.permute.xlu0 %771
        %773 = vrot.lane.b32.xlu0 %v712, 127
        %v774 = vpop.permute.xlu0 %773
        %v777 = vsel %vm246, %v772, 0.0
        %v778 = vsel %vm246, %v774, 0.0
        %s779 = sld [smem:[#allocation4 + $0xe]]
        %v780 = vstv %s779
        %v781 = vmul.f32 %v780, %v777
        %v782 = vmul.f32 %v780, %v778
        %v783 = vadd.f32 %v751, %v781
        %v784 = vadd.f32 %v752, %v782
        %s785 = sld [smem:[#allocation4 + $0x32]]
        %v786 = vstv %s785
        %v787 = vmul.f32 %v786, %v777
        %v788 = vmul.f32 %v786, %v778
        %v789 = vadd.f32 %v757, %v787
        %v790 = vadd.f32 %v758, %v788
        %s791 = sld [smem:[#allocation4 + $0x56]]
        %v792 = vstv %s791
        %v793 = vmul.f32 %v792, %v777
        %v794 = vmul.f32 %v792, %v778
        %v795 = vadd.f32 %v763, %v793
        %v796 = vadd.f32 %v764, %v794
        %s797 = sld [smem:[#allocation4 + $0x7a]]
        %v798 = vstv %s797
        %v799 = vmul.f32 %v798, %v777
        %v800 = vmul.f32 %v798, %v778
        %v801 = vadd.f32 %v769, %v799
        %v802 = vadd.f32 %v770, %v800
        %v803 = vrot.slane %v591, 1
        %v804 = vrot.slane %v592, 1
        %v805 = vsel %vm473, %v803, %v804
        %v806 = vsel %vm473, %v804, %v803
        %807 = vrot.lane.b32.xlu0 %v805, 16
        %v808 = vpop.permute.xlu0 %807
        %v809 = vsel %vm272, %v808, %v805
        %810 = vrot.lane.b32.xlu0 %v806, 16
        %v811 = vpop.permute.xlu0 %810
        %v812 = vsel %vm272, %v811, %v806
        %813 = vrot.lane.b32.xlu0 %v809, 16
        %v814 = vpop.permute.xlu0 %813
        %815 = vrot.lane.b32.xlu0 %v812, 16
        %v816 = vpop.permute.xlu0 %815
        %v817 = vsel %vm272, %v814, %v805
        %v818 = vsel %vm272, %v816, %v806
        %821 = vrot.lane.b32.xlu0 %v817, 113
        %v822 = vpop.permute.xlu0 %821
        %823 = vrot.lane.b32.xlu0 %v818, 113
        %v824 = vpop.permute.xlu0 %823
        %v827 = vsel %vm251, %v822, 0.0
        %v828 = vsel %vm252, %v824, 0.0
        %s829 = sld [smem:[#allocation4 + $0xf]]
        %v830 = vstv %s829
        %v831 = vmul.f32 %v830, %v827
        %v832 = vmul.f32 %v830, %v828
        %v833 = vadd.f32 %v783, %v831
        %v834 = vadd.f32 %v784, %v832
        %s835 = sld [smem:[#allocation4 + $0x33]]
        %v836 = vstv %s835
        %v837 = vmul.f32 %v836, %v827
        %v838 = vmul.f32 %v836, %v828
        %v839 = vadd.f32 %v789, %v837
        %v840 = vadd.f32 %v790, %v838
        %s841 = sld [smem:[#allocation4 + $0x57]]
        %v842 = vstv %s841
        %v843 = vmul.f32 %v842, %v827
        %v844 = vmul.f32 %v842, %v828
        %v845 = vadd.f32 %v795, %v843
        %v846 = vadd.f32 %v796, %v844
        %s847 = sld [smem:[#allocation4 + $0x7b]]
        %v848 = vstv %s847
        %v849 = vmul.f32 %v848, %v827
        %v850 = vmul.f32 %v848, %v828
        %v851 = vadd.f32 %v801, %v849
        %v852 = vadd.f32 %v802, %v850
        %v853 = vsel %vm249, %v805, 0.0
        %v854 = vsel %vm250, %v806, 0.0
        %s855 = sld [smem:[#allocation4 + $0x10]]
        %v856 = vstv %s855
        %v857 = vmul.f32 %v856, %v853
        %v858 = vmul.f32 %v856, %v854
        %v859 = vadd.f32 %v833, %v857
        %v860 = vadd.f32 %v834, %v858
        %s861 = sld [smem:[#allocation4 + $0x34]]
        %v862 = vstv %s861
        %v863 = vmul.f32 %v862, %v853
        %v864 = vmul.f32 %v862, %v854
        %v865 = vadd.f32 %v839, %v863
        %v866 = vadd.f32 %v840, %v864
        %s867 = sld [smem:[#allocation4 + $0x58]]
        %v868 = vstv %s867
        %v869 = vmul.f32 %v868, %v853
        %v870 = vmul.f32 %v868, %v854
        %v871 = vadd.f32 %v845, %v869
        %v872 = vadd.f32 %v846, %v870
        %s873 = sld [smem:[#allocation4 + $0x7c]]
        %v874 = vstv %s873
        %v875 = vmul.f32 %v874, %v853
        %v876 = vmul.f32 %v874, %v854
        %v877 = vadd.f32 %v851, %v875
        %v878 = vadd.f32 %v852, %v876
        %879 = vrot.lane.b32.xlu0 %v817, 127
        %v880 = vpop.permute.xlu0 %879
        %881 = vrot.lane.b32.xlu0 %v818, 127
        %v882 = vpop.permute.xlu0 %881
        %v885 = vsel %vm253, %v880, 0.0
        %v886 = vsel %vm254, %v882, 0.0
        %s887 = sld [smem:[#allocation4 + $0x11]]
        %v888 = vstv %s887
        %v889 = vmul.f32 %v888, %v885
        %v890 = vmul.f32 %v888, %v886
        %v891 = vadd.f32 %v859, %v889
        %v892 = vadd.f32 %v860, %v890
        %s893 = sld [smem:[#allocation4 + $0x35]]
        %v894 = vstv %s893
        %v895 = vmul.f32 %v894, %v885
        %v896 = vmul.f32 %v894, %v886
        %v897 = vadd.f32 %v865, %v895
        %v898 = vadd.f32 %v866, %v896
        %s899 = sld [smem:[#allocation4 + $0x59]]
        %v900 = vstv %s899
        %v901 = vmul.f32 %v900, %v885
        %v902 = vmul.f32 %v900, %v886
        %v903 = vadd.f32 %v871, %v901
        %v904 = vadd.f32 %v872, %v902
        %s905 = sld [smem:[#allocation4 + $0x7d]]
        %v906 = vstv %s905
        %v907 = vmul.f32 %v906, %v885
        %v908 = vmul.f32 %v906, %v886
        %v909 = vadd.f32 %v877, %v907
        %v910 = vadd.f32 %v878, %v908
        %s911 = scalar_lea.vmem %s226, 32
        %v912 = vld [vmem:[%s911] sm:$0xff]
        %v913 = vld [vmem:[%s911 + $0x8] sm:$0xff]
        %s914 = sld [smem:[#allocation2 + $0x2]]
        %v915 = vstv %s914
        %v916 = vmul.f32 %v912, %v915
        %v917 = vmul.f32 %v913, %v915
        %s918 = sld [smem:[#allocation2 + $0x6]]
        %v919 = vstv %s918
        %v920 = vadd.f32 %v916, %v919
        %v921 = vadd.f32 %v917, %v919
        %v922 = vmax.f32 %v920, 0.0
        %v923 = vmax.f32 %v921, 0.0
        %v924 = vrot.slane %v922, 7
        %v925 = vrot.slane %v923, 7
        %v926 = vsel %vm269, %v924, %v925
        %v927 = vsel %vm269, %v925, %v924
        %928 = vrot.lane.b32.xlu0 %v927, 16
        %v929 = vpop.permute.xlu0 %928
        %v930 = vsel %vm272, %v929, %v927
        %931 = vrot.lane.b32.xlu0 %v926, 16
        %v932 = vpop.permute.xlu0 %931
        %v933 = vsel %vm272, %v932, %v926
        %934 = vrot.lane.b32.xlu0 %v930, 16
        %v935 = vpop.permute.xlu0 %934
        %936 = vrot.lane.b32.xlu0 %v933, 16
        %v937 = vpop.permute.xlu0 %936
        %v938 = vsel %vm272, %v935, %v927
        %v939 = vsel %vm272, %v937, %v926
        %942 = vrot.lane.b32.xlu0 %v938, 113
        %v943 = vpop.permute.xlu0 %942
        %944 = vrot.lane.b32.xlu0 %v939, 113
        %v945 = vpop.permute.xlu0 %944
        %v948 = vsel %vm244, %v943, 0.0
        %v949 = vsel %vm245, %v945, 0.0
        %s950 = sld [smem:[#allocation4 + $0x12]]
        %v951 = vstv %s950
        %v952 = vmul.f32 %v951, %v948
        %v953 = vmul.f32 %v951, %v949
        %v954 = vadd.f32 %v891, %v952
        %v955 = vadd.f32 %v892, %v953
        %s956 = sld [smem:[#allocation4 + $0x36]]
        %v957 = vstv %s956
        %v958 = vmul.f32 %v957, %v948
        %v959 = vmul.f32 %v957, %v949
        %v960 = vadd.f32 %v897, %v958
        %v961 = vadd.f32 %v898, %v959
        %s962 = sld [smem:[#allocation4 + $0x5a]]
        %v963 = vstv %s962
        %v964 = vmul.f32 %v963, %v948
        %v965 = vmul.f32 %v963, %v949
        %v966 = vadd.f32 %v903, %v964
        %v967 = vadd.f32 %v904, %v965
        %s968 = sld [smem:[#allocation4 + $0x7e]]
        %v969 = vstv %s968
        %v970 = vmul.f32 %v969, %v948
        %v971 = vmul.f32 %v969, %v949
        %v972 = vadd.f32 %v909, %v970
        %v973 = vadd.f32 %v910, %v971
        %v974 = vsel %vm241, %v927, 0.0
        %v975 = vsel %vm242, %v926, 0.0
        %s976 = sld [smem:[#allocation4 + $0x13]]
        %v977 = vstv %s976
        %v978 = vmul.f32 %v977, %v974
        %v979 = vmul.f32 %v977, %v975
        %v980 = vadd.f32 %v954, %v978
        %v981 = vadd.f32 %v955, %v979
        %s982 = sld [smem:[#allocation4 + $0x37]]
        %v983 = vstv %s982
        %v984 = vmul.f32 %v983, %v974
        %v985 = vmul.f32 %v983, %v975
        %v986 = vadd.f32 %v960, %v984
        %v987 = vadd.f32 %v961, %v985
        %s988 = sld [smem:[#allocation4 + $0x5b]]
        %v989 = vstv %s988
        %v990 = vmul.f32 %v989, %v974
        %v991 = vmul.f32 %v989, %v975
        %v992 = vadd.f32 %v966, %v990
        %v993 = vadd.f32 %v967, %v991
        %s994 = sld [smem:[#allocation4 + $0x7f]]
        %v995 = vstv %s994
        %v996 = vmul.f32 %v995, %v974
        %v997 = vmul.f32 %v995, %v975
        %v998 = vadd.f32 %v972, %v996
        %v999 = vadd.f32 %v973, %v997
        %1000 = vrot.lane.b32.xlu0 %v938, 127
        %v1001 = vpop.permute.xlu0 %1000
        %1002 = vrot.lane.b32.xlu0 %v939, 127
        %v1003 = vpop.permute.xlu0 %1002
        %v1006 = vsel %vm247, %v1001, 0.0
        %v1007 = vsel %vm248, %v1003, 0.0
        %s1008 = sld [smem:[#allocation4 + $0x14]]
        %v1009 = vstv %s1008
        %v1010 = vmul.f32 %v1009, %v1006
        %v1011 = vmul.f32 %v1009, %v1007
        %v1012 = vadd.f32 %v980, %v1010
        %v1013 = vadd.f32 %v981, %v1011
        %s1014 = sld [smem:[#allocation4 + $0x38]]
        %v1015 = vstv %s1014
        %v1016 = vmul.f32 %v1015, %v1006
        %v1017 = vmul.f32 %v1015, %v1007
        %v1018 = vadd.f32 %v986, %v1016
        %v1019 = vadd.f32 %v987, %v1017
        %s1020 = sld [smem:[#allocation4 + $0x5c]]
        %v1021 = vstv %s1020
        %v1022 = vmul.f32 %v1021, %v1006
        %v1023 = vmul.f32 %v1021, %v1007
        %v1024 = vadd.f32 %v992, %v1022
        %v1025 = vadd.f32 %v993, %v1023
        %s1026 = sld [smem:[#allocation4 + $0x80]]
        %v1027 = vstv %s1026
        %v1028 = vmul.f32 %v1027, %v1006
        %v1029 = vmul.f32 %v1027, %v1007
        %v1030 = vadd.f32 %v998, %v1028
        %v1031 = vadd.f32 %v999, %v1029
        %1032 = vrot.lane.b32.xlu0 %v922, 16
        %v1033 = vpop.permute.xlu0 %1032
        %v1034 = vsel %vm272, %v1033, %v922
        %1035 = vrot.lane.b32.xlu0 %v923, 16
        %v1036 = vpop.permute.xlu0 %1035
        %v1037 = vsel %vm272, %v1036, %v923
        %1038 = vrot.lane.b32.xlu0 %v1034, 16
        %v1039 = vpop.permute.xlu0 %1038
        %1040 = vrot.lane.b32.xlu0 %v1037, 16
        %v1041 = vpop.permute.xlu0 %1040
        %v1042 = vsel %vm272, %v1039, %v922
        %v1043 = vsel %vm272, %v1041, %v923
        %1046 = vrot.lane.b32.xlu0 %v1042, 113
        %v1047 = vpop.permute.xlu0 %1046
        %1048 = vrot.lane.b32.xlu0 %v1043, 113
        %v1049 = vpop.permute.xlu0 %1048
        %v1052 = vsel %vm243, %v1047, 0.0
        %v1053 = vsel %vm243, %v1049, 0.0
        %s1054 = sld [smem:[#allocation4 + $0x15]]
        %v1055 = vstv %s1054
        %v1056 = vmul.f32 %v1055, %v1052
        %v1057 = vmul.f32 %v1055, %v1053
        %v1058 = vadd.f32 %v1012, %v1056
        %v1059 = vadd.f32 %v1013, %v1057
        %s1060 = sld [smem:[#allocation4 + $0x39]]
        %v1061 = vstv %s1060
        %v1062 = vmul.f32 %v1061, %v1052
        %v1063 = vmul.f32 %v1061, %v1053
        %v1064 = vadd.f32 %v1018, %v1062
        %v1065 = vadd.f32 %v1019, %v1063
        %s1066 = sld [smem:[#allocation4 + $0x5d]]
        %v1067 = vstv %s1066
        %v1068 = vmul.f32 %v1067, %v1052
        %v1069 = vmul.f32 %v1067, %v1053
        %v1070 = vadd.f32 %v1024, %v1068
        %v1071 = vadd.f32 %v1025, %v1069
        %s1072 = sld [smem:[#allocation4 + $0x81]]
        %v1073 = vstv %s1072
        %v1074 = vmul.f32 %v1073, %v1052
        %v1075 = vmul.f32 %v1073, %v1053
        %v1076 = vadd.f32 %v1030, %v1074
        %v1077 = vadd.f32 %v1031, %v1075
        %s1078 = sld [smem:[#allocation4 + $0x16]]
        %v1079 = vstv %s1078
        %v1080 = vmul.f32 %v1079, %v922
        %v1081 = vmul.f32 %v1079, %v923
        %v1082 = vadd.f32 %v1058, %v1080
        %v1083 = vadd.f32 %v1059, %v1081
        %s1084 = sld [smem:[#allocation4 + $0x3a]]
        %v1085 = vstv %s1084
        %v1086 = vmul.f32 %v1085, %v922
        %v1087 = vmul.f32 %v1085, %v923
        %v1088 = vadd.f32 %v1064, %v1086
        %v1089 = vadd.f32 %v1065, %v1087
        %s1090 = sld [smem:[#allocation4 + $0x5e]]
        %v1091 = vstv %s1090
        %v1092 = vmul.f32 %v1091, %v922
        %v1093 = vmul.f32 %v1091, %v923
        %v1094 = vadd.f32 %v1070, %v1092
        %v1095 = vadd.f32 %v1071, %v1093
        %s1096 = sld [smem:[#allocation4 + $0x82]]
        %v1097 = vstv %s1096
        %v1098 = vmul.f32 %v1097, %v922
        %v1099 = vmul.f32 %v1097, %v923
        %v1100 = vadd.f32 %v1076, %v1098
        %v1101 = vadd.f32 %v1077, %v1099
        %1102 = vrot.lane.b32.xlu0 %v1042, 127
        %v1103 = vpop.permute.xlu0 %1102
        %1104 = vrot.lane.b32.xlu0 %v1043, 127
        %v1105 = vpop.permute.xlu0 %1104
        %v1108 = vsel %vm246, %v1103, 0.0
        %v1109 = vsel %vm246, %v1105, 0.0
        %s1110 = sld [smem:[#allocation4 + $0x17]]
        %v1111 = vstv %s1110
        %v1112 = vmul.f32 %v1111, %v1108
        %v1113 = vmul.f32 %v1111, %v1109
        %v1114 = vadd.f32 %v1082, %v1112
        %v1115 = vadd.f32 %v1083, %v1113
        %s1116 = sld [smem:[#allocation4 + $0x3b]]
        %v1117 = vstv %s1116
        %v1118 = vmul.f32 %v1117, %v1108
        %v1119 = vmul.f32 %v1117, %v1109
        %v1120 = vadd.f32 %v1088, %v1118
        %v1121 = vadd.f32 %v1089, %v1119
        %s1122 = sld [smem:[#allocation4 + $0x5f]]
        %v1123 = vstv %s1122
        %v1124 = vmul.f32 %v1123, %v1108
        %v1125 = vmul.f32 %v1123, %v1109
        %v1126 = vadd.f32 %v1094, %v1124
        %v1127 = vadd.f32 %v1095, %v1125
        %s1128 = sld [smem:[#allocation4 + $0x83]]
        %v1129 = vstv %s1128
        %v1130 = vmul.f32 %v1129, %v1108
        %v1131 = vmul.f32 %v1129, %v1109
        %v1132 = vadd.f32 %v1100, %v1130
        %v1133 = vadd.f32 %v1101, %v1131
        %v1134 = vrot.slane %v922, 1
        %v1135 = vrot.slane %v923, 1
        %v1136 = vsel %vm473, %v1134, %v1135
        %v1137 = vsel %vm473, %v1135, %v1134
        %1138 = vrot.lane.b32.xlu0 %v1136, 16
        %v1139 = vpop.permute.xlu0 %1138
        %v1140 = vsel %vm272, %v1139, %v1136
        %1141 = vrot.lane.b32.xlu0 %v1137, 16
        %v1142 = vpop.permute.xlu0 %1141
        %v1143 = vsel %vm272, %v1142, %v1137
        %1144 = vrot.lane.b32.xlu0 %v1140, 16
        %v1145 = vpop.permute.xlu0 %1144
        %1146 = vrot.lane.b32.xlu0 %v1143, 16
        %v1147 = vpop.permute.xlu0 %1146
        %v1148 = vsel %vm272, %v1145, %v1136
        %v1149 = vsel %vm272, %v1147, %v1137
        %1152 = vrot.lane.b32.xlu0 %v1148, 113
        %v1153 = vpop.permute.xlu0 %1152
        %1154 = vrot.lane.b32.xlu0 %v1149, 113
        %v1155 = vpop.permute.xlu0 %1154
        %v1158 = vsel %vm251, %v1153, 0.0
        %v1159 = vsel %vm252, %v1155, 0.0
        %s1160 = sld [smem:[#allocation4 + $0x18]]
        %v1161 = vstv %s1160
        %v1162 = vmul.f32 %v1161, %v1158
        %v1163 = vmul.f32 %v1161, %v1159
        %v1164 = vadd.f32 %v1114, %v1162
        %v1165 = vadd.f32 %v1115, %v1163
        %s1166 = sld [smem:[#allocation4 + $0x3c]]
        %v1167 = vstv %s1166
        %v1168 = vmul.f32 %v1167, %v1158
        %v1169 = vmul.f32 %v1167, %v1159
        %v1170 = vadd.f32 %v1120, %v1168
        %v1171 = vadd.f32 %v1121, %v1169
        %s1172 = sld [smem:[#allocation4 + $0x60]]
        %v1173 = vstv %s1172
        %v1174 = vmul.f32 %v1173, %v1158
        %v1175 = vmul.f32 %v1173, %v1159
        %v1176 = vadd.f32 %v1126, %v1174
        %v1177 = vadd.f32 %v1127, %v1175
        %s1178 = sld [smem:[#allocation4 + $0x84]]
        %v1179 = vstv %s1178
        %v1180 = vmul.f32 %v1179, %v1158
        %v1181 = vmul.f32 %v1179, %v1159
        %v1182 = vadd.f32 %v1132, %v1180
        %v1183 = vadd.f32 %v1133, %v1181
        %v1184 = vsel %vm249, %v1136, 0.0
        %v1185 = vsel %vm250, %v1137, 0.0
        %s1186 = sld [smem:[#allocation4 + $0x19]]
        %v1187 = vstv %s1186
        %v1188 = vmul.f32 %v1187, %v1184
        %v1189 = vmul.f32 %v1187, %v1185
        %v1190 = vadd.f32 %v1164, %v1188
        %v1191 = vadd.f32 %v1165, %v1189
        %s1192 = sld [smem:[#allocation4 + $0x3d]]
        %v1193 = vstv %s1192
        %v1194 = vmul.f32 %v1193, %v1184
        %v1195 = vmul.f32 %v1193, %v1185
        %v1196 = vadd.f32 %v1170, %v1194
        %v1197 = vadd.f32 %v1171, %v1195
        %s1198 = sld [smem:[#allocation4 + $0x61]]
        %v1199 = vstv %s1198
        %v1200 = vmul.f32 %v1199, %v1184
        %v1201 = vmul.f32 %v1199, %v1185
        %v1202 = vadd.f32 %v1176, %v1200
        %v1203 = vadd.f32 %v1177, %v1201
        %s1204 = sld [smem:[#allocation4 + $0x85]]
        %v1205 = vstv %s1204
        %v1206 = vmul.f32 %v1205, %v1184
        %v1207 = vmul.f32 %v1205, %v1185
        %v1208 = vadd.f32 %v1182, %v1206
        %v1209 = vadd.f32 %v1183, %v1207
        %1210 = vrot.lane.b32.xlu0 %v1148, 127
        %v1211 = vpop.permute.xlu0 %1210
        %1212 = vrot.lane.b32.xlu0 %v1149, 127
        %v1213 = vpop.permute.xlu0 %1212
        %v1216 = vsel %vm253, %v1211, 0.0
        %v1217 = vsel %vm254, %v1213, 0.0
        %s1218 = sld [smem:[#allocation4 + $0x1a]]
        %v1219 = vstv %s1218
        %v1220 = vmul.f32 %v1219, %v1216
        %v1221 = vmul.f32 %v1219, %v1217
        %v1222 = vadd.f32 %v1190, %v1220
        %v1223 = vadd.f32 %v1191, %v1221
        %s1224 = sld [smem:[#allocation4 + $0x3e]]
        %v1225 = vstv %s1224
        %v1226 = vmul.f32 %v1225, %v1216
        %v1227 = vmul.f32 %v1225, %v1217
        %v1228 = vadd.f32 %v1196, %v1226
        %v1229 = vadd.f32 %v1197, %v1227
        %s1230 = sld [smem:[#allocation4 + $0x62]]
        %v1231 = vstv %s1230
        %v1232 = vmul.f32 %v1231, %v1216
        %v1233 = vmul.f32 %v1231, %v1217
        %v1234 = vadd.f32 %v1202, %v1232
        %v1235 = vadd.f32 %v1203, %v1233
        %s1236 = sld [smem:[#allocation4 + $0x86]]
        %v1237 = vstv %s1236
        %v1238 = vmul.f32 %v1237, %v1216
        %v1239 = vmul.f32 %v1237, %v1217
        %v1240 = vadd.f32 %v1208, %v1238
        %v1241 = vadd.f32 %v1209, %v1239
        %s1242 = scalar_lea.vmem %s226, 48
        %v1243 = vld [vmem:[%s1242] sm:$0xff]
        %v1244 = vld [vmem:[%s1242 + $0x8] sm:$0xff]
        %s1245 = sld [smem:[#allocation2 + $0x3]]
        %v1246 = vstv %s1245
        %v1247 = vmul.f32 %v1243, %v1246
        %v1248 = vmul.f32 %v1244, %v1246
        %s1249 = sld [smem:[#allocation2 + $0x7]]
        %v1250 = vstv %s1249
        %v1251 = vadd.f32 %v1247, %v1250
        %v1252 = vadd.f32 %v1248, %v1250
        %v1253 = vmax.f32 %v1251, 0.0
        %v1254 = vmax.f32 %v1252, 0.0
        %v1255 = vrot.slane %v1253, 7
        %v1256 = vrot.slane %v1254, 7
        %v1257 = vsel %vm269, %v1255, %v1256
        %v1258 = vsel %vm269, %v1256, %v1255
        %1259 = vrot.lane.b32.xlu0 %v1258, 16
        %v1260 = vpop.permute.xlu0 %1259
        %v1261 = vsel %vm272, %v1260, %v1258
        %1262 = vrot.lane.b32.xlu0 %v1257, 16
        %v1263 = vpop.permute.xlu0 %1262
        %v1264 = vsel %vm272, %v1263, %v1257
        %1265 = vrot.lane.b32.xlu0 %v1261, 16
        %v1266 = vpop.permute.xlu0 %1265
        %1267 = vrot.lane.b32.xlu0 %v1264, 16
        %v1268 = vpop.permute.xlu0 %1267
        %v1269 = vsel %vm272, %v1266, %v1258
        %v1270 = vsel %vm272, %v1268, %v1257
        %1273 = vrot.lane.b32.xlu0 %v1269, 113
        %v1274 = vpop.permute.xlu0 %1273
        %1275 = vrot.lane.b32.xlu0 %v1270, 113
        %v1276 = vpop.permute.xlu0 %1275
        %v1279 = vsel %vm244, %v1274, 0.0
        %v1280 = vsel %vm245, %v1276, 0.0
        %s1281 = sld [smem:[#allocation4 + $0x1b]]
        %v1282 = vstv %s1281
        %v1283 = vmul.f32 %v1282, %v1279
        %v1284 = vmul.f32 %v1282, %v1280
        %v1285 = vadd.f32 %v1222, %v1283
        %v1286 = vadd.f32 %v1223, %v1284
        %s1287 = sld [smem:[#allocation4 + $0x3f]]
        %v1288 = vstv %s1287
        %v1289 = vmul.f32 %v1288, %v1279
        %v1290 = vmul.f32 %v1288, %v1280
        %v1291 = vadd.f32 %v1228, %v1289
        %v1292 = vadd.f32 %v1229, %v1290
        %s1293 = sld [smem:[#allocation4 + $0x63]]
        %v1294 = vstv %s1293
        %v1295 = vmul.f32 %v1294, %v1279
        %v1296 = vmul.f32 %v1294, %v1280
        %v1297 = vadd.f32 %v1234, %v1295
        %v1298 = vadd.f32 %v1235, %v1296
        %s1299 = sld [smem:[#allocation4 + $0x87]]
        %v1300 = vstv %s1299
        %v1301 = vmul.f32 %v1300, %v1279
        %v1302 = vmul.f32 %v1300, %v1280
        %v1303 = vadd.f32 %v1240, %v1301
        %v1304 = vadd.f32 %v1241, %v1302
        %v1305 = vsel %vm241, %v1258, 0.0
        %v1306 = vsel %vm242, %v1257, 0.0
        %s1307 = sld [smem:[#allocation4 + $0x1c]]
        %v1308 = vstv %s1307
        %v1309 = vmul.f32 %v1308, %v1305
        %v1310 = vmul.f32 %v1308, %v1306
        %v1311 = vadd.f32 %v1285, %v1309
        %v1312 = vadd.f32 %v1286, %v1310
        %s1313 = sld [smem:[#allocation4 + $0x40]]
        %v1314 = vstv %s1313
        %v1315 = vmul.f32 %v1314, %v1305
        %v1316 = vmul.f32 %v1314, %v1306
        %v1317 = vadd.f32 %v1291, %v1315
        %v1318 = vadd.f32 %v1292, %v1316
        %s1319 = sld [smem:[#allocation4 + $0x64]]
        %v1320 = vstv %s1319
        %v1321 = vmul.f32 %v1320, %v1305
        %v1322 = vmul.f32 %v1320, %v1306
        %v1323 = vadd.f32 %v1297, %v1321
        %v1324 = vadd.f32 %v1298, %v1322
        %s1325 = sld [smem:[#allocation4 + $0x88]]
        %v1326 = vstv %s1325
        %v1327 = vmul.f32 %v1326, %v1305
        %v1328 = vmul.f32 %v1326, %v1306
        %v1329 = vadd.f32 %v1303, %v1327
        %v1330 = vadd.f32 %v1304, %v1328
        %1331 = vrot.lane.b32.xlu0 %v1269, 127
        %v1332 = vpop.permute.xlu0 %1331
        %1333 = vrot.lane.b32.xlu0 %v1270, 127
        %v1334 = vpop.permute.xlu0 %1333
        %v1337 = vsel %vm247, %v1332, 0.0
        %v1338 = vsel %vm248, %v1334, 0.0
        %s1339 = sld [smem:[#allocation4 + $0x1d]]
        %v1340 = vstv %s1339
        %v1341 = vmul.f32 %v1340, %v1337
        %v1342 = vmul.f32 %v1340, %v1338
        %v1343 = vadd.f32 %v1311, %v1341
        %v1344 = vadd.f32 %v1312, %v1342
        %s1345 = sld [smem:[#allocation4 + $0x41]]
        %v1346 = vstv %s1345
        %v1347 = vmul.f32 %v1346, %v1337
        %v1348 = vmul.f32 %v1346, %v1338
        %v1349 = vadd.f32 %v1317, %v1347
        %v1350 = vadd.f32 %v1318, %v1348
        %s1351 = sld [smem:[#allocation4 + $0x65]]
        %v1352 = vstv %s1351
        %v1353 = vmul.f32 %v1352, %v1337
        %v1354 = vmul.f32 %v1352, %v1338
        %v1355 = vadd.f32 %v1323, %v1353
        %v1356 = vadd.f32 %v1324, %v1354
        %s1357 = sld [smem:[#allocation4 + $0x89]]
        %v1358 = vstv %s1357
        %v1359 = vmul.f32 %v1358, %v1337
        %v1360 = vmul.f32 %v1358, %v1338
        %v1361 = vadd.f32 %v1329, %v1359
        %v1362 = vadd.f32 %v1330, %v1360
        %1363 = vrot.lane.b32.xlu0 %v1253, 16
        %v1364 = vpop.permute.xlu0 %1363
        %v1365 = vsel %vm272, %v1364, %v1253
        %1366 = vrot.lane.b32.xlu0 %v1254, 16
        %v1367 = vpop.permute.xlu0 %1366
        %v1368 = vsel %vm272, %v1367, %v1254
        %1369 = vrot.lane.b32.xlu0 %v1365, 16
        %v1370 = vpop.permute.xlu0 %1369
        %1371 = vrot.lane.b32.xlu0 %v1368, 16
        %v1372 = vpop.permute.xlu0 %1371
        %v1373 = vsel %vm272, %v1370, %v1253
        %v1374 = vsel %vm272, %v1372, %v1254
        %1377 = vrot.lane.b32.xlu0 %v1373, 113
        %v1378 = vpop.permute.xlu0 %1377
        %1379 = vrot.lane.b32.xlu0 %v1374, 113
        %v1380 = vpop.permute.xlu0 %1379
        %v1383 = vsel %vm243, %v1378, 0.0
        %v1384 = vsel %vm243, %v1380, 0.0
        %s1385 = sld [smem:[#allocation4 + $0x1e]]
        %v1386 = vstv %s1385
        %v1387 = vmul.f32 %v1386, %v1383
        %v1388 = vmul.f32 %v1386, %v1384
        %v1389 = vadd.f32 %v1343, %v1387
        %v1390 = vadd.f32 %v1344, %v1388
        %s1391 = sld [smem:[#allocation4 + $0x42]]
        %v1392 = vstv %s1391
        %v1393 = vmul.f32 %v1392, %v1383
        %v1394 = vmul.f32 %v1392, %v1384
        %v1395 = vadd.f32 %v1349, %v1393
        %v1396 = vadd.f32 %v1350, %v1394
        %s1397 = sld [smem:[#allocation4 + $0x66]]
        %v1398 = vstv %s1397
        %v1399 = vmul.f32 %v1398, %v1383
        %v1400 = vmul.f32 %v1398, %v1384
        %v1401 = vadd.f32 %v1355, %v1399
        %v1402 = vadd.f32 %v1356, %v1400
        %s1403 = sld [smem:[#allocation4 + $0x8a]]
        %v1404 = vstv %s1403
        %v1405 = vmul.f32 %v1404, %v1383
        %v1406 = vmul.f32 %v1404, %v1384
        %v1407 = vadd.f32 %v1361, %v1405
        %v1408 = vadd.f32 %v1362, %v1406
        %s1409 = sld [smem:[#allocation4 + $0x1f]]
        %v1410 = vstv %s1409
        %v1411 = vmul.f32 %v1410, %v1253
        %v1412 = vmul.f32 %v1410, %v1254
        %v1413 = vadd.f32 %v1389, %v1411
        %v1414 = vadd.f32 %v1390, %v1412
        %s1415 = sld [smem:[#allocation4 + $0x43]]
        %v1416 = vstv %s1415
        %v1417 = vmul.f32 %v1416, %v1253
        %v1418 = vmul.f32 %v1416, %v1254
        %v1419 = vadd.f32 %v1395, %v1417
        %v1420 = vadd.f32 %v1396, %v1418
        %s1421 = sld [smem:[#allocation4 + $0x67]]
        %v1422 = vstv %s1421
        %v1423 = vmul.f32 %v1422, %v1253
        %v1424 = vmul.f32 %v1422, %v1254
        %v1425 = vadd.f32 %v1401, %v1423
        %v1426 = vadd.f32 %v1402, %v1424
        %s1427 = sld [smem:[#allocation4 + $0x8b]]
        %v1428 = vstv %s1427
        %v1429 = vmul.f32 %v1428, %v1253
        %v1430 = vmul.f32 %v1428, %v1254
        %v1431 = vadd.f32 %v1407, %v1429
        %v1432 = vadd.f32 %v1408, %v1430
        %1433 = vrot.lane.b32.xlu0 %v1373, 127
        %v1434 = vpop.permute.xlu0 %1433
        %1435 = vrot.lane.b32.xlu0 %v1374, 127
        %v1436 = vpop.permute.xlu0 %1435
        %v1439 = vsel %vm246, %v1434, 0.0
        %v1440 = vsel %vm246, %v1436, 0.0
        %s1441 = sld [smem:[#allocation4 + $0x20]]
        %v1442 = vstv %s1441
        %v1443 = vmul.f32 %v1442, %v1439
        %v1444 = vmul.f32 %v1442, %v1440
        %v1445 = vadd.f32 %v1413, %v1443
        %v1446 = vadd.f32 %v1414, %v1444
        %s1447 = sld [smem:[#allocation4 + $0x44]]
        %v1448 = vstv %s1447
        %v1449 = vmul.f32 %v1448, %v1439
        %v1450 = vmul.f32 %v1448, %v1440
        %v1451 = vadd.f32 %v1419, %v1449
        %v1452 = vadd.f32 %v1420, %v1450
        %s1453 = sld [smem:[#allocation4 + $0x68]]
        %v1454 = vstv %s1453
        %v1455 = vmul.f32 %v1454, %v1439
        %v1456 = vmul.f32 %v1454, %v1440
        %v1457 = vadd.f32 %v1425, %v1455
        %v1458 = vadd.f32 %v1426, %v1456
        %s1459 = sld [smem:[#allocation4 + $0x8c]]
        %v1460 = vstv %s1459
        %v1461 = vmul.f32 %v1460, %v1439
        %v1462 = vmul.f32 %v1460, %v1440
        %v1463 = vadd.f32 %v1431, %v1461
        %v1464 = vadd.f32 %v1432, %v1462
        %v1465 = vrot.slane %v1253, 1
        %v1466 = vrot.slane %v1254, 1
        %v1467 = vsel %vm473, %v1465, %v1466
        %v1468 = vsel %vm473, %v1466, %v1465
        %1469 = vrot.lane.b32.xlu0 %v1467, 16
        %v1470 = vpop.permute.xlu0 %1469
        %v1471 = vsel %vm272, %v1470, %v1467
        %1472 = vrot.lane.b32.xlu0 %v1468, 16
        %v1473 = vpop.permute.xlu0 %1472
        %v1474 = vsel %vm272, %v1473, %v1468
        %1475 = vrot.lane.b32.xlu0 %v1471, 16
        %v1476 = vpop.permute.xlu0 %1475
        %1477 = vrot.lane.b32.xlu0 %v1474, 16
        %v1478 = vpop.permute.xlu0 %1477
        %v1479 = vsel %vm272, %v1476, %v1467
        %v1480 = vsel %vm272, %v1478, %v1468
        %1483 = vrot.lane.b32.xlu0 %v1479, 113
        %v1484 = vpop.permute.xlu0 %1483
        %1485 = vrot.lane.b32.xlu0 %v1480, 113
        %v1486 = vpop.permute.xlu0 %1485
        %v1489 = vsel %vm251, %v1484, 0.0
        %v1490 = vsel %vm252, %v1486, 0.0
        %s1491 = sld [smem:[#allocation4 + $0x21]]
        %v1492 = vstv %s1491
        %v1493 = vmul.f32 %v1492, %v1489
        %v1494 = vmul.f32 %v1492, %v1490
        %v1495 = vadd.f32 %v1445, %v1493
        %v1496 = vadd.f32 %v1446, %v1494
        %s1497 = sld [smem:[#allocation4 + $0x45]]
        %v1498 = vstv %s1497
        %v1499 = vmul.f32 %v1498, %v1489
        %v1500 = vmul.f32 %v1498, %v1490
        %v1501 = vadd.f32 %v1451, %v1499
        %v1502 = vadd.f32 %v1452, %v1500
        %s1503 = sld [smem:[#allocation4 + $0x69]]
        %v1504 = vstv %s1503
        %v1505 = vmul.f32 %v1504, %v1489
        %v1506 = vmul.f32 %v1504, %v1490
        %v1507 = vadd.f32 %v1457, %v1505
        %v1508 = vadd.f32 %v1458, %v1506
        %s1509 = sld [smem:[#allocation4 + $0x8d]]
        %v1510 = vstv %s1509
        %v1511 = vmul.f32 %v1510, %v1489
        %v1512 = vmul.f32 %v1510, %v1490
        %v1513 = vadd.f32 %v1463, %v1511
        %v1514 = vadd.f32 %v1464, %v1512
        %v1515 = vsel %vm249, %v1467, 0.0
        %v1516 = vsel %vm250, %v1468, 0.0
        %s1517 = sld [smem:[#allocation4 + $0x22]]
        %v1518 = vstv %s1517
        %v1519 = vmul.f32 %v1518, %v1515
        %v1520 = vmul.f32 %v1518, %v1516
        %v1521 = vadd.f32 %v1495, %v1519
        %v1522 = vadd.f32 %v1496, %v1520
        %s1523 = sld [smem:[#allocation4 + $0x46]]
        %v1524 = vstv %s1523
        %v1525 = vmul.f32 %v1524, %v1515
        %v1526 = vmul.f32 %v1524, %v1516
        %v1527 = vadd.f32 %v1501, %v1525
        %v1528 = vadd.f32 %v1502, %v1526
        %s1529 = sld [smem:[#allocation4 + $0x6a]]
        %v1530 = vstv %s1529
        %v1531 = vmul.f32 %v1530, %v1515
        %v1532 = vmul.f32 %v1530, %v1516
        %v1533 = vadd.f32 %v1507, %v1531
        %v1534 = vadd.f32 %v1508, %v1532
        %s1535 = sld [smem:[#allocation4 + $0x8e]]
        %v1536 = vstv %s1535
        %v1537 = vmul.f32 %v1536, %v1515
        %v1538 = vmul.f32 %v1536, %v1516
        %v1539 = vadd.f32 %v1513, %v1537
        %v1540 = vadd.f32 %v1514, %v1538
        %1541 = vrot.lane.b32.xlu0 %v1479, 127
        %v1542 = vpop.permute.xlu0 %1541
        %1543 = vrot.lane.b32.xlu0 %v1480, 127
        %v1544 = vpop.permute.xlu0 %1543
        %v1547 = vsel %vm253, %v1542, 0.0
        %v1548 = vsel %vm254, %v1544, 0.0
        %s1549 = sld [smem:[#allocation4 + $0x23]]
        %v1550 = vstv %s1549
        %v1551 = vmul.f32 %v1550, %v1547
        %v1552 = vmul.f32 %v1550, %v1548
        %v1553 = vadd.f32 %v1521, %v1551
        %v1554 = vadd.f32 %v1522, %v1552
        %s1555 = sld [smem:[#allocation4 + $0x47]]
        %v1556 = vstv %s1555
        %v1557 = vmul.f32 %v1556, %v1547
        %v1558 = vmul.f32 %v1556, %v1548
        %v1559 = vadd.f32 %v1527, %v1557
        %v1560 = vadd.f32 %v1528, %v1558
        %s1561 = sld [smem:[#allocation4 + $0x6b]]
        %v1562 = vstv %s1561
        %v1563 = vmul.f32 %v1562, %v1547
        %v1564 = vmul.f32 %v1562, %v1548
        %v1565 = vadd.f32 %v1533, %v1563
        %v1566 = vadd.f32 %v1534, %v1564
        %s1567 = sld [smem:[#allocation4 + $0x8f]]
        %v1568 = vstv %s1567
        %v1569 = vmul.f32 %v1568, %v1547
        %v1570 = vmul.f32 %v1568, %v1548
        %v1571 = vadd.f32 %v1539, %v1569
        %v1572 = vadd.f32 %v1540, %v1570
        %vm1573 = vcmask 130048
        %1574 = vst.msk [vmem:[%s231] sm:$0xff] %vm1573, %v1553
        %1575 = vst.msk [vmem:[%s231 + $0x8] sm:$0xff] %vm1573, %v1554
        %v1576 = vsel %vm1573, %v1553, 0.0
        %1577 = vadd.xlane.f32.xlu0 %v1576
        %v1578 = vpop.xlane.xlu0 %1577
        %v1579 = vsel %vm1573, %v1554, 0.0
        %1580 = vadd.xlane.f32.xlu0 %v1579
        %v1581 = vpop.xlane.xlu0 %1580
        %v1582 = vadd.f32 %v1578, %v1581
        %v1583 = vrot.slane %v1582, 4
        %v1584 = vadd.f32 %v1582, %v1583
        %v1585 = vrot.slane %v1584, 2
        %v1586 = vadd.f32 %v1584, %v1585
        %v1587 = vrot.slane %v1586, 1
        %v1588 = vadd.f32 %v1586, %v1587
        %v1589 = vmul.f32 %v1553, %v1553
        %v1590 = vmul.f32 %v1554, %v1554
        %v1591 = vsel %vm1573, %v1589, 0.0
        %1592 = vadd.xlane.f32.xlu0 %v1591
        %v1593 = vpop.xlane.xlu0 %1592
        %v1594 = vsel %vm1573, %v1590, 0.0
        %1595 = vadd.xlane.f32.xlu0 %v1594
        %v1596 = vpop.xlane.xlu0 %1595
        %v1597 = vadd.f32 %v1593, %v1596
        %v1598 = vrot.slane %v1597, 4
        %v1599 = vadd.f32 %v1597, %v1598
        %v1600 = vrot.slane %v1599, 2
        %v1601 = vadd.f32 %v1599, %v1600
        %v1602 = vrot.slane %v1601, 1
        %v1603 = vadd.f32 %v1601, %v1602
        %s1604 = scalar_lea.vmem %s231, 16
        %1605 = vst.msk [vmem:[%s1604] sm:$0xff] %vm1573, %v1559
        %1606 = vst.msk [vmem:[%s1604 + $0x8] sm:$0xff] %vm1573, %v1560
        %v1607 = vsel %vm1573, %v1559, 0.0
        %1608 = vadd.xlane.f32.xlu0 %v1607
        %v1609 = vpop.xlane.xlu0 %1608
        %v1610 = vsel %vm1573, %v1560, 0.0
        %1611 = vadd.xlane.f32.xlu0 %v1610
        %v1612 = vpop.xlane.xlu0 %1611
        %v1613 = vadd.f32 %v1609, %v1612
        %v1614 = vrot.slane %v1613, 4
        %v1615 = vadd.f32 %v1613, %v1614
        %v1616 = vrot.slane %v1615, 2
        %v1617 = vadd.f32 %v1615, %v1616
        %v1618 = vrot.slane %v1617, 1
        %v1619 = vadd.f32 %v1617, %v1618
        %v1620 = vmul.f32 %v1559, %v1559
        %v1621 = vmul.f32 %v1560, %v1560
        %v1622 = vsel %vm1573, %v1620, 0.0
        %1623 = vadd.xlane.f32.xlu0 %v1622
        %v1624 = vpop.xlane.xlu0 %1623
        %v1625 = vsel %vm1573, %v1621, 0.0
        %1626 = vadd.xlane.f32.xlu0 %v1625
        %v1627 = vpop.xlane.xlu0 %1626
        %v1628 = vadd.f32 %v1624, %v1627
        %v1629 = vrot.slane %v1628, 4
        %v1630 = vadd.f32 %v1628, %v1629
        %v1631 = vrot.slane %v1630, 2
        %v1632 = vadd.f32 %v1630, %v1631
        %v1633 = vrot.slane %v1632, 1
        %v1634 = vadd.f32 %v1632, %v1633
        %s1635 = scalar_lea.vmem %s231, 32
        %1636 = vst.msk [vmem:[%s1635] sm:$0xff] %vm1573, %v1565
        %1637 = vst.msk [vmem:[%s1635 + $0x8] sm:$0xff] %vm1573, %v1566
        %v1638 = vsel %vm1573, %v1565, 0.0
        %1639 = vadd.xlane.f32.xlu0 %v1638
        %v1640 = vpop.xlane.xlu0 %1639
        %v1641 = vsel %vm1573, %v1566, 0.0
        %1642 = vadd.xlane.f32.xlu0 %v1641
        %v1643 = vpop.xlane.xlu0 %1642
        %v1644 = vadd.f32 %v1640, %v1643
        %v1645 = vrot.slane %v1644, 4
        %v1646 = vadd.f32 %v1644, %v1645
        %v1647 = vrot.slane %v1646, 2
        %v1648 = vadd.f32 %v1646, %v1647
        %v1649 = vrot.slane %v1648, 1
        %v1650 = vadd.f32 %v1648, %v1649
        %v1651 = vmul.f32 %v1565, %v1565
        %v1652 = vmul.f32 %v1566, %v1566
        %v1653 = vsel %vm1573, %v1651, 0.0
        %1654 = vadd.xlane.f32.xlu0 %v1653
        %v1655 = vpop.xlane.xlu0 %1654
        %v1656 = vsel %vm1573, %v1652, 0.0
        %1657 = vadd.xlane.f32.xlu0 %v1656
        %v1658 = vpop.xlane.xlu0 %1657
        %v1659 = vadd.f32 %v1655, %v1658
        %v1660 = vrot.slane %v1659, 4
        %v1661 = vadd.f32 %v1659, %v1660
        %v1662 = vrot.slane %v1661, 2
        %v1663 = vadd.f32 %v1661, %v1662
        %v1664 = vrot.slane %v1663, 1
        %v1665 = vadd.f32 %v1663, %v1664
        %s1666 = scalar_lea.vmem %s231, 48
        %1667 = vst.msk [vmem:[%s1666] sm:$0xff] %vm1573, %v1571
        %1668 = vst.msk [vmem:[%s1666 + $0x8] sm:$0xff] %vm1573, %v1572
        %v1669 = vsel %vm1573, %v1571, 0.0
        %1670 = vadd.xlane.f32.xlu0 %v1669
        %v1671 = vpop.xlane.xlu0 %1670
        %v1672 = vsel %vm1573, %v1572, 0.0
        %1673 = vadd.xlane.f32.xlu0 %v1672
        %v1674 = vpop.xlane.xlu0 %1673
        %v1675 = vadd.f32 %v1671, %v1674
        %v1676 = vrot.slane %v1675, 4
        %v1677 = vadd.f32 %v1675, %v1676
        %v1678 = vrot.slane %v1677, 2
        %v1679 = vadd.f32 %v1677, %v1678
        %v1680 = vrot.slane %v1679, 1
        %v1681 = vadd.f32 %v1679, %v1680
        %v1682 = vmul.f32 %v1571, %v1571
        %v1683 = vmul.f32 %v1572, %v1572
        %v1684 = vsel %vm1573, %v1682, 0.0
        %1685 = vadd.xlane.f32.xlu0 %v1684
        %v1686 = vpop.xlane.xlu0 %1685
        %v1687 = vsel %vm1573, %v1683, 0.0
        %1688 = vadd.xlane.f32.xlu0 %v1687
        %v1689 = vpop.xlane.xlu0 %1688
        %v1690 = vadd.f32 %v1686, %v1689
        %v1691 = vrot.slane %v1690, 4
        %v1692 = vadd.f32 %v1690, %v1691
        %v1693 = vrot.slane %v1692, 2
        %v1694 = vadd.f32 %v1692, %v1693
        %v1695 = vrot.slane %v1694, 1
        %v1696 = vadd.f32 %v1694, %v1695
        %vm1697 = vcmask 7168
        %v1698 = vsel %vm1697, %v1588, %v1603
        %v1699 = vsel %vm1697, %v1619, %v1634
        %v1700 = vsel %vm1697, %v1650, %v1665
        %v1701 = vsel %vm1697, %v1681, %v1696
        %v1703 = vrot.slane %v1699, 7
        %v1706 = vrot.slane %v1700, 6
        %v1709 = vrot.slane %v1701, 5
        %vm1711 = vcmask 1040384
        %v1712 = vsel %vm1711, %v1698, %v1703
        %vm1713 = vcmask 1041408
        %v1714 = vsel %vm1713, %v1712, %v1706
        %vm1715 = vcmask 1042432
        %v1716 = vsel %vm1715, %v1714, %v1709
        %vm1717 = vcmask 11264
        %1718 = vst.msk [vmem:[%s235] sm:$0xf] %vm1717, %v1716
        %p1719 = scmp.lt.s32.totalorder %s18, 1
        %s1720 = scalar_select %p1719, %s18, 1
        %s1721 = smul.addr %s1720, 8
        %s1722 = smul.addr %s1721, 8
        %s1723 = scalar_lea.vmem %s3, %s1722
        %p1724 = scmp.lt.s32.totalorder %s18, 1
        %s1725 = scalar_select %p1724, %s18, 1
        %s1726 = smul.addr %s1725, 4
        %s1727 = scalar_lea.vmem %s4, %s1726
        // Predicated region
        $region41: #{resblock_forward.4} parent=31 // pred_check
          %p1728 = pneg %p104
        $region42: #{resblock_forward.4} parent=31 // pred_check_branch
          %1730 = sbr.rel (%p1728) target = $region44
        $region43: #{resblock_forward.4} parent=31 // pred_region
          _
        $region44: #{resblock_forward.4} parent=31 // pred_fallthru
          _
        // Predicated region
        $region45: #{resblock_forward.4} parent=31 // pred_check
          %p1731 = pneg %p130
        $region46: #{resblock_forward.4} parent=31 // pred_check_branch
          %1733 = sbr.rel (%p1731) target = $region48
        $region47: #{resblock_forward.4} parent=31 // pred_region
          _
        $region48: #{resblock_forward.4} parent=31 // pred_fallthru
          _
      $region32: #{resblock_forward.4} parent=5 // pred_fallthru
        _
      %p1734 = scmp.le.s32.totalorder 2, %s13
      // Predicated region
      $region49: #{resblock_forward.4} parent=5 // pred_check
        %p1735 = pneg %p1734
      $region50: #{resblock_forward.4} parent=5 // pred_check_branch
        %1737 = sbr.rel (%p1735) target = $region52
      $region51: #{resblock_forward.4} parent=5 // pred_region
        %s1738 = ssub.s32 %s13, 2
        // Predicated region
        $region53: #{resblock_forward.4} parent=51 // pred_check
          %p1739 = pneg %p110
        $region54: #{resblock_forward.4} parent=51 // pred_check_branch
          %1741 = sbr.rel (%p1739) target = $region56
        $region55: #{resblock_forward.4} parent=51 // pred_region
          %p1742 = scmp.lt.s32.totalorder %s19, 1
          %s1743 = scalar_select %p1742, %s19, 1
          %s1744 = smul.addr %s1743, 8
          %s1745 = smul.addr %s1744, 8
          %s1746 = scalar_lea.vmem %s3, %s1745
        $region56: #{resblock_forward.4} parent=51 // pred_fallthru
          _
        // Predicated region
        $region57: #{resblock_forward.4} parent=51 // pred_check
          %p1747 = pneg %p136
        $region58: #{resblock_forward.4} parent=51 // pred_check_branch
          %1749 = sbr.rel (%p1747) target = $region60
        $region59: #{resblock_forward.4} parent=51 // pred_region
          %p1750 = scmp.lt.s32.totalorder %s19, 1
          %s1751 = scalar_select %p1750, %s19, 1
          %s1752 = smul.addr %s1751, 4
          %s1753 = scalar_lea.vmem %s4, %s1752
        $region60: #{resblock_forward.4} parent=51 // pred_fallthru
          _
      $region52: #{resblock_forward.4} parent=5 // pred_fallthru
        _
    $region6: #{resblock_forward.4} parent=1 // loop_footer
      %s17 = sadd.s32 1, %s13
    $region7: #{resblock_forward.4} parent=1 // loop_footer_branch
      %12 = sbr.rel target = $region3
    $region8: #{resblock_forward.4} parent=1 // loop_exit
      _
    %1754 = vsyncpa [#allocation3], 1
    %s1755 = scalar_lea.sflag [#allocation3], 1
    %1756 = vsyncpa %s1755, 1
    %1757 = vsyncpa [#allocation5], 1

</llo_original>
